<compile_context>
chip_gen: v7x
topology: tpu7x:2x2x1
jax: 0.10.0
libtpu: 0.0.40
codegen_flags: <defaults>
</compile_context>

<pallas_src>
import jax
import jax.numpy as jnp
from jax.experimental import pallas as pl
from jax.experimental.pallas import tpu as pltpu


def _mlp_kernel(x_ref, w1_ref, b1_ref, w2_ref, b2_ref,
                w3_ref, b3_ref, w4_ref, b4_ref, o_ref):
    def leaky(v):
        return jnp.maximum(v, 0.01 * v)          # == LeakyReLU(0.01)

    bf16 = jnp.bfloat16

    # Layer 1: (T, 8)bf16 @ (8, 256)bf16 -> f32.  One (underfilled) MXU pass.
    h = leaky(jnp.dot(x_ref[...], w1_ref[...],
                      preferred_element_type=jnp.float32) + b1_ref[...])

    # Layers 2/3: the dominant 256x256 matmuls, native bf16 MXU passes with
    # f32 accumulation; bias and activation stay f32.
    h = leaky(jnp.dot(h.astype(bf16), w2_ref[...],
                      preferred_element_type=jnp.float32) + b2_ref[...])
    h = leaky(jnp.dot(h.astype(bf16), w3_ref[...],
                      preferred_element_type=jnp.float32) + b3_ref[...])

    # Layer 4: (T, 256) @ (256, 1) -> tiny (T, 1) block store (no transpose
    # of the activation slab).
    logits = jnp.dot(h.astype(bf16), w4_ref[...],
                     preferred_element_type=jnp.float32)

    # TODO(synk): Dropout(0.2) is identity at inference; training-mode masking
    # (pltpu.prng_random_bits) not implemented.
    o_ref[...] = jax.nn.sigmoid(logits + b4_ref[0, 0])


def _round_up(n, m):
    return ((n + m - 1) // m) * m


def _cdiv(a, b):
    return (a + b - 1) // b


def escape_model_forward(x, params, *, batch_tile=1024):
    """x: (B, 4) float32 -> (B, 1) float32."""
    B, dim = x.shape
    w1, b1, w2, b2, w3, b3, w4, b4 = params
    hid = w1.shape[1]

    # --- bf16 weight path (f32 accumulation happens in-kernel). -------------
    dim_p = 8                                        # pad K of layer 1 to 8
    w1p = jnp.zeros((dim_p, hid), jnp.bfloat16).at[:dim, :].set(
        w1.astype(jnp.bfloat16))
    w2b = w2.astype(jnp.bfloat16)
    w3b = w3.astype(jnp.bfloat16)
    w4b = w4.astype(jnp.bfloat16)                    # (hid, 1)
    b4s = jnp.reshape(b4, (1, 1)).astype(jnp.float32)  # scalar bias -> SMEM

    # --- batch tiling --------------------------------------------------------
    # Multiples of 256 keep the v6e/v7x 256x256 MXU (and v5e's 4x128x128) full;
    # >= 2 parallel grid steps keeps both v7x TensorCores busy.
    base = 256 if B > 128 else 128
    Bp0 = _round_up(B, base)
    n_steps = _cdiv(Bp0, batch_tile)
    if n_steps == 1 and Bp0 >= 2 * base:
        n_steps = 2
    tile = _round_up(_cdiv(Bp0, n_steps), base)
    Bp = tile * _cdiv(Bp0, tile)
    grid = (Bp // tile,)

    # Pad batch rows and lane dim; input is cast to bf16 for the layer-1 MXU.
    xp = jnp.zeros((Bp, dim_p), jnp.bfloat16).at[:B, :dim].set(
        x.astype(jnp.bfloat16))

    x_spec = pl.BlockSpec((tile, dim_p), lambda i: (i, 0))
    o_spec = pl.BlockSpec((tile, 1), lambda i: (i, 0))

    def rep_spec(shape):                 # grid-invariant weights / biases
        return pl.BlockSpec(shape, lambda i: (0, 0))

    flops = 2 * Bp * (dim_p * hid + hid * hid + hid * hid + hid)
    bytes_accessed = (2 * (xp.size + w1p.size + w2b.size + w3b.size + w4b.size)
                      + 4 * (b1.size + b2.size + b3.size + 1 + Bp))

    out = pl.pallas_call(
        _mlp_kernel,
        out_shape=jax.ShapeDtypeStruct((Bp, 1), jnp.float32),
        grid_spec=pltpu.PrefetchScalarGridSpec(
            num_scalar_prefetch=0,
            grid=grid,
            in_specs=[
                x_spec,
                rep_spec(w1p.shape), rep_spec(b1.shape),
                rep_spec(w2b.shape), rep_spec(b2.shape),
                rep_spec(w3b.shape), rep_spec(b3.shape),
                rep_spec(w4b.shape),
                pl.BlockSpec(memory_space=pltpu.MemorySpace.SMEM),
            ],
            out_specs=o_spec,
        ),
        compiler_params=pltpu.CompilerParams(
            dimension_semantics=("parallel",),
            vmem_limit_bytes=32 * 1024 * 1024),
        cost_estimate=pl.CostEstimate(
            flops=flops, transcendentals=Bp, bytes_accessed=bytes_accessed),
    )(xp, w1p, b1, w2b, b2, w3b, b3, w4b, b4s)

    return out[:B]


def init_params(key, dim=4, hid=256):
    """Deterministic synthetic init (PyTorch-like uniform fan-in scaling)."""
    ks = jax.random.split(key, 8)

    def lin(kw, kb, fan_in, fan_out):
        bound = 1.0 / jnp.sqrt(fan_in)
        w = jax.random.uniform(kw, (fan_in, fan_out), jnp.float32, -bound, bound)
        b = jax.random.uniform(kb, (1, fan_out), jnp.float32, -bound, bound)
        return w, b

    w1, b1 = lin(ks[0], ks[1], dim, hid)
    w2, b2 = lin(ks[2], ks[3], hid, hid)
    w3, b3 = lin(ks[4], ks[5], hid, hid)
    w4, b4 = lin(ks[6], ks[7], hid, 1)
    return (w1, b1, w2, b2, w3, b3, w4, b4)


def _reference(x, params):
    w1, b1, w2, b2, w3, b3, w4, b4 = params
    leaky = lambda v: jnp.maximum(v, 0.01 * v)
    h = leaky(x @ w1 + b1)
    h = leaky(h @ w2 + b2)
    h = leaky(h @ w3 + b3)
    return jax.nn.sigmoid(h @ w4 + b4)


if __name__ == "__main__":
    key = jax.random.PRNGKey(0)
    kx, kp = jax.random.split(key)

    B, DIM = 1000, 4            # non-multiple batch: pads to 1024 -> 2 tiles
    x = jax.random.normal(kx, (B, DIM), dtype=jnp.float32)
    params = init_params(kp, dim=DIM, hid=256)

    fwd = jax.jit(lambda xx: escape_model_forward(xx, params, batch_tile=1024))
    out = jax.block_until_ready(fwd(x))

    ref = _reference(x, params)
    assert out.shape == (B, 1)
    # bf16 MXU path -> relaxed tolerance vs. the f32 reference.
    assert jnp.allclose(out, ref, atol=2e-2, rtol=0.0), \
        float(jnp.max(jnp.abs(out - ref)))

    print("KERNEL_OK")
</pallas_src>

<mosaic_0001>
module attributes {stable_mosaic.version = 11 : i64} {
  func.func @_mlp_kernel(%arg0: i32, %arg1: memref<512x8xbf16, #tpu.memory_space<vmem>>, %arg2: memref<8x256xbf16, #tpu.memory_space<vmem>>, %arg3: memref<1x256xf32, #tpu.memory_space<vmem>>, %arg4: memref<256x256xbf16, #tpu.memory_space<vmem>>, %arg5: memref<1x256xf32, #tpu.memory_space<vmem>>, %arg6: memref<256x256xbf16, #tpu.memory_space<vmem>>, %arg7: memref<1x256xf32, #tpu.memory_space<vmem>>, %arg8: memref<256x1xbf16, #tpu.memory_space<vmem>>, %arg9: memref<1x1xf32, #tpu.memory_space<smem>>, %arg10: memref<512x1xf32, #tpu.memory_space<vmem>>) attributes {dimension_semantics = [#tpu.dimension_semantics<parallel>], iteration_bounds = array<i64: 2>, scalar_prefetch = 0 : i64, scratch_operands = 0 : i64, tpu.core_type = #tpu.core_type<tc>, window_params = [{transform_indices = @transform_0, window_bounds = array<i64: 512, 8>}, {pipeline_mode = #tpu.pipeline_mode<synchronous>, transform_indices = @transform_1, window_bounds = array<i64: 8, 256>}, {pipeline_mode = #tpu.pipeline_mode<synchronous>, transform_indices = @transform_2, window_bounds = array<i64: 1, 256>}, {pipeline_mode = #tpu.pipeline_mode<synchronous>, transform_indices = @transform_3, window_bounds = array<i64: 256, 256>}, {pipeline_mode = #tpu.pipeline_mode<synchronous>, transform_indices = @transform_4, window_bounds = array<i64: 1, 256>}, {pipeline_mode = #tpu.pipeline_mode<synchronous>, transform_indices = @transform_5, window_bounds = array<i64: 256, 256>}, {pipeline_mode = #tpu.pipeline_mode<synchronous>, transform_indices = @transform_6, window_bounds = array<i64: 1, 256>}, {pipeline_mode = #tpu.pipeline_mode<synchronous>, transform_indices = @transform_7, window_bounds = array<i64: 256, 1>}, {transform_indices = @transform_8, window_bounds = array<i64: 1, 1>}, {transform_indices = @transform_9, window_bounds = array<i64: 512, 1>}]} {
    %c0 = arith.constant 0 : index
    %c0_0 = arith.constant 0 : index
    %0 = vector.load %arg1[%c0, %c0_0] : memref<512x8xbf16, #tpu.memory_space<vmem>>, vector<512x8xbf16>
    %c0_1 = arith.constant 0 : index
    %c0_2 = arith.constant 0 : index
    %1 = vector.load %arg2[%c0_1, %c0_2] : memref<8x256xbf16, #tpu.memory_space<vmem>>, vector<8x256xbf16>
    %cst = arith.constant dense<0.000000e+00> : vector<512x256xf32>
    %2 = tpu.matmul %0, %1, %cst {dimension_numbers = #tpu.dot_dimension_numbers<[1], [0], [0], [1], [0, 0, 1, 1], [], []>} : vector<512x8xbf16>, vector<8x256xbf16>, vector<512x256xf32> -> vector<512x256xf32>
    %c0_3 = arith.constant 0 : index
    %c0_4 = arith.constant 0 : index
    %3 = vector.load %arg3[%c0_3, %c0_4] : memref<1x256xf32, #tpu.memory_space<vmem>>, vector<1x256xf32>
    %4 = vector.broadcast %3 : vector<1x256xf32> to vector<512x256xf32>
    %5 = arith.addf %2, %4 : vector<512x256xf32>
    %cst_5 = arith.constant 0.00999999977 : f32
    %6 = vector.broadcast %cst_5 : f32 to vector<512x256xf32>
    %7 = arith.mulf %6, %5 : vector<512x256xf32>
    %8 = arith.maximumf %5, %7 : vector<512x256xf32>
    %9 = arith.truncf %8 : vector<512x256xf32> to vector<512x256xbf16>
    %c0_6 = arith.constant 0 : index
    %c0_7 = arith.constant 0 : index
    %10 = vector.load %arg4[%c0_6, %c0_7] : memref<256x256xbf16, #tpu.memory_space<vmem>>, vector<256x256xbf16>
    %cst_8 = arith.constant dense<0.000000e+00> : vector<512x256xf32>
    %11 = tpu.matmul %9, %10, %cst_8 {dimension_numbers = #tpu.dot_dimension_numbers<[1], [0], [0], [1], [0, 0, 1, 1], [], []>} : vector<512x256xbf16>, vector<256x256xbf16>, vector<512x256xf32> -> vector<512x256xf32>
    %c0_9 = arith.constant 0 : index
    %c0_10 = arith.constant 0 : index
    %12 = vector.load %arg5[%c0_9, %c0_10] : memref<1x256xf32, #tpu.memory_space<vmem>>, vector<1x256xf32>
    %13 = vector.broadcast %12 : vector<1x256xf32> to vector<512x256xf32>
    %14 = arith.addf %11, %13 : vector<512x256xf32>
    %cst_11 = arith.constant 0.00999999977 : f32
    %15 = vector.broadcast %cst_11 : f32 to vector<512x256xf32>
    %16 = arith.mulf %15, %14 : vector<512x256xf32>
    %17 = arith.maximumf %14, %16 : vector<512x256xf32>
    %18 = arith.truncf %17 : vector<512x256xf32> to vector<512x256xbf16>
    %c0_12 = arith.constant 0 : index
    %c0_13 = arith.constant 0 : index
    %19 = vector.load %arg6[%c0_12, %c0_13] : memref<256x256xbf16, #tpu.memory_space<vmem>>, vector<256x256xbf16>
    %cst_14 = arith.constant dense<0.000000e+00> : vector<512x256xf32>
    %20 = tpu.matmul %18, %19, %cst_14 {dimension_numbers = #tpu.dot_dimension_numbers<[1], [0], [0], [1], [0, 0, 1, 1], [], []>} : vector<512x256xbf16>, vector<256x256xbf16>, vector<512x256xf32> -> vector<512x256xf32>
    %c0_15 = arith.constant 0 : index
    %c0_16 = arith.constant 0 : index
    %21 = vector.load %arg7[%c0_15, %c0_16] : memref<1x256xf32, #tpu.memory_space<vmem>>, vector<1x256xf32>
    %22 = vector.broadcast %21 : vector<1x256xf32> to vector<512x256xf32>
    %23 = arith.addf %20, %22 : vector<512x256xf32>
    %cst_17 = arith.constant 0.00999999977 : f32
    %24 = vector.broadcast %cst_17 : f32 to vector<512x256xf32>
    %25 = arith.mulf %24, %23 : vector<512x256xf32>
    %26 = arith.maximumf %23, %25 : vector<512x256xf32>
    %27 = arith.truncf %26 : vector<512x256xf32> to vector<512x256xbf16>
    %c0_18 = arith.constant 0 : index
    %c0_19 = arith.constant 0 : index
    %28 = vector.load %arg8[%c0_18, %c0_19] : memref<256x1xbf16, #tpu.memory_space<vmem>>, vector<256x1xbf16>
    %cst_20 = arith.constant dense<0.000000e+00> : vector<512x1xf32>
    %29 = tpu.matmul %27, %28, %cst_20 {dimension_numbers = #tpu.dot_dimension_numbers<[1], [0], [0], [1], [0, 0, 1, 1], [], []>} : vector<512x256xbf16>, vector<256x1xbf16>, vector<512x1xf32> -> vector<512x1xf32>
    %c0_21 = arith.constant 0 : index
    %c0_22 = arith.constant 0 : index
    %30 = memref.load %arg9[%c0_21, %c0_22] : memref<1x1xf32, #tpu.memory_space<smem>>
    %31 = vector.broadcast %30 : f32 to vector<512x1xf32>
    %32 = arith.addf %29, %31 : vector<512x1xf32>
    %33 = arith.negf %32 : vector<512x1xf32>
    %34 = math.exp %33 : vector<512x1xf32>
    %cst_23 = arith.constant 1.000000e+00 : f32
    %35 = vector.broadcast %cst_23 : f32 to vector<512x1xf32>
    %36 = arith.addf %35, %34 : vector<512x1xf32>
    %37 = arith.divf %35, %36 : vector<512x1xf32>
    %c0_24 = arith.constant 0 : index
    %c0_25 = arith.constant 0 : index
    %38 = vector.load %arg10[%c0_24, %c0_25] : memref<512x1xf32, #tpu.memory_space<vmem>>, vector<512x1xf32>
    tpu.vector_store %arg10[%c0_24, %c0_25], %37 {strides = array<i32>} : memref<512x1xf32, #tpu.memory_space<vmem>>, vector<512x1xf32>,
    return
  }
  func.func @transform_0(%arg0: i32) -> (i32, i32) {
    %c0_i32 = arith.constant 0 : i32
    %c0_i32_0 = arith.constant 0 : i32
    return %arg0, %c0_i32 : i32, i32
  }
  func.func @transform_1(%arg0: i32) -> (i32, i32) {
    %c0_i32 = arith.constant 0 : i32
    %c0_i32_0 = arith.constant 0 : i32
    %c0_i32_1 = arith.constant 0 : i32
    return %c0_i32, %c0_i32_0 : i32, i32
  }
  func.func @transform_2(%arg0: i32) -> (i32, i32) {
    %c0_i32 = arith.constant 0 : i32
    %c0_i32_0 = arith.constant 0 : i32
    %c0_i32_1 = arith.constant 0 : i32
    return %c0_i32, %c0_i32_0 : i32, i32
  }
  func.func @transform_3(%arg0: i32) -> (i32, i32) {
    %c0_i32 = arith.constant 0 : i32
    %c0_i32_0 = arith.constant 0 : i32
    %c0_i32_1 = arith.constant 0 : i32
    return %c0_i32, %c0_i32_0 : i32, i32
  }
  func.func @transform_4(%arg0: i32) -> (i32, i32) {
    %c0_i32 = arith.constant 0 : i32
    %c0_i32_0 = arith.constant 0 : i32
    %c0_i32_1 = arith.constant 0 : i32
    return %c0_i32, %c0_i32_0 : i32, i32
  }
  func.func @transform_5(%arg0: i32) -> (i32, i32) {
    %c0_i32 = arith.constant 0 : i32
    %c0_i32_0 = arith.constant 0 : i32
    %c0_i32_1 = arith.constant 0 : i32
    return %c0_i32, %c0_i32_0 : i32, i32
  }
  func.func @transform_6(%arg0: i32) -> (i32, i32) {
    %c0_i32 = arith.constant 0 : i32
    %c0_i32_0 = arith.constant 0 : i32
    %c0_i32_1 = arith.constant 0 : i32
    return %c0_i32, %c0_i32_0 : i32, i32
  }
  func.func @transform_7(%arg0: i32) -> (i32, i32) {
    %c0_i32 = arith.constant 0 : i32
    %c0_i32_0 = arith.constant 0 : i32
    %c0_i32_1 = arith.constant 0 : i32
    return %c0_i32, %c0_i32_0 : i32, i32
  }
  func.func @transform_8(%arg0: i32) -> (i32, i32) {
    %c0_i32 = arith.constant 0 : i32
    %c0_i32_0 = arith.constant 0 : i32
    %c0_i32_1 = arith.constant 0 : i32
    return %c0_i32, %c0_i32_0 : i32, i32
  }
  func.func @transform_9(%arg0: i32) -> (i32, i32) {
    %c0_i32 = arith.constant 0 : i32
    %c0_i32_0 = arith.constant 0 : i32
    return %arg0, %c0_i32 : i32, i32
  }
}

</mosaic_0001>

<llo_original>
// kernel: _lambda_.1
$region0: #{_lambda_.1}
  #allocation0 [shape = 'u32[]', space=smem, size = 0x4, offset = 0x4, fixed_abs, tag = 'smem constant byte address 0x4 - core index']
  #allocation1 [shape = 'u32[144,128]{1,0:T(1,128)}', space=vmem, size = 0x12000, scoped, tag = 'internal scratch']
  #allocation2 [shape = 'f32[1,1]{1,0:T(1,128)S(6)}', space=smem, size = 0x200, scoped, tag = 'scoped memory for _lambda_.1']
  %s0 = inlined_call_operand.vmem [shape: bf16[1024,8], index: 0, kind: input, shape index: {}]
  %s1 = inlined_call_operand.vmem [shape: bf16[8,256], index: 1, kind: input, shape index: {}]
  %s2 = inlined_call_operand.vmem [shape: f32[1,256], index: 2, kind: input, shape index: {}]
  %s3 = inlined_call_operand.vmem [shape: bf16[256,256], index: 3, kind: input, shape index: {}]
  %s4 = inlined_call_operand.vmem [shape: f32[1,256], index: 4, kind: input, shape index: {}]
  %s5 = inlined_call_operand.vmem [shape: bf16[256,256], index: 5, kind: input, shape index: {}]
  %s6 = inlined_call_operand.vmem [shape: f32[1,256], index: 6, kind: input, shape index: {}]
  %s7 = inlined_call_operand.vmem [shape: bf16[256,1], index: 7, kind: input, shape index: {}]
  %s8 = inlined_call_operand.<no memory space> [shape: f32[1,1], index: 8, kind: input, shape index: {}]
  %s9 = inlined_call_operand.vmem [shape: f32[1024,1], index: 9, kind: output, shape index: {}]
  %s10 = sld [smem:[#allocation0]]
  $region69: #{_lambda_.1} parent=0
    _
  %s12 = ssub.s32 1, %s10
  %s13 = scalar_select 0, %s12, %s10
  %14 = sst [smem:[#allocation2]] %s8
  loop: start=0, step=1, limit=4
  $region2: #{_lambda_.1} parent=0 // loop_pre_header
    _
  $region3: #{_lambda_.1} parent=0 // loop_header
    %s16 = sphi 0, %s20
    %p17 = scmp.ge.s32.totalorder %s16, 4
    %s26 = sphi 0, %s28
    %s29 = sphi 0, %s26
    %s30 = sphi 0, %s29
    %s46 = sphi 0, %s30
    %s50 = sphi 0, %s50
    %s52 = sphi 0, %s50
    %s53 = sphi 0, %s52
    %s67 = sphi 0, %s53
    %s71 = sphi 0, %s71
    %s73 = sphi 0, %s71
    %s74 = sphi 0, %s73
    %s88 = sphi 0, %s74
    %s92 = sphi 0, %s92
    %s94 = sphi 0, %s92
    %s95 = sphi 0, %s94
    %s109 = sphi 0, %s95
    %s113 = sphi 0, %s113
    %s115 = sphi 0, %s113
    %s116 = sphi 0, %s115
    %s130 = sphi 0, %s116
    %s134 = sphi 0, %s134
    %s136 = sphi 0, %s134
    %s137 = sphi 0, %s136
    %s151 = sphi 0, %s137
    %s155 = sphi 0, %s155
    %s157 = sphi 0, %s155
    %s158 = sphi 0, %s157
    %s172 = sphi 0, %s158
    %s176 = sphi 0, %s176
    %s178 = sphi 0, %s176
    %s179 = sphi 0, %s178
    %s193 = sphi 0, %s179
    %s197 = sphi 0, %s197
    %s199 = sphi 0, %s197
    %s200 = sphi 0, %s199
    %s214 = sphi 0, %s200
    %s220 = sphi 0, %s222
    %s223 = sphi 0, %s220
    %s224 = sphi 0, %s223
    %s240 = sphi 0, %s224
  $region4: #{_lambda_.1} parent=0 // loop_header_branch
    %19 = sbr.rel (%p17) target = $region8
  $region5: #{_lambda_.1} parent=0 // loop_body
    %s21 = ssub.s32 %s16, 1
    %s22 = ssub.s32 %s16, 2
    %s23 = sadd.s32 %s16, 1
    %s24 = ssub.s32 %s16, %s23
    %p25 = scmp.eq.s32.totalorder %s24, 0
    %s27 = sadd.s32 %s26, 1
    %s28 = scalar_select %p25, %s26, %s27
    %p31 = pneg %p25
    %p32 = scmp.eq.s32.totalorder %s16, 1
    %p33 = por %p31, %p32
    %p34 = scmp.ne.s32.totalorder %s26, %s29
    %p35 = scmp.eq.s32.totalorder %s16, 0
    %p36 = por %p34, %p35
    %p37 = scmp.ne.s32.totalorder %s26, %s29
    %p38 = scmp.eq.s32.totalorder %s21, 1
    %p39 = por %p37, %p38
    %p40 = scmp.ne.s32.totalorder %s29, %s30
    %p41 = scmp.eq.s32.totalorder %s21, 0
    %p42 = por %p40, %p41
    %p43 = scmp.ne.s32.totalorder %s29, %s30
    %p44 = scmp.eq.s32.totalorder %s22, 1
    %p45 = por %p43, %p44
    %p47 = scmp.ne.s32.totalorder %s30, %s46
    %p48 = scmp.eq.s32.totalorder %s22, 0
    %p49 = por %p47, %p48
    %s51 = sadd.s32 %s50, 1
    %p54 = scmp.eq.s32.totalorder %s16, 1
    %p55 = scmp.ne.s32.totalorder %s50, %s52
    %p56 = scmp.eq.s32.totalorder %s16, 0
    %p57 = por %p55, %p56
    %p58 = scmp.ne.s32.totalorder %s50, %s52
    %p59 = scmp.eq.s32.totalorder %s21, 1
    %p60 = por %p58, %p59
    %p61 = scmp.ne.s32.totalorder %s52, %s53
    %p62 = scmp.eq.s32.totalorder %s21, 0
    %p63 = por %p61, %p62
    %p64 = scmp.ne.s32.totalorder %s52, %s53
    %p65 = scmp.eq.s32.totalorder %s22, 1
    %p66 = por %p64, %p65
    %p68 = scmp.ne.s32.totalorder %s53, %s67
    %p69 = scmp.eq.s32.totalorder %s22, 0
    %p70 = por %p68, %p69
    %s72 = sadd.s32 %s71, 1
    %p75 = scmp.eq.s32.totalorder %s16, 1
    %p76 = scmp.ne.s32.totalorder %s71, %s73
    %p77 = scmp.eq.s32.totalorder %s16, 0
    %p78 = por %p76, %p77
    %p79 = scmp.ne.s32.totalorder %s71, %s73
    %p80 = scmp.eq.s32.totalorder %s21, 1
    %p81 = por %p79, %p80
    %p82 = scmp.ne.s32.totalorder %s73, %s74
    %p83 = scmp.eq.s32.totalorder %s21, 0
    %p84 = por %p82, %p83
    %p85 = scmp.ne.s32.totalorder %s73, %s74
    %p86 = scmp.eq.s32.totalorder %s22, 1
    %p87 = por %p85, %p86
    %p89 = scmp.ne.s32.totalorder %s74, %s88
    %p90 = scmp.eq.s32.totalorder %s22, 0
    %p91 = por %p89, %p90
    %s93 = sadd.s32 %s92, 1
    %p96 = scmp.eq.s32.totalorder %s16, 1
    %p97 = scmp.ne.s32.totalorder %s92, %s94
    %p98 = scmp.eq.s32.totalorder %s16, 0
    %p99 = por %p97, %p98
    %p100 = scmp.ne.s32.totalorder %s92, %s94
    %p101 = scmp.eq.s32.totalorder %s21, 1
    %p102 = por %p100, %p101
    %p103 = scmp.ne.s32.totalorder %s94, %s95
    %p104 = scmp.eq.s32.totalorder %s21, 0
    %p105 = por %p103, %p104
    %p106 = scmp.ne.s32.totalorder %s94, %s95
    %p107 = scmp.eq.s32.totalorder %s22, 1
    %p108 = por %p106, %p107
    %p110 = scmp.ne.s32.totalorder %s95, %s109
    %p111 = scmp.eq.s32.totalorder %s22, 0
    %p112 = por %p110, %p111
    %s114 = sadd.s32 %s113, 1
    %p117 = scmp.eq.s32.totalorder %s16, 1
    %p118 = scmp.ne.s32.totalorder %s113, %s115
    %p119 = scmp.eq.s32.totalorder %s16, 0
    %p120 = por %p118, %p119
    %p121 = scmp.ne.s32.totalorder %s113, %s115
    %p122 = scmp.eq.s32.totalorder %s21, 1
    %p123 = por %p121, %p122
    %p124 = scmp.ne.s32.totalorder %s115, %s116
    %p125 = scmp.eq.s32.totalorder %s21, 0
    %p126 = por %p124, %p125
    %p127 = scmp.ne.s32.totalorder %s115, %s116
    %p128 = scmp.eq.s32.totalorder %s22, 1
    %p129 = por %p127, %p128
    %p131 = scmp.ne.s32.totalorder %s116, %s130
    %p132 = scmp.eq.s32.totalorder %s22, 0
    %p133 = por %p131, %p132
    %s135 = sadd.s32 %s134, 1
    %p138 = scmp.eq.s32.totalorder %s16, 1
    %p139 = scmp.ne.s32.totalorder %s134, %s136
    %p140 = scmp.eq.s32.totalorder %s16, 0
    %p141 = por %p139, %p140
    %p142 = scmp.ne.s32.totalorder %s134, %s136
    %p143 = scmp.eq.s32.totalorder %s21, 1
    %p144 = por %p142, %p143
    %p145 = scmp.ne.s32.totalorder %s136, %s137
    %p146 = scmp.eq.s32.totalorder %s21, 0
    %p147 = por %p145, %p146
    %p148 = scmp.ne.s32.totalorder %s136, %s137
    %p149 = scmp.eq.s32.totalorder %s22, 1
    %p150 = por %p148, %p149
    %p152 = scmp.ne.s32.totalorder %s137, %s151
    %p153 = scmp.eq.s32.totalorder %s22, 0
    %p154 = por %p152, %p153
    %s156 = sadd.s32 %s155, 1
    %p159 = scmp.eq.s32.totalorder %s16, 1
    %p160 = scmp.ne.s32.totalorder %s155, %s157
    %p161 = scmp.eq.s32.totalorder %s16, 0
    %p162 = por %p160, %p161
    %p163 = scmp.ne.s32.totalorder %s155, %s157
    %p164 = scmp.eq.s32.totalorder %s21, 1
    %p165 = por %p163, %p164
    %p166 = scmp.ne.s32.totalorder %s157, %s158
    %p167 = scmp.eq.s32.totalorder %s21, 0
    %p168 = por %p166, %p167
    %p169 = scmp.ne.s32.totalorder %s157, %s158
    %p170 = scmp.eq.s32.totalorder %s22, 1
    %p171 = por %p169, %p170
    %p173 = scmp.ne.s32.totalorder %s158, %s172
    %p174 = scmp.eq.s32.totalorder %s22, 0
    %p175 = por %p173, %p174
    %s177 = sadd.s32 %s176, 1
    %p180 = scmp.eq.s32.totalorder %s16, 1
    %p181 = scmp.ne.s32.totalorder %s176, %s178
    %p182 = scmp.eq.s32.totalorder %s16, 0
    %p183 = por %p181, %p182
    %p184 = scmp.ne.s32.totalorder %s176, %s178
    %p185 = scmp.eq.s32.totalorder %s21, 1
    %p186 = por %p184, %p185
    %p187 = scmp.ne.s32.totalorder %s178, %s179
    %p188 = scmp.eq.s32.totalorder %s21, 0
    %p189 = por %p187, %p188
    %p190 = scmp.ne.s32.totalorder %s178, %s179
    %p191 = scmp.eq.s32.totalorder %s22, 1
    %p192 = por %p190, %p191
    %p194 = scmp.ne.s32.totalorder %s179, %s193
    %p195 = scmp.eq.s32.totalorder %s22, 0
    %p196 = por %p194, %p195
    %s198 = sadd.s32 %s197, 1
    %p201 = scmp.eq.s32.totalorder %s16, 1
    %p202 = scmp.ne.s32.totalorder %s197, %s199
    %p203 = scmp.eq.s32.totalorder %s16, 0
    %p204 = por %p202, %p203
    %p205 = scmp.ne.s32.totalorder %s197, %s199
    %p206 = scmp.eq.s32.totalorder %s21, 1
    %p207 = por %p205, %p206
    %p208 = scmp.ne.s32.totalorder %s199, %s200
    %p209 = scmp.eq.s32.totalorder %s21, 0
    %p210 = por %p208, %p209
    %p211 = scmp.ne.s32.totalorder %s199, %s200
    %p212 = scmp.eq.s32.totalorder %s22, 1
    %p213 = por %p211, %p212
    %p215 = scmp.ne.s32.totalorder %s200, %s214
    %p216 = scmp.eq.s32.totalorder %s22, 0
    %p217 = por %p215, %p216
    %s218 = ssub.s32 %s16, %s23
    %p219 = scmp.eq.s32.totalorder %s218, 0
    %s221 = sadd.s32 %s220, 1
    %s222 = scalar_select %p219, %s220, %s221
    %p225 = pneg %p219
    %p226 = scmp.eq.s32.totalorder %s16, 1
    %p227 = por %p225, %p226
    %p228 = scmp.ne.s32.totalorder %s220, %s223
    %p229 = scmp.eq.s32.totalorder %s16, 0
    %p230 = por %p228, %p229
    %p231 = scmp.ne.s32.totalorder %s220, %s223
    %p232 = scmp.eq.s32.totalorder %s21, 1
    %p233 = por %p231, %p232
    %p234 = scmp.ne.s32.totalorder %s223, %s224
    %p235 = scmp.eq.s32.totalorder %s21, 0
    %p236 = por %p234, %p235
    %p237 = scmp.ne.s32.totalorder %s223, %s224
    %p238 = scmp.eq.s32.totalorder %s22, 1
    %p239 = por %p237, %p238
    %p241 = scmp.ne.s32.totalorder %s224, %s240
    %p242 = scmp.eq.s32.totalorder %s22, 0
    %p243 = por %p241, %p242
    %p244 = scmp.le.s32.totalorder 1, %s16
    %p245 = scmp.lt.s32.totalorder %s16, 3
    %p246 = pnand %p244, %p245
    %p247 = pneg %p246
    // Predicated region
    $region9: #{_lambda_.1} parent=5 // pred_check
      _
    $region10: #{_lambda_.1} parent=5 // pred_check_branch
      %249 = sbr.rel (%p246) target = $region12
    $region11: #{_lambda_.1} parent=5 // pred_region
      %s250 = ssub.s32 %s16, 1
      // Predicated region
      $region13: #{_lambda_.1} parent=11 // pred_check
        %p251 = pneg %p63
      $region14: #{_lambda_.1} parent=11 // pred_check_branch
        %253 = sbr.rel (%p251) target = $region16
      $region15: #{_lambda_.1} parent=11 // pred_region
        _
      $region16: #{_lambda_.1} parent=11 // pred_fallthru
        _
      // Predicated region
      $region17: #{_lambda_.1} parent=11 // pred_check
        %p254 = pneg %p84
      $region18: #{_lambda_.1} parent=11 // pred_check_branch
        %256 = sbr.rel (%p254) target = $region20
      $region19: #{_lambda_.1} parent=11 // pred_region
        _
      $region20: #{_lambda_.1} parent=11 // pred_fallthru
        _
      // Predicated region
      $region21: #{_lambda_.1} parent=11 // pred_check
        %p257 = pneg %p105
      $region22: #{_lambda_.1} parent=11 // pred_check_branch
        %259 = sbr.rel (%p257) target = $region24
      $region23: #{_lambda_.1} parent=11 // pred_region
        _
      $region24: #{_lambda_.1} parent=11 // pred_fallthru
        _
      // Predicated region
      $region25: #{_lambda_.1} parent=11 // pred_check
        %p260 = pneg %p126
      $region26: #{_lambda_.1} parent=11 // pred_check_branch
        %262 = sbr.rel (%p260) target = $region28
      $region27: #{_lambda_.1} parent=11 // pred_region
        _
      $region28: #{_lambda_.1} parent=11 // pred_fallthru
        _
      // Predicated region
      $region29: #{_lambda_.1} parent=11 // pred_check
        %p263 = pneg %p147
      $region30: #{_lambda_.1} parent=11 // pred_check_branch
        %265 = sbr.rel (%p263) target = $region32
      $region31: #{_lambda_.1} parent=11 // pred_region
        _
      $region32: #{_lambda_.1} parent=11 // pred_fallthru
        _
      // Predicated region
      $region33: #{_lambda_.1} parent=11 // pred_check
        %p266 = pneg %p168
      $region34: #{_lambda_.1} parent=11 // pred_check_branch
        %268 = sbr.rel (%p266) target = $region36
      $region35: #{_lambda_.1} parent=11 // pred_region
        _
      $region36: #{_lambda_.1} parent=11 // pred_fallthru
        _
      // Predicated region
      $region37: #{_lambda_.1} parent=11 // pred_check
        %p269 = pneg %p189
      $region38: #{_lambda_.1} parent=11 // pred_check_branch
        %271 = sbr.rel (%p269) target = $region40
      $region39: #{_lambda_.1} parent=11 // pred_region
        _
      $region40: #{_lambda_.1} parent=11 // pred_fallthru
        _
      // Predicated region
      $region41: #{_lambda_.1} parent=11 // pred_check
        %p272 = pneg %p210
      $region42: #{_lambda_.1} parent=11 // pred_check_branch
        %274 = sbr.rel (%p272) target = $region44
      $region43: #{_lambda_.1} parent=11 // pred_region
        _
      $region44: #{_lambda_.1} parent=11 // pred_fallthru
        _
    $region12: #{_lambda_.1} parent=5 // pred_fallthru
      _
    %p275 = scmp.lt.s32.totalorder %s16, 2
    // Predicated region
    $region45: #{_lambda_.1} parent=5 // pred_check
      %p276 = pneg %p275
    $region46: #{_lambda_.1} parent=5 // pred_check_branch
      %278 = sbr.rel (%p276) target = $region48
    $region47: #{_lambda_.1} parent=5 // pred_region
      // Predicated region
      $region49: #{_lambda_.1} parent=47 // pred_check
        %p279 = pneg %p36
      $region50: #{_lambda_.1} parent=47 // pred_check_branch
        %281 = sbr.rel (%p279) target = $region52
      $region51: #{_lambda_.1} parent=47 // pred_region
        %s282 = smul.u32 64, %s16
        %p283 = scmp.lt.s32.totalorder %s282, 127
        %s284 = scalar_select %p283, %s282, 127
        %s285 = smul.addr %s284, 4
        %s286 = scalar_lea.vmem %s0, %s285
        %s287 = smul.u32 64, %s16
      $region52: #{_lambda_.1} parent=47 // pred_fallthru
        _
    $region48: #{_lambda_.1} parent=5 // pred_fallthru
      _
    %p288 = scmp.le.s32.totalorder 1, %s16
    %p289 = scmp.lt.s32.totalorder %s16, 3
    %p290 = pnand %p288, %p289
    %p291 = pneg %p290
    // Predicated region
    $region53: #{_lambda_.1} parent=5 // pred_check
      _
    $region54: #{_lambda_.1} parent=5 // pred_check_branch
      %293 = sbr.rel (%p290) target = $region56
    $region55: #{_lambda_.1} parent=5 // pred_region
      %s294 = ssub.s32 %s16, 1
      %s295 = smul.u32 64, %s21
      %p296 = scmp.lt.s32.totalorder %s295, 127
      %s297 = scalar_select %p296, %s295, 127
      %s298 = smul.addr %s297, 4
      %s299 = scalar_lea.vmem %s0, %s298
      %p300 = pneg %p42
      %p301 = pneg %p39
      %p302 = pneg %p63
      %p303 = pneg %p60
      %p304 = pneg %p84
      %p305 = pneg %p81
      %p306 = pneg %p105
      %p307 = pneg %p102
      %p308 = pneg %p126
      %p309 = pneg %p123
      %p310 = pneg %p147
      %p311 = pneg %p144
      %p312 = pneg %p168
      %p313 = pneg %p165
      %p314 = pneg %p189
      %p315 = pneg %p186
      %p316 = pneg %p210
      %p317 = pneg %p207
      %p318 = pneg %p236
      %p319 = pneg %p233
      %s320 = smul.u32 64, %s21
      %p321 = scmp.lt.s32.totalorder %s320, 127
      %s322 = scalar_select %p321, %s320, 127
      %s323 = smul.addr %s322, 8
      %s324 = scalar_lea.vmem %s9, %s323
      %s325 = smul.u32 64, %s21
      %p326 = scmp.lt.s32.totalorder %s325, 127
      %s327 = scalar_select %p326, %s325, 127
      %s328 = smul.addr %s327, 4
      %s329 = scalar_lea.vmem %s0, %s328
      %s330 = smul.u32 64, %s21
      %s331 = smul.u32 64, %s21
      %p332 = scmp.lt.s32.totalorder %s331, 127
      %s333 = scalar_select %p332, %s331, 127
      %s334 = smul.addr %s333, 8
      %s335 = scalar_lea.vmem %s9, %s334
      %s336 = smul.u32 64, %s21
      %v338 = vld [vmem:[%s329] sm:$0xf]
      %v339 = vld [vmem:[%s329 + $0x4] sm:$0xf]
      %v340 = vld [vmem:[%s329 + $0x8] sm:$0xf]
      %v341 = vld [vmem:[%s329 + $0xc] sm:$0xf]
      %v342 = vld [vmem:[%s329 + $0x10] sm:$0xf]
      %v343 = vld [vmem:[%s329 + $0x14] sm:$0xf]
      %v344 = vld [vmem:[%s329 + $0x18] sm:$0xf]
      %v345 = vld [vmem:[%s329 + $0x1c] sm:$0xf]
      %v346 = vld [vmem:[%s329 + $0x20] sm:$0xf]
      %v347 = vld [vmem:[%s329 + $0x24] sm:$0xf]
      %v348 = vld [vmem:[%s329 + $0x28] sm:$0xf]
      %v349 = vld [vmem:[%s329 + $0x2c] sm:$0xf]
      %v350 = vld [vmem:[%s329 + $0x30] sm:$0xf]
      %v351 = vld [vmem:[%s329 + $0x34] sm:$0xf]
      %v352 = vld [vmem:[%s329 + $0x38] sm:$0xf]
      %v353 = vld [vmem:[%s329 + $0x3c] sm:$0xf]
      %v354 = vld [vmem:[%s329 + $0x40] sm:$0xf]
      %v355 = vld [vmem:[%s329 + $0x44] sm:$0xf]
      %v356 = vld [vmem:[%s329 + $0x48] sm:$0xf]
      %v357 = vld [vmem:[%s329 + $0x4c] sm:$0xf]
      %v358 = vld [vmem:[%s329 + $0x50] sm:$0xf]
      %v359 = vld [vmem:[%s329 + $0x54] sm:$0xf]
      %v360 = vld [vmem:[%s329 + $0x58] sm:$0xf]
      %v361 = vld [vmem:[%s329 + $0x5c] sm:$0xf]
      %v362 = vld [vmem:[%s329 + $0x60] sm:$0xf]
      %v363 = vld [vmem:[%s329 + $0x64] sm:$0xf]
      %v364 = vld [vmem:[%s329 + $0x68] sm:$0xf]
      %v365 = vld [vmem:[%s329 + $0x6c] sm:$0xf]
      %v366 = vld [vmem:[%s329 + $0x70] sm:$0xf]
      %v367 = vld [vmem:[%s329 + $0x74] sm:$0xf]
      %v368 = vld [vmem:[%s329 + $0x78] sm:$0xf]
      %v369 = vld [vmem:[%s329 + $0x7c] sm:$0xf]
      %v370 = vld [vmem:[%s329 + $0x80] sm:$0xf]
      %v371 = vld [vmem:[%s329 + $0x84] sm:$0xf]
      %v372 = vld [vmem:[%s329 + $0x88] sm:$0xf]
      %v373 = vld [vmem:[%s329 + $0x8c] sm:$0xf]
      %v374 = vld [vmem:[%s329 + $0x90] sm:$0xf]
      %v375 = vld [vmem:[%s329 + $0x94] sm:$0xf]
      %v376 = vld [vmem:[%s329 + $0x98] sm:$0xf]
      %v377 = vld [vmem:[%s329 + $0x9c] sm:$0xf]
      %v378 = vld [vmem:[%s329 + $0xa0] sm:$0xf]
      %v379 = vld [vmem:[%s329 + $0xa4] sm:$0xf]
      %v380 = vld [vmem:[%s329 + $0xa8] sm:$0xf]
      %v381 = vld [vmem:[%s329 + $0xac] sm:$0xf]
      %v382 = vld [vmem:[%s329 + $0xb0] sm:$0xf]
      %v383 = vld [vmem:[%s329 + $0xb4] sm:$0xf]
      %v384 = vld [vmem:[%s329 + $0xb8] sm:$0xf]
      %v385 = vld [vmem:[%s329 + $0xbc] sm:$0xf]
      %v386 = vld [vmem:[%s329 + $0xc0] sm:$0xf]
      %v387 = vld [vmem:[%s329 + $0xc4] sm:$0xf]
      %v388 = vld [vmem:[%s329 + $0xc8] sm:$0xf]
      %v389 = vld [vmem:[%s329 + $0xcc] sm:$0xf]
      %v390 = vld [vmem:[%s329 + $0xd0] sm:$0xf]
      %v391 = vld [vmem:[%s329 + $0xd4] sm:$0xf]
      %v392 = vld [vmem:[%s329 + $0xd8] sm:$0xf]
      %v393 = vld [vmem:[%s329 + $0xdc] sm:$0xf]
      %v394 = vld [vmem:[%s329 + $0xe0] sm:$0xf]
      %v395 = vld [vmem:[%s329 + $0xe4] sm:$0xf]
      %v396 = vld [vmem:[%s329 + $0xe8] sm:$0xf]
      %v397 = vld [vmem:[%s329 + $0xec] sm:$0xf]
      %v398 = vld [vmem:[%s329 + $0xf0] sm:$0xf]
      %v399 = vld [vmem:[%s329 + $0xf4] sm:$0xf]
      %v400 = vld [vmem:[%s329 + $0xf8] sm:$0xf]
      %v401 = vld [vmem:[%s329 + $0xfc] sm:$0xf]
      %v402 = vld [vmem:[%s1] sm:$0xff]
      %v403 = vld [vmem:[%s2] sm:$0x3]
      %v405 = vlaneseq
      %v406 = vshrl.u32 %v405, 7
      %v407 = vsub.s32 0, %v406
      %v408 = vrot.slane %v403, %v407
      %v409 = vlaneseq
      %v410 = vshrl.u32 %v409, 7
      %v411 = vsub.s32 1, %v410
      %v412 = vrot.slane %v403, %v411
      %v479 = vunpack.c.l.b16 %v338
      %v480 = vunpack.c.l.b16 %v339
      %v481 = vunpack.c.l.b16 %v340
      %v482 = vunpack.c.l.b16 %v341
      %v483 = vunpack.c.l.b16 %v342
      %v484 = vunpack.c.l.b16 %v343
      %v485 = vunpack.c.l.b16 %v344
      %v486 = vunpack.c.l.b16 %v345
      %v487 = vunpack.c.l.b16 %v346
      %v488 = vunpack.c.l.b16 %v347
      %v489 = vunpack.c.l.b16 %v348
      %v490 = vunpack.c.l.b16 %v349
      %v491 = vunpack.c.l.b16 %v350
      %v492 = vunpack.c.l.b16 %v351
      %v493 = vunpack.c.l.b16 %v352
      %v494 = vunpack.c.l.b16 %v353
      %v495 = vunpack.c.l.b16 %v354
      %v496 = vunpack.c.l.b16 %v355
      %v497 = vunpack.c.l.b16 %v356
      %v498 = vunpack.c.l.b16 %v357
      %v499 = vunpack.c.l.b16 %v358
      %v500 = vunpack.c.l.b16 %v359
      %v501 = vunpack.c.l.b16 %v360
      %v502 = vunpack.c.l.b16 %v361
      %v503 = vunpack.c.l.b16 %v362
      %v504 = vunpack.c.l.b16 %v363
      %v505 = vunpack.c.l.b16 %v364
      %v506 = vunpack.c.l.b16 %v365
      %v507 = vunpack.c.l.b16 %v366
      %v508 = vunpack.c.l.b16 %v367
      %v509 = vunpack.c.l.b16 %v368
      %v510 = vunpack.c.l.b16 %v369
      %v511 = vunpack.c.l.b16 %v370
      %v512 = vunpack.c.l.b16 %v371
      %v513 = vunpack.c.l.b16 %v372
      %v514 = vunpack.c.l.b16 %v373
      %v515 = vunpack.c.l.b16 %v374
      %v516 = vunpack.c.l.b16 %v375
      %v517 = vunpack.c.l.b16 %v376
      %v518 = vunpack.c.l.b16 %v377
      %v519 = vunpack.c.l.b16 %v378
      %v520 = vunpack.c.l.b16 %v379
      %v521 = vunpack.c.l.b16 %v380
      %v522 = vunpack.c.l.b16 %v381
      %v523 = vunpack.c.l.b16 %v382
      %v524 = vunpack.c.l.b16 %v383
      %v525 = vunpack.c.l.b16 %v384
      %v526 = vunpack.c.l.b16 %v385
      %v527 = vunpack.c.l.b16 %v386
      %v528 = vunpack.c.l.b16 %v387
      %v529 = vunpack.c.l.b16 %v388
      %v530 = vunpack.c.l.b16 %v389
      %v531 = vunpack.c.l.b16 %v390
      %v532 = vunpack.c.l.b16 %v391
      %v533 = vunpack.c.l.b16 %v392
      %v534 = vunpack.c.l.b16 %v393
      %v535 = vunpack.c.l.b16 %v394
      %v536 = vunpack.c.l.b16 %v395
      %v537 = vunpack.c.l.b16 %v396
      %v538 = vunpack.c.l.b16 %v397
      %v539 = vunpack.c.l.b16 %v398
      %v540 = vunpack.c.l.b16 %v399
      %v541 = vunpack.c.l.b16 %v400
      %v542 = vunpack.c.l.b16 %v401
      %v543 = vpack.c.b16 %v480, %v479
      %v544 = vpack.c.b16 %v482, %v481
      %v545 = vpack.c.b16 %v484, %v483
      %v546 = vpack.c.b16 %v486, %v485
      %v547 = vpack.c.b16 %v488, %v487
      %v548 = vpack.c.b16 %v490, %v489
      %v549 = vpack.c.b16 %v492, %v491
      %v550 = vpack.c.b16 %v494, %v493
      %v551 = vpack.c.b16 %v496, %v495
      %v552 = vpack.c.b16 %v498, %v497
      %v553 = vpack.c.b16 %v500, %v499
      %v554 = vpack.c.b16 %v502, %v501
      %v555 = vpack.c.b16 %v504, %v503
      %v556 = vpack.c.b16 %v506, %v505
      %v557 = vpack.c.b16 %v508, %v507
      %v558 = vpack.c.b16 %v510, %v509
      %v559 = vpack.c.b16 %v512, %v511
      %v560 = vpack.c.b16 %v514, %v513
      %v561 = vpack.c.b16 %v516, %v515
      %v562 = vpack.c.b16 %v518, %v517
      %v563 = vpack.c.b16 %v520, %v519
      %v564 = vpack.c.b16 %v522, %v521
      %v565 = vpack.c.b16 %v524, %v523
      %v566 = vpack.c.b16 %v526, %v525
      %v567 = vpack.c.b16 %v528, %v527
      %v568 = vpack.c.b16 %v530, %v529
      %v569 = vpack.c.b16 %v532, %v531
      %v570 = vpack.c.b16 %v534, %v533
      %v571 = vpack.c.b16 %v536, %v535
      %v572 = vpack.c.b16 %v538, %v537
      %v573 = vpack.c.b16 %v540, %v539
      %v574 = vpack.c.b16 %v542, %v541
      %v576 = vunpack.c.l.b16 %v402
      %v577 = vunpack.c.h.b16 %v402
      %v578 = vpack.c.b16 %v576, %v576
      %v579 = vpack.c.b16 %v577, %v577
      %vm580 = vcmask 64512
      %v582 = vsel %vm580, %v543, 0
      %v585 = vsel %vm580, %v544, 0
      %v588 = vsel %vm580, %v545, 0
      %v591 = vsel %vm580, %v546, 0
      %v594 = vsel %vm580, %v547, 0
      %v597 = vsel %vm580, %v548, 0
      %v600 = vsel %vm580, %v549, 0
      %v603 = vsel %vm580, %v550, 0
      %v606 = vsel %vm580, %v551, 0
      %v609 = vsel %vm580, %v552, 0
      %v612 = vsel %vm580, %v553, 0
      %v615 = vsel %vm580, %v554, 0
      %v618 = vsel %vm580, %v555, 0
      %v621 = vsel %vm580, %v556, 0
      %v624 = vsel %vm580, %v557, 0
      %v627 = vsel %vm580, %v558, 0
      %v630 = vsel %vm580, %v559, 0
      %v633 = vsel %vm580, %v560, 0
      %v636 = vsel %vm580, %v561, 0
      %v639 = vsel %vm580, %v562, 0
      %v642 = vsel %vm580, %v563, 0
      %v645 = vsel %vm580, %v564, 0
      %v648 = vsel %vm580, %v565, 0
      %v651 = vsel %vm580, %v566, 0
      %v654 = vsel %vm580, %v567, 0
      %v657 = vsel %vm580, %v568, 0
      %v660 = vsel %vm580, %v569, 0
      %v663 = vsel %vm580, %v570, 0
      %v666 = vsel %vm580, %v571, 0
      %v669 = vsel %vm580, %v572, 0
      %v672 = vsel %vm580, %v573, 0
      %v675 = vsel %vm580, %v574, 0
      %vm677 = vcmask 1043456
      %v679 = vsel %vm677, %v578, 0
      %v682 = vsel %vm677, %v579, 0
      %684 = vmatprep.subr.bf16.mxu0 %v682
      %685 = vmatpush1.bf16.msra.mxu0 %v679
      %686 = vmatprep.subr.bf16.mxu0 0
      %687 = vmatpush1.bf16.msra.mxu0 0
      %688 = vmatprep.subr.bf16.mxu0 0
      %689 = vmatpush1.bf16.msra.mxu0 0
      %690 = vmatprep.subr.bf16.mxu0 0
      %691 = vmatpush1.bf16.msra.mxu0 0
      %692 = vmatprep.subr.bf16.mxu0 0
      %693 = vmatpush1.bf16.msra.mxu0 0
      %694 = vmatprep.subr.bf16.mxu0 0
      %695 = vmatpush1.bf16.msra.mxu0 0
      %696 = vmatprep.subr.bf16.mxu0 0
      %697 = vmatpush1.bf16.msra.mxu0 0
      %698 = vmatprep.subr.bf16.mxu0 0
      %699 = vmatpush1.bf16.msra.mxu0 0
      %700 = vmatprep.subr.bf16.mxu0 0
      %701 = vmatpush1.bf16.msra.mxu0 0
      %702 = vmatprep.subr.bf16.mxu0 0
      %703 = vmatpush1.bf16.msra.mxu0 0
      %704 = vmatprep.subr.bf16.mxu0 0
      %705 = vmatpush1.bf16.msra.mxu0 0
      %706 = vmatprep.subr.bf16.mxu0 0
      %707 = vmatpush1.bf16.msra.mxu0 0
      %708 = vmatprep.subr.bf16.mxu0 0
      %709 = vmatpush1.bf16.msra.mxu0 0
      %710 = vmatprep.subr.bf16.mxu0 0
      %711 = vmatpush1.bf16.msra.mxu0 0
      %712 = vmatprep.subr.bf16.mxu0 0
      %713 = vmatpush1.bf16.msra.mxu0 0
      %714 = vmatprep.subr.bf16.mxu0 0
      %715 = vmatpush1.bf16.msra.mxu0 0
      %716 = vmatprep.mubr.bf16.mxu0 0
      %717 = vmatmul.mubr.bf16.gmra.mrb[0].mxu0 %v582
      %v718 = vpop.f32.mrb[0].mxu0
      %v719 = vadd.f32 %v408, %v718
      %v720 = vpop.f32.mrb[0].mxu0
      %v721 = vadd.f32 %v412, %v720
      %v722 = vpop.f32.mrb[0].mxu0
      %v723 = vadd.f32 %v408, %v722
      %v724 = vpop.f32.mrb[0].mxu0
      %v725 = vadd.f32 %v412, %v724
      %726 = vmatprep.mubr.bf16.mxu0 0
      %727 = vmatmul.mubr.bf16.gmra.mrb[0].mxu0 %v585
      %v728 = vpop.f32.mrb[0].mxu0
      %v729 = vadd.f32 %v408, %v728
      %v730 = vpop.f32.mrb[0].mxu0
      %v731 = vadd.f32 %v412, %v730
      %v732 = vpop.f32.mrb[0].mxu0
      %v733 = vadd.f32 %v408, %v732
      %v734 = vpop.f32.mrb[0].mxu0
      %v735 = vadd.f32 %v412, %v734
      %736 = vmatprep.mubr.bf16.mxu0 0
      %737 = vmatmul.mubr.bf16.gmra.mrb[0].mxu0 %v588
      %v738 = vpop.f32.mrb[0].mxu0
      %v739 = vadd.f32 %v408, %v738
      %v740 = vpop.f32.mrb[0].mxu0
      %v741 = vadd.f32 %v412, %v740
      %v742 = vpop.f32.mrb[0].mxu0
      %v743 = vadd.f32 %v408, %v742
      %v744 = vpop.f32.mrb[0].mxu0
      %v745 = vadd.f32 %v412, %v744
      %746 = vmatprep.mubr.bf16.mxu0 0
      %747 = vmatmul.mubr.bf16.gmra.mrb[0].mxu0 %v591
      %v748 = vpop.f32.mrb[0].mxu0
      %v749 = vadd.f32 %v408, %v748
      %v750 = vpop.f32.mrb[0].mxu0
      %v751 = vadd.f32 %v412, %v750
      %v752 = vpop.f32.mrb[0].mxu0
      %v753 = vadd.f32 %v408, %v752
      %v754 = vpop.f32.mrb[0].mxu0
      %v755 = vadd.f32 %v412, %v754
      %756 = vmatprep.mubr.bf16.mxu0 0
      %757 = vmatmul.mubr.bf16.gmra.mrb[0].mxu0 %v594
      %v758 = vpop.f32.mrb[0].mxu0
      %v759 = vadd.f32 %v408, %v758
      %v760 = vpop.f32.mrb[0].mxu0
      %v761 = vadd.f32 %v412, %v760
      %v762 = vpop.f32.mrb[0].mxu0
      %v763 = vadd.f32 %v408, %v762
      %v764 = vpop.f32.mrb[0].mxu0
      %v765 = vadd.f32 %v412, %v764
      %766 = vmatprep.mubr.bf16.mxu0 0
      %767 = vmatmul.mubr.bf16.gmra.mrb[0].mxu0 %v597
      %v768 = vpop.f32.mrb[0].mxu0
      %v769 = vadd.f32 %v408, %v768
      %v770 = vpop.f32.mrb[0].mxu0
      %v771 = vadd.f32 %v412, %v770
      %v772 = vpop.f32.mrb[0].mxu0
      %v773 = vadd.f32 %v408, %v772
      %v774 = vpop.f32.mrb[0].mxu0
      %v775 = vadd.f32 %v412, %v774
      %776 = vmatprep.mubr.bf16.mxu0 0
      %777 = vmatmul.mubr.bf16.gmra.mrb[0].mxu0 %v600
      %v778 = vpop.f32.mrb[0].mxu0
      %v779 = vadd.f32 %v408, %v778
      %v780 = vpop.f32.mrb[0].mxu0
      %v781 = vadd.f32 %v412, %v780
      %v782 = vpop.f32.mrb[0].mxu0
      %v783 = vadd.f32 %v408, %v782
      %v784 = vpop.f32.mrb[0].mxu0
      %v785 = vadd.f32 %v412, %v784
      %786 = vmatprep.mubr.bf16.mxu0 0
      %787 = vmatmul.mubr.bf16.gmra.mrb[0].mxu0 %v603
      %v788 = vpop.f32.mrb[0].mxu0
      %v789 = vadd.f32 %v408, %v788
      %v790 = vpop.f32.mrb[0].mxu0
      %v791 = vadd.f32 %v412, %v790
      %v792 = vpop.f32.mrb[0].mxu0
      %v793 = vadd.f32 %v408, %v792
      %v794 = vpop.f32.mrb[0].mxu0
      %v795 = vadd.f32 %v412, %v794
      %796 = vmatprep.mubr.bf16.mxu0 0
      %797 = vmatmul.mubr.bf16.gmra.mrb[0].mxu0 %v606
      %v798 = vpop.f32.mrb[0].mxu0
      %v799 = vadd.f32 %v408, %v798
      %v800 = vpop.f32.mrb[0].mxu0
      %v801 = vadd.f32 %v412, %v800
      %v802 = vpop.f32.mrb[0].mxu0
      %v803 = vadd.f32 %v408, %v802
      %v804 = vpop.f32.mrb[0].mxu0
      %v805 = vadd.f32 %v412, %v804
      %806 = vmatprep.mubr.bf16.mxu0 0
      %807 = vmatmul.mubr.bf16.gmra.mrb[0].mxu0 %v609
      %v808 = vpop.f32.mrb[0].mxu0
      %v809 = vadd.f32 %v408, %v808
      %v810 = vpop.f32.mrb[0].mxu0
      %v811 = vadd.f32 %v412, %v810
      %v812 = vpop.f32.mrb[0].mxu0
      %v813 = vadd.f32 %v408, %v812
      %v814 = vpop.f32.mrb[0].mxu0
      %v815 = vadd.f32 %v412, %v814
      %816 = vmatprep.mubr.bf16.mxu0 0
      %817 = vmatmul.mubr.bf16.gmra.mrb[0].mxu0 %v612
      %v818 = vpop.f32.mrb[0].mxu0
      %v819 = vadd.f32 %v408, %v818
      %v820 = vpop.f32.mrb[0].mxu0
      %v821 = vadd.f32 %v412, %v820
      %v822 = vpop.f32.mrb[0].mxu0
      %v823 = vadd.f32 %v408, %v822
      %v824 = vpop.f32.mrb[0].mxu0
      %v825 = vadd.f32 %v412, %v824
      %826 = vmatprep.mubr.bf16.mxu0 0
      %827 = vmatmul.mubr.bf16.gmra.mrb[0].mxu0 %v615
      %v828 = vpop.f32.mrb[0].mxu0
      %v829 = vadd.f32 %v408, %v828
      %v830 = vpop.f32.mrb[0].mxu0
      %v831 = vadd.f32 %v412, %v830
      %v832 = vpop.f32.mrb[0].mxu0
      %v833 = vadd.f32 %v408, %v832
      %v834 = vpop.f32.mrb[0].mxu0
      %v835 = vadd.f32 %v412, %v834
      %836 = vmatprep.mubr.bf16.mxu0 0
      %837 = vmatmul.mubr.bf16.gmra.mrb[0].mxu0 %v618
      %v838 = vpop.f32.mrb[0].mxu0
      %v839 = vadd.f32 %v408, %v838
      %v840 = vpop.f32.mrb[0].mxu0
      %v841 = vadd.f32 %v412, %v840
      %v842 = vpop.f32.mrb[0].mxu0
      %v843 = vadd.f32 %v408, %v842
      %v844 = vpop.f32.mrb[0].mxu0
      %v845 = vadd.f32 %v412, %v844
      %846 = vmatprep.mubr.bf16.mxu0 0
      %847 = vmatmul.mubr.bf16.gmra.mrb[0].mxu0 %v621
      %v848 = vpop.f32.mrb[0].mxu0
      %v849 = vadd.f32 %v408, %v848
      %v850 = vpop.f32.mrb[0].mxu0
      %v851 = vadd.f32 %v412, %v850
      %v852 = vpop.f32.mrb[0].mxu0
      %v853 = vadd.f32 %v408, %v852
      %v854 = vpop.f32.mrb[0].mxu0
      %v855 = vadd.f32 %v412, %v854
      %856 = vmatprep.mubr.bf16.mxu0 0
      %857 = vmatmul.mubr.bf16.gmra.mrb[0].mxu0 %v624
      %v858 = vpop.f32.mrb[0].mxu0
      %v859 = vadd.f32 %v408, %v858
      %v860 = vpop.f32.mrb[0].mxu0
      %v861 = vadd.f32 %v412, %v860
      %v862 = vpop.f32.mrb[0].mxu0
      %v863 = vadd.f32 %v408, %v862
      %v864 = vpop.f32.mrb[0].mxu0
      %v865 = vadd.f32 %v412, %v864
      %866 = vmatprep.mubr.bf16.mxu0 0
      %867 = vmatmul.mubr.bf16.gmra.mrb[0].mxu0 %v627
      %v868 = vpop.f32.mrb[0].mxu0
      %v869 = vadd.f32 %v408, %v868
      %v870 = vpop.f32.mrb[0].mxu0
      %v871 = vadd.f32 %v412, %v870
      %v872 = vpop.f32.mrb[0].mxu0
      %v873 = vadd.f32 %v408, %v872
      %v874 = vpop.f32.mrb[0].mxu0
      %v875 = vadd.f32 %v412, %v874
      %876 = vmatprep.mubr.bf16.mxu0 0
      %877 = vmatmul.mubr.bf16.gmra.mrb[0].mxu0 %v630
      %v878 = vpop.f32.mrb[0].mxu0
      %v879 = vadd.f32 %v408, %v878
      %v880 = vpop.f32.mrb[0].mxu0
      %v881 = vadd.f32 %v412, %v880
      %v882 = vpop.f32.mrb[0].mxu0
      %v883 = vadd.f32 %v408, %v882
      %v884 = vpop.f32.mrb[0].mxu0
      %v885 = vadd.f32 %v412, %v884
      %886 = vmatprep.mubr.bf16.mxu0 0
      %887 = vmatmul.mubr.bf16.gmra.mrb[0].mxu0 %v633
      %v888 = vpop.f32.mrb[0].mxu0
      %v889 = vadd.f32 %v408, %v888
      %v890 = vpop.f32.mrb[0].mxu0
      %v891 = vadd.f32 %v412, %v890
      %v892 = vpop.f32.mrb[0].mxu0
      %v893 = vadd.f32 %v408, %v892
      %v894 = vpop.f32.mrb[0].mxu0
      %v895 = vadd.f32 %v412, %v894
      %896 = vmatprep.mubr.bf16.mxu0 0
      %897 = vmatmul.mubr.bf16.gmra.mrb[0].mxu0 %v636
      %v898 = vpop.f32.mrb[0].mxu0
      %v899 = vadd.f32 %v408, %v898
      %v900 = vpop.f32.mrb[0].mxu0
      %v901 = vadd.f32 %v412, %v900
      %v902 = vpop.f32.mrb[0].mxu0
      %v903 = vadd.f32 %v408, %v902
      %v904 = vpop.f32.mrb[0].mxu0
      %v905 = vadd.f32 %v412, %v904
      %906 = vmatprep.mubr.bf16.mxu0 0
      %907 = vmatmul.mubr.bf16.gmra.mrb[0].mxu0 %v639
      %v908 = vpop.f32.mrb[0].mxu0
      %v909 = vadd.f32 %v408, %v908
      %v910 = vpop.f32.mrb[0].mxu0
      %v911 = vadd.f32 %v412, %v910
      %v912 = vpop.f32.mrb[0].mxu0
      %v913 = vadd.f32 %v408, %v912
      %v914 = vpop.f32.mrb[0].mxu0
      %v915 = vadd.f32 %v412, %v914
      %916 = vmatprep.mubr.bf16.mxu0 0
      %917 = vmatmul.mubr.bf16.gmra.mrb[0].mxu0 %v642
      %v918 = vpop.f32.mrb[0].mxu0
      %v919 = vadd.f32 %v408, %v918
      %v920 = vpop.f32.mrb[0].mxu0
      %v921 = vadd.f32 %v412, %v920
      %v922 = vpop.f32.mrb[0].mxu0
      %v923 = vadd.f32 %v408, %v922
      %v924 = vpop.f32.mrb[0].mxu0
      %v925 = vadd.f32 %v412, %v924
      %926 = vmatprep.mubr.bf16.mxu0 0
      %927 = vmatmul.mubr.bf16.gmra.mrb[0].mxu0 %v645
      %v928 = vpop.f32.mrb[0].mxu0
      %v929 = vadd.f32 %v408, %v928
      %v930 = vpop.f32.mrb[0].mxu0
      %v931 = vadd.f32 %v412, %v930
      %v932 = vpop.f32.mrb[0].mxu0
      %v933 = vadd.f32 %v408, %v932
      %v934 = vpop.f32.mrb[0].mxu0
      %v935 = vadd.f32 %v412, %v934
      %936 = vmatprep.mubr.bf16.mxu0 0
      %937 = vmatmul.mubr.bf16.gmra.mrb[0].mxu0 %v648
      %v938 = vpop.f32.mrb[0].mxu0
      %v939 = vadd.f32 %v408, %v938
      %v940 = vpop.f32.mrb[0].mxu0
      %v941 = vadd.f32 %v412, %v940
      %v942 = vpop.f32.mrb[0].mxu0
      %v943 = vadd.f32 %v408, %v942
      %v944 = vpop.f32.mrb[0].mxu0
      %v945 = vadd.f32 %v412, %v944
      %946 = vmatprep.mubr.bf16.mxu0 0
      %947 = vmatmul.mubr.bf16.gmra.mrb[0].mxu0 %v651
      %v948 = vpop.f32.mrb[0].mxu0
      %v949 = vadd.f32 %v408, %v948
      %v950 = vpop.f32.mrb[0].mxu0
      %v951 = vadd.f32 %v412, %v950
      %v952 = vpop.f32.mrb[0].mxu0
      %v953 = vadd.f32 %v408, %v952
      %v954 = vpop.f32.mrb[0].mxu0
      %v955 = vadd.f32 %v412, %v954
      %956 = vmatprep.mubr.bf16.mxu0 0
      %957 = vmatmul.mubr.bf16.gmra.mrb[0].mxu0 %v654
      %v958 = vpop.f32.mrb[0].mxu0
      %v959 = vadd.f32 %v408, %v958
      %v960 = vpop.f32.mrb[0].mxu0
      %v961 = vadd.f32 %v412, %v960
      %v962 = vpop.f32.mrb[0].mxu0
      %v963 = vadd.f32 %v408, %v962
      %v964 = vpop.f32.mrb[0].mxu0
      %v965 = vadd.f32 %v412, %v964
      %966 = vmatprep.mubr.bf16.mxu0 0
      %967 = vmatmul.mubr.bf16.gmra.mrb[0].mxu0 %v657
      %v968 = vpop.f32.mrb[0].mxu0
      %v969 = vadd.f32 %v408, %v968
      %v970 = vpop.f32.mrb[0].mxu0
      %v971 = vadd.f32 %v412, %v970
      %v972 = vpop.f32.mrb[0].mxu0
      %v973 = vadd.f32 %v408, %v972
      %v974 = vpop.f32.mrb[0].mxu0
      %v975 = vadd.f32 %v412, %v974
      %976 = vmatprep.mubr.bf16.mxu0 0
      %977 = vmatmul.mubr.bf16.gmra.mrb[0].mxu0 %v660
      %v978 = vpop.f32.mrb[0].mxu0
      %v979 = vadd.f32 %v408, %v978
      %v980 = vpop.f32.mrb[0].mxu0
      %v981 = vadd.f32 %v412, %v980
      %v982 = vpop.f32.mrb[0].mxu0
      %v983 = vadd.f32 %v408, %v982
      %v984 = vpop.f32.mrb[0].mxu0
      %v985 = vadd.f32 %v412, %v984
      %986 = vmatprep.mubr.bf16.mxu0 0
      %987 = vmatmul.mubr.bf16.gmra.mrb[0].mxu0 %v663
      %v988 = vpop.f32.mrb[0].mxu0
      %v989 = vadd.f32 %v408, %v988
      %v990 = vpop.f32.mrb[0].mxu0
      %v991 = vadd.f32 %v412, %v990
      %v992 = vpop.f32.mrb[0].mxu0
      %v993 = vadd.f32 %v408, %v992
      %v994 = vpop.f32.mrb[0].mxu0
      %v995 = vadd.f32 %v412, %v994
      %996 = vmatprep.mubr.bf16.mxu0 0
      %997 = vmatmul.mubr.bf16.gmra.mrb[0].mxu0 %v666
      %v998 = vpop.f32.mrb[0].mxu0
      %v999 = vadd.f32 %v408, %v998
      %v1000 = vpop.f32.mrb[0].mxu0
      %v1001 = vadd.f32 %v412, %v1000
      %v1002 = vpop.f32.mrb[0].mxu0
      %v1003 = vadd.f32 %v408, %v1002
      %v1004 = vpop.f32.mrb[0].mxu0
      %v1005 = vadd.f32 %v412, %v1004
      %1006 = vmatprep.mubr.bf16.mxu0 0
      %1007 = vmatmul.mubr.bf16.gmra.mrb[0].mxu0 %v669
      %v1008 = vpop.f32.mrb[0].mxu0
      %v1009 = vadd.f32 %v408, %v1008
      %v1010 = vpop.f32.mrb[0].mxu0
      %v1011 = vadd.f32 %v412, %v1010
      %v1012 = vpop.f32.mrb[0].mxu0
      %v1013 = vadd.f32 %v408, %v1012
      %v1014 = vpop.f32.mrb[0].mxu0
      %v1015 = vadd.f32 %v412, %v1014
      %1016 = vmatprep.mubr.bf16.mxu0 0
      %1017 = vmatmul.mubr.bf16.gmra.mrb[0].mxu0 %v672
      %v1018 = vpop.f32.mrb[0].mxu0
      %v1019 = vadd.f32 %v408, %v1018
      %v1020 = vpop.f32.mrb[0].mxu0
      %v1021 = vadd.f32 %v412, %v1020
      %v1022 = vpop.f32.mrb[0].mxu0
      %v1023 = vadd.f32 %v408, %v1022
      %v1024 = vpop.f32.mrb[0].mxu0
      %v1025 = vadd.f32 %v412, %v1024
      %1026 = vmatprep.mubr.bf16.mxu0 0
      %1027 = vmatmul.mubr.bf16.gmra.mrb[0].mxu0 %v675
      %v1028 = vpop.f32.mrb[0].mxu0
      %v1029 = vadd.f32 %v408, %v1028
      %v1030 = vpop.f32.mrb[0].mxu0
      %v1031 = vadd.f32 %v412, %v1030
      %v1032 = vpop.f32.mrb[0].mxu0
      %v1033 = vadd.f32 %v408, %v1032
      %v1034 = vpop.f32.mrb[0].mxu0
      %v1035 = vadd.f32 %v412, %v1034
      %1036 = vdwg.mxu0
      %v1037 = vmul.f32 %v719, 0.01
      %v1038 = vmul.f32 %v721, 0.01
      %v1039 = vmul.f32 %v723, 0.01
      %v1040 = vmul.f32 %v725, 0.01
      %v1041 = vmul.f32 %v729, 0.01
      %v1042 = vmul.f32 %v731, 0.01
      %v1043 = vmul.f32 %v733, 0.01
      %v1044 = vmul.f32 %v735, 0.01
      %v1045 = vmul.f32 %v739, 0.01
      %v1046 = vmul.f32 %v741, 0.01
      %v1047 = vmul.f32 %v743, 0.01
      %v1048 = vmul.f32 %v745, 0.01
      %v1049 = vmul.f32 %v749, 0.01
      %v1050 = vmul.f32 %v751, 0.01
      %v1051 = vmul.f32 %v753, 0.01
      %v1052 = vmul.f32 %v755, 0.01
      %v1053 = vmul.f32 %v759, 0.01
      %v1054 = vmul.f32 %v761, 0.01
      %v1055 = vmul.f32 %v763, 0.01
      %v1056 = vmul.f32 %v765, 0.01
      %v1057 = vmul.f32 %v769, 0.01
      %v1058 = vmul.f32 %v771, 0.01
      %v1059 = vmul.f32 %v773, 0.01
      %v1060 = vmul.f32 %v775, 0.01
      %v1061 = vmul.f32 %v779, 0.01
      %v1062 = vmul.f32 %v781, 0.01
      %v1063 = vmul.f32 %v783, 0.01
      %v1064 = vmul.f32 %v785, 0.01
      %v1065 = vmul.f32 %v789, 0.01
      %v1066 = vmul.f32 %v791, 0.01
      %v1067 = vmul.f32 %v793, 0.01
      %v1068 = vmul.f32 %v795, 0.01
      %v1069 = vmul.f32 %v799, 0.01
      %v1070 = vmul.f32 %v801, 0.01
      %v1071 = vmul.f32 %v803, 0.01
      %v1072 = vmul.f32 %v805, 0.01
      %v1073 = vmul.f32 %v809, 0.01
      %v1074 = vmul.f32 %v811, 0.01
      %v1075 = vmul.f32 %v813, 0.01
      %v1076 = vmul.f32 %v815, 0.01
      %v1077 = vmul.f32 %v819, 0.01
      %v1078 = vmul.f32 %v821, 0.01
      %v1079 = vmul.f32 %v823, 0.01
      %v1080 = vmul.f32 %v825, 0.01
      %v1081 = vmul.f32 %v829, 0.01
      %v1082 = vmul.f32 %v831, 0.01
      %v1083 = vmul.f32 %v833, 0.01
      %v1084 = vmul.f32 %v835, 0.01
      %v1085 = vmul.f32 %v839, 0.01
      %v1086 = vmul.f32 %v841, 0.01
      %v1087 = vmul.f32 %v843, 0.01
      %v1088 = vmul.f32 %v845, 0.01
      %v1089 = vmul.f32 %v849, 0.01
      %v1090 = vmul.f32 %v851, 0.01
      %v1091 = vmul.f32 %v853, 0.01
      %v1092 = vmul.f32 %v855, 0.01
      %v1093 = vmul.f32 %v859, 0.01
      %v1094 = vmul.f32 %v861, 0.01
      %v1095 = vmul.f32 %v863, 0.01
      %v1096 = vmul.f32 %v865, 0.01
      %v1097 = vmul.f32 %v869, 0.01
      %v1098 = vmul.f32 %v871, 0.01
      %v1099 = vmul.f32 %v873, 0.01
      %v1100 = vmul.f32 %v875, 0.01
      %v1101 = vmul.f32 %v879, 0.01
      %v1102 = vmul.f32 %v881, 0.01
      %v1103 = vmul.f32 %v883, 0.01
      %v1104 = vmul.f32 %v885, 0.01
      %v1105 = vmul.f32 %v889, 0.01
      %v1106 = vmul.f32 %v891, 0.01
      %v1107 = vmul.f32 %v893, 0.01
      %v1108 = vmul.f32 %v895, 0.01
      %v1109 = vmul.f32 %v899, 0.01
      %v1110 = vmul.f32 %v901, 0.01
      %v1111 = vmul.f32 %v903, 0.01
      %v1112 = vmul.f32 %v905, 0.01
      %v1113 = vmul.f32 %v909, 0.01
      %v1114 = vmul.f32 %v911, 0.01
      %v1115 = vmul.f32 %v913, 0.01
      %v1116 = vmul.f32 %v915, 0.01
      %v1117 = vmul.f32 %v919, 0.01
      %v1118 = vmul.f32 %v921, 0.01
      %v1119 = vmul.f32 %v923, 0.01
      %v1120 = vmul.f32 %v925, 0.01
      %v1121 = vmul.f32 %v929, 0.01
      %v1122 = vmul.f32 %v931, 0.01
      %v1123 = vmul.f32 %v933, 0.01
      %v1124 = vmul.f32 %v935, 0.01
      %v1125 = vmul.f32 %v939, 0.01
      %v1126 = vmul.f32 %v941, 0.01
      %v1127 = vmul.f32 %v943, 0.01
      %v1128 = vmul.f32 %v945, 0.01
      %v1129 = vmul.f32 %v949, 0.01
      %v1130 = vmul.f32 %v951, 0.01
      %v1131 = vmul.f32 %v953, 0.01
      %v1132 = vmul.f32 %v955, 0.01
      %v1133 = vmul.f32 %v959, 0.01
      %v1134 = vmul.f32 %v961, 0.01
      %v1135 = vmul.f32 %v963, 0.01
      %v1136 = vmul.f32 %v965, 0.01
      %v1137 = vmul.f32 %v969, 0.01
      %v1138 = vmul.f32 %v971, 0.01
      %v1139 = vmul.f32 %v973, 0.01
      %v1140 = vmul.f32 %v975, 0.01
      %v1141 = vmul.f32 %v979, 0.01
      %v1142 = vmul.f32 %v981, 0.01
      %v1143 = vmul.f32 %v983, 0.01
      %v1144 = vmul.f32 %v985, 0.01
      %v1145 = vmul.f32 %v989, 0.01
      %v1146 = vmul.f32 %v991, 0.01
      %v1147 = vmul.f32 %v993, 0.01
      %v1148 = vmul.f32 %v995, 0.01
      %v1149 = vmul.f32 %v999, 0.01
      %v1150 = vmul.f32 %v1001, 0.01
      %v1151 = vmul.f32 %v1003, 0.01
      %v1152 = vmul.f32 %v1005, 0.01
      %v1153 = vmul.f32 %v1009, 0.01
      %v1154 = vmul.f32 %v1011, 0.01
      %v1155 = vmul.f32 %v1013, 0.01
      %v1156 = vmul.f32 %v1015, 0.01
      %v1157 = vmul.f32 %v1019, 0.01
      %v1158 = vmul.f32 %v1021, 0.01
      %v1159 = vmul.f32 %v1023, 0.01
      %v1160 = vmul.f32 %v1025, 0.01
      %v1161 = vmul.f32 %v1029, 0.01
      %v1162 = vmul.f32 %v1031, 0.01
      %v1163 = vmul.f32 %v1033, 0.01
      %v1164 = vmul.f32 %v1035, 0.01
      %v1165 = vmax.f32 %v719, %v1037
      %v1166 = vmax.f32 %v721, %v1038
      %v1167 = vmax.f32 %v723, %v1039
      %v1168 = vmax.f32 %v725, %v1040
      %v1169 = vmax.f32 %v729, %v1041
      %v1170 = vmax.f32 %v731, %v1042
      %v1171 = vmax.f32 %v733, %v1043
      %v1172 = vmax.f32 %v735, %v1044
      %v1173 = vmax.f32 %v739, %v1045
      %v1174 = vmax.f32 %v741, %v1046
      %v1175 = vmax.f32 %v743, %v1047
      %v1176 = vmax.f32 %v745, %v1048
      %v1177 = vmax.f32 %v749, %v1049
      %v1178 = vmax.f32 %v751, %v1050
      %v1179 = vmax.f32 %v753, %v1051
      %v1180 = vmax.f32 %v755, %v1052
      %v1181 = vmax.f32 %v759, %v1053
      %v1182 = vmax.f32 %v761, %v1054
      %v1183 = vmax.f32 %v763, %v1055
      %v1184 = vmax.f32 %v765, %v1056
      %v1185 = vmax.f32 %v769, %v1057
      %v1186 = vmax.f32 %v771, %v1058
      %v1187 = vmax.f32 %v773, %v1059
      %v1188 = vmax.f32 %v775, %v1060
      %v1189 = vmax.f32 %v779, %v1061
      %v1190 = vmax.f32 %v781, %v1062
      %v1191 = vmax.f32 %v783, %v1063
      %v1192 = vmax.f32 %v785, %v1064
      %v1193 = vmax.f32 %v789, %v1065
      %v1194 = vmax.f32 %v791, %v1066
      %v1195 = vmax.f32 %v793, %v1067
      %v1196 = vmax.f32 %v795, %v1068
      %v1197 = vmax.f32 %v799, %v1069
      %v1198 = vmax.f32 %v801, %v1070
      %v1199 = vmax.f32 %v803, %v1071
      %v1200 = vmax.f32 %v805, %v1072
      %v1201 = vmax.f32 %v809, %v1073
      %v1202 = vmax.f32 %v811, %v1074
      %v1203 = vmax.f32 %v813, %v1075
      %v1204 = vmax.f32 %v815, %v1076
      %v1205 = vmax.f32 %v819, %v1077
      %v1206 = vmax.f32 %v821, %v1078
      %v1207 = vmax.f32 %v823, %v1079
      %v1208 = vmax.f32 %v825, %v1080
      %v1209 = vmax.f32 %v829, %v1081
      %v1210 = vmax.f32 %v831, %v1082
      %v1211 = vmax.f32 %v833, %v1083
      %v1212 = vmax.f32 %v835, %v1084
      %v1213 = vmax.f32 %v839, %v1085
      %v1214 = vmax.f32 %v841, %v1086
      %v1215 = vmax.f32 %v843, %v1087
      %v1216 = vmax.f32 %v845, %v1088
      %v1217 = vmax.f32 %v849, %v1089
      %v1218 = vmax.f32 %v851, %v1090
      %v1219 = vmax.f32 %v853, %v1091
      %v1220 = vmax.f32 %v855, %v1092
      %v1221 = vmax.f32 %v859, %v1093
      %v1222 = vmax.f32 %v861, %v1094
      %v1223 = vmax.f32 %v863, %v1095
      %v1224 = vmax.f32 %v865, %v1096
      %v1225 = vmax.f32 %v869, %v1097
      %v1226 = vmax.f32 %v871, %v1098
      %v1227 = vmax.f32 %v873, %v1099
      %v1228 = vmax.f32 %v875, %v1100
      %v1229 = vmax.f32 %v879, %v1101
      %v1230 = vmax.f32 %v881, %v1102
      %v1231 = vmax.f32 %v883, %v1103
      %v1232 = vmax.f32 %v885, %v1104
      %v1233 = vmax.f32 %v889, %v1105
      %v1234 = vmax.f32 %v891, %v1106
      %v1235 = vmax.f32 %v893, %v1107
      %v1236 = vmax.f32 %v895, %v1108
      %v1237 = vmax.f32 %v899, %v1109
      %v1238 = vmax.f32 %v901, %v1110
      %v1239 = vmax.f32 %v903, %v1111
      %v1240 = vmax.f32 %v905, %v1112
      %v1241 = vmax.f32 %v909, %v1113
      %v1242 = vmax.f32 %v911, %v1114
      %v1243 = vmax.f32 %v913, %v1115
      %v1244 = vmax.f32 %v915, %v1116
      %v1245 = vmax.f32 %v919, %v1117
      %v1246 = vmax.f32 %v921, %v1118
      %v1247 = vmax.f32 %v923, %v1119
      %v1248 = vmax.f32 %v925, %v1120
      %v1249 = vmax.f32 %v929, %v1121
      %v1250 = vmax.f32 %v931, %v1122
      %v1251 = vmax.f32 %v933, %v1123
      %v1252 = vmax.f32 %v935, %v1124
      %v1253 = vmax.f32 %v939, %v1125
      %v1254 = vmax.f32 %v941, %v1126
      %v1255 = vmax.f32 %v943, %v1127
      %v1256 = vmax.f32 %v945, %v1128
      %v1257 = vmax.f32 %v949, %v1129
      %v1258 = vmax.f32 %v951, %v1130
      %v1259 = vmax.f32 %v953, %v1131
      %v1260 = vmax.f32 %v955, %v1132
      %v1261 = vmax.f32 %v959, %v1133
      %v1262 = vmax.f32 %v961, %v1134
      %v1263 = vmax.f32 %v963, %v1135
      %v1264 = vmax.f32 %v965, %v1136
      %v1265 = vmax.f32 %v969, %v1137
      %v1266 = vmax.f32 %v971, %v1138
      %v1267 = vmax.f32 %v973, %v1139
      %v1268 = vmax.f32 %v975, %v1140
      %v1269 = vmax.f32 %v979, %v1141
      %v1270 = vmax.f32 %v981, %v1142
      %v1271 = vmax.f32 %v983, %v1143
      %v1272 = vmax.f32 %v985, %v1144
      %v1273 = vmax.f32 %v989, %v1145
      %v1274 = vmax.f32 %v991, %v1146
      %v1275 = vmax.f32 %v993, %v1147
      %v1276 = vmax.f32 %v995, %v1148
      %v1277 = vmax.f32 %v999, %v1149
      %v1278 = vmax.f32 %v1001, %v1150
      %v1279 = vmax.f32 %v1003, %v1151
      %v1280 = vmax.f32 %v1005, %v1152
      %v1281 = vmax.f32 %v1009, %v1153
      %v1282 = vmax.f32 %v1011, %v1154
      %v1283 = vmax.f32 %v1013, %v1155
      %v1284 = vmax.f32 %v1015, %v1156
      %v1285 = vmax.f32 %v1019, %v1157
      %v1286 = vmax.f32 %v1021, %v1158
      %v1287 = vmax.f32 %v1023, %v1159
      %v1288 = vmax.f32 %v1025, %v1160
      %v1289 = vmax.f32 %v1029, %v1161
      %v1290 = vmax.f32 %v1031, %v1162
      %v1291 = vmax.f32 %v1033, %v1163
      %v1292 = vmax.f32 %v1035, %v1164
      %v1293 = vpack.c.bf16 %v1167, %v1165
      %v1294 = vpack.c.bf16 %v1168, %v1166
      %v1295 = vpack.c.bf16 %v1171, %v1169
      %v1296 = vpack.c.bf16 %v1172, %v1170
      %v1297 = vpack.c.bf16 %v1175, %v1173
      %v1298 = vpack.c.bf16 %v1176, %v1174
      %v1299 = vpack.c.bf16 %v1179, %v1177
      %v1300 = vpack.c.bf16 %v1180, %v1178
      %v1301 = vpack.c.bf16 %v1183, %v1181
      %v1302 = vpack.c.bf16 %v1184, %v1182
      %v1303 = vpack.c.bf16 %v1187, %v1185
      %v1304 = vpack.c.bf16 %v1188, %v1186
      %v1305 = vpack.c.bf16 %v1191, %v1189
      %v1306 = vpack.c.bf16 %v1192, %v1190
      %v1307 = vpack.c.bf16 %v1195, %v1193
      %v1308 = vpack.c.bf16 %v1196, %v1194
      %v1309 = vpack.c.bf16 %v1199, %v1197
      %v1310 = vpack.c.bf16 %v1200, %v1198
      %v1311 = vpack.c.bf16 %v1203, %v1201
      %v1312 = vpack.c.bf16 %v1204, %v1202
      %v1313 = vpack.c.bf16 %v1207, %v1205
      %v1314 = vpack.c.bf16 %v1208, %v1206
      %v1315 = vpack.c.bf16 %v1211, %v1209
      %v1316 = vpack.c.bf16 %v1212, %v1210
      %v1317 = vpack.c.bf16 %v1215, %v1213
      %v1318 = vpack.c.bf16 %v1216, %v1214
      %v1319 = vpack.c.bf16 %v1219, %v1217
      %v1320 = vpack.c.bf16 %v1220, %v1218
      %v1321 = vpack.c.bf16 %v1223, %v1221
      %v1322 = vpack.c.bf16 %v1224, %v1222
      %v1323 = vpack.c.bf16 %v1227, %v1225
      %v1324 = vpack.c.bf16 %v1228, %v1226
      %v1325 = vpack.c.bf16 %v1231, %v1229
      %v1326 = vpack.c.bf16 %v1232, %v1230
      %v1327 = vpack.c.bf16 %v1235, %v1233
      %v1328 = vpack.c.bf16 %v1236, %v1234
      %v1329 = vpack.c.bf16 %v1239, %v1237
      %v1330 = vpack.c.bf16 %v1240, %v1238
      %v1331 = vpack.c.bf16 %v1243, %v1241
      %v1332 = vpack.c.bf16 %v1244, %v1242
      %v1333 = vpack.c.bf16 %v1247, %v1245
      %v1334 = vpack.c.bf16 %v1248, %v1246
      %v1335 = vpack.c.bf16 %v1251, %v1249
      %v1336 = vpack.c.bf16 %v1252, %v1250
      %v1337 = vpack.c.bf16 %v1255, %v1253
      %v1338 = vpack.c.bf16 %v1256, %v1254
      %v1339 = vpack.c.bf16 %v1259, %v1257
      %v1340 = vpack.c.bf16 %v1260, %v1258
      %v1341 = vpack.c.bf16 %v1263, %v1261
      %v1342 = vpack.c.bf16 %v1264, %v1262
      %v1343 = vpack.c.bf16 %v1267, %v1265
      %v1344 = vpack.c.bf16 %v1268, %v1266
      %v1345 = vpack.c.bf16 %v1271, %v1269
      %v1346 = vpack.c.bf16 %v1272, %v1270
      %v1347 = vpack.c.bf16 %v1275, %v1273
      %v1348 = vpack.c.bf16 %v1276, %v1274
      %v1349 = vpack.c.bf16 %v1279, %v1277
      %v1350 = vpack.c.bf16 %v1280, %v1278
      %v1351 = vpack.c.bf16 %v1283, %v1281
      %v1352 = vpack.c.bf16 %v1284, %v1282
      %v1353 = vpack.c.bf16 %v1287, %v1285
      %v1354 = vpack.c.bf16 %v1288, %v1286
      %v1355 = vpack.c.bf16 %v1291, %v1289
      %v1356 = vpack.c.bf16 %v1292, %v1290
      %v1357 = vld [vmem:[%s3] sm:$0xff]
      %v1358 = vld [vmem:[%s3 + $0x8] sm:$0xff]
      %v1359 = vld [vmem:[%s3 + $0x10] sm:$0xff]
      %v1360 = vld [vmem:[%s3 + $0x18] sm:$0xff]
      %v1361 = vld [vmem:[%s3 + $0x20] sm:$0xff]
      %v1362 = vld [vmem:[%s3 + $0x28] sm:$0xff]
      %v1363 = vld [vmem:[%s3 + $0x30] sm:$0xff]
      %v1364 = vld [vmem:[%s3 + $0x38] sm:$0xff]
      %v1365 = vld [vmem:[%s3 + $0x40] sm:$0xff]
      %v1366 = vld [vmem:[%s3 + $0x48] sm:$0xff]
      %v1367 = vld [vmem:[%s3 + $0x50] sm:$0xff]
      %v1368 = vld [vmem:[%s3 + $0x58] sm:$0xff]
      %v1369 = vld [vmem:[%s3 + $0x60] sm:$0xff]
      %v1370 = vld [vmem:[%s3 + $0x68] sm:$0xff]
      %v1371 = vld [vmem:[%s3 + $0x70] sm:$0xff]
      %v1372 = vld [vmem:[%s3 + $0x78] sm:$0xff]
      %v1373 = vld [vmem:[%s3 + $0x80] sm:$0xff]
      %v1374 = vld [vmem:[%s3 + $0x88] sm:$0xff]
      %v1375 = vld [vmem:[%s3 + $0x90] sm:$0xff]
      %v1376 = vld [vmem:[%s3 + $0x98] sm:$0xff]
      %v1377 = vld [vmem:[%s3 + $0xa0] sm:$0xff]
      %v1378 = vld [vmem:[%s3 + $0xa8] sm:$0xff]
      %v1379 = vld [vmem:[%s3 + $0xb0] sm:$0xff]
      %v1380 = vld [vmem:[%s3 + $0xb8] sm:$0xff]
      %v1381 = vld [vmem:[%s3 + $0xc0] sm:$0xff]
      %v1382 = vld [vmem:[%s3 + $0xc8] sm:$0xff]
      %v1383 = vld [vmem:[%s3 + $0xd0] sm:$0xff]
      %v1384 = vld [vmem:[%s3 + $0xd8] sm:$0xff]
      %v1385 = vld [vmem:[%s3 + $0xe0] sm:$0xff]
      %v1386 = vld [vmem:[%s3 + $0xe8] sm:$0xff]
      %v1387 = vld [vmem:[%s3 + $0xf0] sm:$0xff]
      %v1388 = vld [vmem:[%s3 + $0xf8] sm:$0xff]
      %v1389 = vld [vmem:[%s4] sm:$0x3]
      %v1391 = vlaneseq
      %v1392 = vshrl.u32 %v1391, 7
      %v1393 = vsub.s32 0, %v1392
      %v1394 = vrot.slane %v1389, %v1393
      %v1395 = vlaneseq
      %v1396 = vshrl.u32 %v1395, 7
      %v1397 = vsub.s32 1, %v1396
      %v1398 = vrot.slane %v1389, %v1397
      %v1433 = vunpack.c.l.b16 %v1357
      %v1434 = vunpack.c.h.b16 %v1357
      %v1435 = vunpack.c.l.b16 %v1358
      %v1436 = vunpack.c.h.b16 %v1358
      %v1437 = vunpack.c.l.b16 %v1359
      %v1438 = vunpack.c.h.b16 %v1359
      %v1439 = vunpack.c.l.b16 %v1360
      %v1440 = vunpack.c.h.b16 %v1360
      %v1441 = vunpack.c.l.b16 %v1361
      %v1442 = vunpack.c.h.b16 %v1361
      %v1443 = vunpack.c.l.b16 %v1362
      %v1444 = vunpack.c.h.b16 %v1362
      %v1445 = vunpack.c.l.b16 %v1363
      %v1446 = vunpack.c.h.b16 %v1363
      %v1447 = vunpack.c.l.b16 %v1364
      %v1448 = vunpack.c.h.b16 %v1364
      %v1449 = vunpack.c.l.b16 %v1365
      %v1450 = vunpack.c.h.b16 %v1365
      %v1451 = vunpack.c.l.b16 %v1366
      %v1452 = vunpack.c.h.b16 %v1366
      %v1453 = vunpack.c.l.b16 %v1367
      %v1454 = vunpack.c.h.b16 %v1367
      %v1455 = vunpack.c.l.b16 %v1368
      %v1456 = vunpack.c.h.b16 %v1368
      %v1457 = vunpack.c.l.b16 %v1369
      %v1458 = vunpack.c.h.b16 %v1369
      %v1459 = vunpack.c.l.b16 %v1370
      %v1460 = vunpack.c.h.b16 %v1370
      %v1461 = vunpack.c.l.b16 %v1371
      %v1462 = vunpack.c.h.b16 %v1371
      %v1463 = vunpack.c.l.b16 %v1372
      %v1464 = vunpack.c.h.b16 %v1372
      %v1465 = vunpack.c.l.b16 %v1373
      %v1466 = vunpack.c.h.b16 %v1373
      %v1467 = vunpack.c.l.b16 %v1374
      %v1468 = vunpack.c.h.b16 %v1374
      %v1469 = vunpack.c.l.b16 %v1375
      %v1470 = vunpack.c.h.b16 %v1375
      %v1471 = vunpack.c.l.b16 %v1376
      %v1472 = vunpack.c.h.b16 %v1376
      %v1473 = vunpack.c.l.b16 %v1377
      %v1474 = vunpack.c.h.b16 %v1377
      %v1475 = vunpack.c.l.b16 %v1378
      %v1476 = vunpack.c.h.b16 %v1378
      %v1477 = vunpack.c.l.b16 %v1379
      %v1478 = vunpack.c.h.b16 %v1379
      %v1479 = vunpack.c.l.b16 %v1380
      %v1480 = vunpack.c.h.b16 %v1380
      %v1481 = vunpack.c.l.b16 %v1381
      %v1482 = vunpack.c.h.b16 %v1381
      %v1483 = vunpack.c.l.b16 %v1382
      %v1484 = vunpack.c.h.b16 %v1382
      %v1485 = vunpack.c.l.b16 %v1383
      %v1486 = vunpack.c.h.b16 %v1383
      %v1487 = vunpack.c.l.b16 %v1384
      %v1488 = vunpack.c.h.b16 %v1384
      %v1489 = vunpack.c.l.b16 %v1385
      %v1490 = vunpack.c.h.b16 %v1385
      %v1491 = vunpack.c.l.b16 %v1386
      %v1492 = vunpack.c.h.b16 %v1386
      %v1493 = vunpack.c.l.b16 %v1387
      %v1494 = vunpack.c.h.b16 %v1387
      %v1495 = vunpack.c.l.b16 %v1388
      %v1496 = vunpack.c.h.b16 %v1388
      %v1497 = vpack.c.b16 %v1435, %v1433
      %v1498 = vpack.c.b16 %v1436, %v1434
      %v1499 = vpack.c.b16 %v1439, %v1437
      %v1500 = vpack.c.b16 %v1440, %v1438
      %v1501 = vpack.c.b16 %v1443, %v1441
      %v1502 = vpack.c.b16 %v1444, %v1442
      %v1503 = vpack.c.b16 %v1447, %v1445
      %v1504 = vpack.c.b16 %v1448, %v1446
      %v1505 = vpack.c.b16 %v1451, %v1449
      %v1506 = vpack.c.b16 %v1452, %v1450
      %v1507 = vpack.c.b16 %v1455, %v1453
      %v1508 = vpack.c.b16 %v1456, %v1454
      %v1509 = vpack.c.b16 %v1459, %v1457
      %v1510 = vpack.c.b16 %v1460, %v1458
      %v1511 = vpack.c.b16 %v1463, %v1461
      %v1512 = vpack.c.b16 %v1464, %v1462
      %v1513 = vpack.c.b16 %v1467, %v1465
      %v1514 = vpack.c.b16 %v1468, %v1466
      %v1515 = vpack.c.b16 %v1471, %v1469
      %v1516 = vpack.c.b16 %v1472, %v1470
      %v1517 = vpack.c.b16 %v1475, %v1473
      %v1518 = vpack.c.b16 %v1476, %v1474
      %v1519 = vpack.c.b16 %v1479, %v1477
      %v1520 = vpack.c.b16 %v1480, %v1478
      %v1521 = vpack.c.b16 %v1483, %v1481
      %v1522 = vpack.c.b16 %v1484, %v1482
      %v1523 = vpack.c.b16 %v1487, %v1485
      %v1524 = vpack.c.b16 %v1488, %v1486
      %v1525 = vpack.c.b16 %v1491, %v1489
      %v1526 = vpack.c.b16 %v1492, %v1490
      %v1527 = vpack.c.b16 %v1495, %v1493
      %v1528 = vpack.c.b16 %v1496, %v1494
      %1561 = vmatprep.subr.bf16.mxu0 %v1498
      %1562 = vmatpush1.bf16.msra.mxu0 %v1497
      %1563 = vmatprep.subr.bf16.mxu0 %v1500
      %1564 = vmatpush1.bf16.msra.mxu0 %v1499
      %1565 = vmatprep.subr.bf16.mxu0 %v1502
      %1566 = vmatpush1.bf16.msra.mxu0 %v1501
      %1567 = vmatprep.subr.bf16.mxu0 %v1504
      %1568 = vmatpush1.bf16.msra.mxu0 %v1503
      %1569 = vmatprep.subr.bf16.mxu0 %v1506
      %1570 = vmatpush1.bf16.msra.mxu0 %v1505
      %1571 = vmatprep.subr.bf16.mxu0 %v1508
      %1572 = vmatpush1.bf16.msra.mxu0 %v1507
      %1573 = vmatprep.subr.bf16.mxu0 %v1510
      %1574 = vmatpush1.bf16.msra.mxu0 %v1509
      %1575 = vmatprep.subr.bf16.mxu0 %v1512
      %1576 = vmatpush1.bf16.msra.mxu0 %v1511
      %1577 = vmatprep.subr.bf16.mxu0 %v1514
      %1578 = vmatpush1.bf16.msra.mxu0 %v1513
      %1579 = vmatprep.subr.bf16.mxu0 %v1516
      %1580 = vmatpush1.bf16.msra.mxu0 %v1515
      %1581 = vmatprep.subr.bf16.mxu0 %v1518
      %1582 = vmatpush1.bf16.msra.mxu0 %v1517
      %1583 = vmatprep.subr.bf16.mxu0 %v1520
      %1584 = vmatpush1.bf16.msra.mxu0 %v1519
      %1585 = vmatprep.subr.bf16.mxu0 %v1522
      %1586 = vmatpush1.bf16.msra.mxu0 %v1521
      %1587 = vmatprep.subr.bf16.mxu0 %v1524
      %1588 = vmatpush1.bf16.msra.mxu0 %v1523
      %1589 = vmatprep.subr.bf16.mxu0 %v1526
      %1590 = vmatpush1.bf16.msra.mxu0 %v1525
      %1591 = vmatprep.subr.bf16.mxu0 %v1528
      %1592 = vmatpush1.bf16.msra.mxu0 %v1527
      %1593 = vmatprep.mubr.bf16.mxu0 %v1294
      %1594 = vmatmul.mubr.bf16.gmra.mrb[0].mxu0 %v1293
      %v1595 = vpop.f32.mrb[0].mxu0
      %v1596 = vadd.f32 %v1394, %v1595
      %v1597 = vpop.f32.mrb[0].mxu0
      %v1598 = vadd.f32 %v1398, %v1597
      %v1599 = vpop.f32.mrb[0].mxu0
      %v1600 = vadd.f32 %v1394, %v1599
      %v1601 = vpop.f32.mrb[0].mxu0
      %v1602 = vadd.f32 %v1398, %v1601
      %1603 = vmatprep.mubr.bf16.mxu0 %v1296
      %1604 = vmatmul.mubr.bf16.gmra.mrb[0].mxu0 %v1295
      %v1605 = vpop.f32.mrb[0].mxu0
      %v1606 = vadd.f32 %v1394, %v1605
      %v1607 = vpop.f32.mrb[0].mxu0
      %v1608 = vadd.f32 %v1398, %v1607
      %v1609 = vpop.f32.mrb[0].mxu0
      %v1610 = vadd.f32 %v1394, %v1609
      %v1611 = vpop.f32.mrb[0].mxu0
      %v1612 = vadd.f32 %v1398, %v1611
      %1613 = vmatprep.mubr.bf16.mxu0 %v1298
      %1614 = vmatmul.mubr.bf16.gmra.mrb[0].mxu0 %v1297
      %v1615 = vpop.f32.mrb[0].mxu0
      %v1616 = vadd.f32 %v1394, %v1615
      %v1617 = vpop.f32.mrb[0].mxu0
      %v1618 = vadd.f32 %v1398, %v1617
      %v1619 = vpop.f32.mrb[0].mxu0
      %v1620 = vadd.f32 %v1394, %v1619
      %v1621 = vpop.f32.mrb[0].mxu0
      %v1622 = vadd.f32 %v1398, %v1621
      %1623 = vmatprep.mubr.bf16.mxu0 %v1300
      %1624 = vmatmul.mubr.bf16.gmra.mrb[0].mxu0 %v1299
      %v1625 = vpop.f32.mrb[0].mxu0
      %v1626 = vadd.f32 %v1394, %v1625
      %v1627 = vpop.f32.mrb[0].mxu0
      %v1628 = vadd.f32 %v1398, %v1627
      %v1629 = vpop.f32.mrb[0].mxu0
      %v1630 = vadd.f32 %v1394, %v1629
      %v1631 = vpop.f32.mrb[0].mxu0
      %v1632 = vadd.f32 %v1398, %v1631
      %1633 = vmatprep.mubr.bf16.mxu0 %v1302
      %1634 = vmatmul.mubr.bf16.gmra.mrb[0].mxu0 %v1301
      %v1635 = vpop.f32.mrb[0].mxu0
      %v1636 = vadd.f32 %v1394, %v1635
      %v1637 = vpop.f32.mrb[0].mxu0
      %v1638 = vadd.f32 %v1398, %v1637
      %v1639 = vpop.f32.mrb[0].mxu0
      %v1640 = vadd.f32 %v1394, %v1639
      %v1641 = vpop.f32.mrb[0].mxu0
      %v1642 = vadd.f32 %v1398, %v1641
      %1643 = vmatprep.mubr.bf16.mxu0 %v1304
      %1644 = vmatmul.mubr.bf16.gmra.mrb[0].mxu0 %v1303
      %v1645 = vpop.f32.mrb[0].mxu0
      %v1646 = vadd.f32 %v1394, %v1645
      %v1647 = vpop.f32.mrb[0].mxu0
      %v1648 = vadd.f32 %v1398, %v1647
      %v1649 = vpop.f32.mrb[0].mxu0
      %v1650 = vadd.f32 %v1394, %v1649
      %v1651 = vpop.f32.mrb[0].mxu0
      %v1652 = vadd.f32 %v1398, %v1651
      %1653 = vmatprep.mubr.bf16.mxu0 %v1306
      %1654 = vmatmul.mubr.bf16.gmra.mrb[0].mxu0 %v1305
      %v1655 = vpop.f32.mrb[0].mxu0
      %v1656 = vadd.f32 %v1394, %v1655
      %v1657 = vpop.f32.mrb[0].mxu0
      %v1658 = vadd.f32 %v1398, %v1657
      %v1659 = vpop.f32.mrb[0].mxu0
      %v1660 = vadd.f32 %v1394, %v1659
      %v1661 = vpop.f32.mrb[0].mxu0
      %v1662 = vadd.f32 %v1398, %v1661
      %1663 = vmatprep.mubr.bf16.mxu0 %v1308
      %1664 = vmatmul.mubr.bf16.gmra.mrb[0].mxu0 %v1307
      %v1665 = vpop.f32.mrb[0].mxu0
      %v1666 = vadd.f32 %v1394, %v1665
      %v1667 = vpop.f32.mrb[0].mxu0
      %v1668 = vadd.f32 %v1398, %v1667
      %v1669 = vpop.f32.mrb[0].mxu0
      %v1670 = vadd.f32 %v1394, %v1669
      %v1671 = vpop.f32.mrb[0].mxu0
      %v1672 = vadd.f32 %v1398, %v1671
      %1673 = vmatprep.mubr.bf16.mxu0 %v1310
      %1674 = vmatmul.mubr.bf16.gmra.mrb[0].mxu0 %v1309
      %v1675 = vpop.f32.mrb[0].mxu0
      %v1676 = vadd.f32 %v1394, %v1675
      %v1677 = vpop.f32.mrb[0].mxu0
      %v1678 = vadd.f32 %v1398, %v1677
      %v1679 = vpop.f32.mrb[0].mxu0
      %v1680 = vadd.f32 %v1394, %v1679
      %v1681 = vpop.f32.mrb[0].mxu0
      %v1682 = vadd.f32 %v1398, %v1681
      %1683 = vmatprep.mubr.bf16.mxu0 %v1312
      %1684 = vmatmul.mubr.bf16.gmra.mrb[0].mxu0 %v1311
      %v1685 = vpop.f32.mrb[0].mxu0
      %v1686 = vadd.f32 %v1394, %v1685
      %v1687 = vpop.f32.mrb[0].mxu0
      %v1688 = vadd.f32 %v1398, %v1687
      %v1689 = vpop.f32.mrb[0].mxu0
      %v1690 = vadd.f32 %v1394, %v1689
      %v1691 = vpop.f32.mrb[0].mxu0
      %v1692 = vadd.f32 %v1398, %v1691
      %1693 = vmatprep.mubr.bf16.mxu0 %v1314
      %1694 = vmatmul.mubr.bf16.gmra.mrb[0].mxu0 %v1313
      %v1695 = vpop.f32.mrb[0].mxu0
      %v1696 = vadd.f32 %v1394, %v1695
      %v1697 = vpop.f32.mrb[0].mxu0
      %v1698 = vadd.f32 %v1398, %v1697
      %v1699 = vpop.f32.mrb[0].mxu0
      %v1700 = vadd.f32 %v1394, %v1699
      %v1701 = vpop.f32.mrb[0].mxu0
      %v1702 = vadd.f32 %v1398, %v1701
      %1703 = vmatprep.mubr.bf16.mxu0 %v1316
      %1704 = vmatmul.mubr.bf16.gmra.mrb[0].mxu0 %v1315
      %v1705 = vpop.f32.mrb[0].mxu0
      %v1706 = vadd.f32 %v1394, %v1705
      %v1707 = vpop.f32.mrb[0].mxu0
      %v1708 = vadd.f32 %v1398, %v1707
      %v1709 = vpop.f32.mrb[0].mxu0
      %v1710 = vadd.f32 %v1394, %v1709
      %v1711 = vpop.f32.mrb[0].mxu0
      %v1712 = vadd.f32 %v1398, %v1711
      %1713 = vmatprep.mubr.bf16.mxu0 %v1318
      %1714 = vmatmul.mubr.bf16.gmra.mrb[0].mxu0 %v1317
      %v1715 = vpop.f32.mrb[0].mxu0
      %v1716 = vadd.f32 %v1394, %v1715
      %v1717 = vpop.f32.mrb[0].mxu0
      %v1718 = vadd.f32 %v1398, %v1717
      %v1719 = vpop.f32.mrb[0].mxu0
      %v1720 = vadd.f32 %v1394, %v1719
      %v1721 = vpop.f32.mrb[0].mxu0
      %v1722 = vadd.f32 %v1398, %v1721
      %1723 = vmatprep.mubr.bf16.mxu0 %v1320
      %1724 = vmatmul.mubr.bf16.gmra.mrb[0].mxu0 %v1319
      %v1725 = vpop.f32.mrb[0].mxu0
      %v1726 = vadd.f32 %v1394, %v1725
      %v1727 = vpop.f32.mrb[0].mxu0
      %v1728 = vadd.f32 %v1398, %v1727
      %v1729 = vpop.f32.mrb[0].mxu0
      %v1730 = vadd.f32 %v1394, %v1729
      %v1731 = vpop.f32.mrb[0].mxu0
      %v1732 = vadd.f32 %v1398, %v1731
      %1733 = vmatprep.mubr.bf16.mxu0 %v1322
      %1734 = vmatmul.mubr.bf16.gmra.mrb[0].mxu0 %v1321
      %v1735 = vpop.f32.mrb[0].mxu0
      %v1736 = vadd.f32 %v1394, %v1735
      %v1737 = vpop.f32.mrb[0].mxu0
      %v1738 = vadd.f32 %v1398, %v1737
      %v1739 = vpop.f32.mrb[0].mxu0
      %v1740 = vadd.f32 %v1394, %v1739
      %v1741 = vpop.f32.mrb[0].mxu0
      %v1742 = vadd.f32 %v1398, %v1741
      %1743 = vmatprep.mubr.bf16.mxu0 %v1324
      %1744 = vmatmul.mubr.bf16.gmra.mrb[0].mxu0 %v1323
      %v1745 = vpop.f32.mrb[0].mxu0
      %v1746 = vadd.f32 %v1394, %v1745
      %v1747 = vpop.f32.mrb[0].mxu0
      %v1748 = vadd.f32 %v1398, %v1747
      %v1749 = vpop.f32.mrb[0].mxu0
      %v1750 = vadd.f32 %v1394, %v1749
      %v1751 = vpop.f32.mrb[0].mxu0
      %v1752 = vadd.f32 %v1398, %v1751
      %1753 = vmatprep.mubr.bf16.mxu0 %v1326
      %1754 = vmatmul.mubr.bf16.gmra.mrb[0].mxu0 %v1325
      %v1755 = vpop.f32.mrb[0].mxu0
      %v1756 = vadd.f32 %v1394, %v1755
      %v1757 = vpop.f32.mrb[0].mxu0
      %v1758 = vadd.f32 %v1398, %v1757
      %v1759 = vpop.f32.mrb[0].mxu0
      %v1760 = vadd.f32 %v1394, %v1759
      %v1761 = vpop.f32.mrb[0].mxu0
      %v1762 = vadd.f32 %v1398, %v1761
      %1763 = vmatprep.mubr.bf16.mxu0 %v1328
      %1764 = vmatmul.mubr.bf16.gmra.mrb[0].mxu0 %v1327
      %v1765 = vpop.f32.mrb[0].mxu0
      %v1766 = vadd.f32 %v1394, %v1765
      %v1767 = vpop.f32.mrb[0].mxu0
      %v1768 = vadd.f32 %v1398, %v1767
      %v1769 = vpop.f32.mrb[0].mxu0
      %v1770 = vadd.f32 %v1394, %v1769
      %v1771 = vpop.f32.mrb[0].mxu0
      %v1772 = vadd.f32 %v1398, %v1771
      %1773 = vmatprep.mubr.bf16.mxu0 %v1330
      %1774 = vmatmul.mubr.bf16.gmra.mrb[0].mxu0 %v1329
      %v1775 = vpop.f32.mrb[0].mxu0
      %v1776 = vadd.f32 %v1394, %v1775
      %v1777 = vpop.f32.mrb[0].mxu0
      %v1778 = vadd.f32 %v1398, %v1777
      %v1779 = vpop.f32.mrb[0].mxu0
      %v1780 = vadd.f32 %v1394, %v1779
      %v1781 = vpop.f32.mrb[0].mxu0
      %v1782 = vadd.f32 %v1398, %v1781
      %1783 = vmatprep.mubr.bf16.mxu0 %v1332
      %1784 = vmatmul.mubr.bf16.gmra.mrb[0].mxu0 %v1331
      %v1785 = vpop.f32.mrb[0].mxu0
      %v1786 = vadd.f32 %v1394, %v1785
      %v1787 = vpop.f32.mrb[0].mxu0
      %v1788 = vadd.f32 %v1398, %v1787
      %v1789 = vpop.f32.mrb[0].mxu0
      %v1790 = vadd.f32 %v1394, %v1789
      %v1791 = vpop.f32.mrb[0].mxu0
      %v1792 = vadd.f32 %v1398, %v1791
      %1793 = vmatprep.mubr.bf16.mxu0 %v1334
      %1794 = vmatmul.mubr.bf16.gmra.mrb[0].mxu0 %v1333
      %v1795 = vpop.f32.mrb[0].mxu0
      %v1796 = vadd.f32 %v1394, %v1795
      %v1797 = vpop.f32.mrb[0].mxu0
      %v1798 = vadd.f32 %v1398, %v1797
      %v1799 = vpop.f32.mrb[0].mxu0
      %v1800 = vadd.f32 %v1394, %v1799
      %v1801 = vpop.f32.mrb[0].mxu0
      %v1802 = vadd.f32 %v1398, %v1801
      %1803 = vmatprep.mubr.bf16.mxu0 %v1336
      %1804 = vmatmul.mubr.bf16.gmra.mrb[0].mxu0 %v1335
      %v1805 = vpop.f32.mrb[0].mxu0
      %v1806 = vadd.f32 %v1394, %v1805
      %v1807 = vpop.f32.mrb[0].mxu0
      %v1808 = vadd.f32 %v1398, %v1807
      %v1809 = vpop.f32.mrb[0].mxu0
      %v1810 = vadd.f32 %v1394, %v1809
      %v1811 = vpop.f32.mrb[0].mxu0
      %v1812 = vadd.f32 %v1398, %v1811
      %1813 = vmatprep.mubr.bf16.mxu0 %v1338
      %1814 = vmatmul.mubr.bf16.gmra.mrb[0].mxu0 %v1337
      %v1815 = vpop.f32.mrb[0].mxu0
      %v1816 = vadd.f32 %v1394, %v1815
      %v1817 = vpop.f32.mrb[0].mxu0
      %v1818 = vadd.f32 %v1398, %v1817
      %v1819 = vpop.f32.mrb[0].mxu0
      %v1820 = vadd.f32 %v1394, %v1819
      %v1821 = vpop.f32.mrb[0].mxu0
      %v1822 = vadd.f32 %v1398, %v1821
      %1823 = vmatprep.mubr.bf16.mxu0 %v1340
      %1824 = vmatmul.mubr.bf16.gmra.mrb[0].mxu0 %v1339
      %v1825 = vpop.f32.mrb[0].mxu0
      %v1826 = vadd.f32 %v1394, %v1825
      %v1827 = vpop.f32.mrb[0].mxu0
      %v1828 = vadd.f32 %v1398, %v1827
      %v1829 = vpop.f32.mrb[0].mxu0
      %v1830 = vadd.f32 %v1394, %v1829
      %v1831 = vpop.f32.mrb[0].mxu0
      %v1832 = vadd.f32 %v1398, %v1831
      %1833 = vmatprep.mubr.bf16.mxu0 %v1342
      %1834 = vmatmul.mubr.bf16.gmra.mrb[0].mxu0 %v1341
      %v1835 = vpop.f32.mrb[0].mxu0
      %v1836 = vadd.f32 %v1394, %v1835
      %v1837 = vpop.f32.mrb[0].mxu0
      %v1838 = vadd.f32 %v1398, %v1837
      %v1839 = vpop.f32.mrb[0].mxu0
      %v1840 = vadd.f32 %v1394, %v1839
      %v1841 = vpop.f32.mrb[0].mxu0
      %v1842 = vadd.f32 %v1398, %v1841
      %1843 = vmatprep.mubr.bf16.mxu0 %v1344
      %1844 = vmatmul.mubr.bf16.gmra.mrb[0].mxu0 %v1343
      %v1845 = vpop.f32.mrb[0].mxu0
      %v1846 = vadd.f32 %v1394, %v1845
      %v1847 = vpop.f32.mrb[0].mxu0
      %v1848 = vadd.f32 %v1398, %v1847
      %v1849 = vpop.f32.mrb[0].mxu0
      %v1850 = vadd.f32 %v1394, %v1849
      %v1851 = vpop.f32.mrb[0].mxu0
      %v1852 = vadd.f32 %v1398, %v1851
      %1853 = vmatprep.mubr.bf16.mxu0 %v1346
      %1854 = vmatmul.mubr.bf16.gmra.mrb[0].mxu0 %v1345
      %v1855 = vpop.f32.mrb[0].mxu0
      %v1856 = vadd.f32 %v1394, %v1855
      %v1857 = vpop.f32.mrb[0].mxu0
      %v1858 = vadd.f32 %v1398, %v1857
      %v1859 = vpop.f32.mrb[0].mxu0
      %v1860 = vadd.f32 %v1394, %v1859
      %v1861 = vpop.f32.mrb[0].mxu0
      %v1862 = vadd.f32 %v1398, %v1861
      %1863 = vmatprep.mubr.bf16.mxu0 %v1348
      %1864 = vmatmul.mubr.bf16.gmra.mrb[0].mxu0 %v1347
      %v1865 = vpop.f32.mrb[0].mxu0
      %v1866 = vadd.f32 %v1394, %v1865
      %v1867 = vpop.f32.mrb[0].mxu0
      %v1868 = vadd.f32 %v1398, %v1867
      %v1869 = vpop.f32.mrb[0].mxu0
      %v1870 = vadd.f32 %v1394, %v1869
      %v1871 = vpop.f32.mrb[0].mxu0
      %v1872 = vadd.f32 %v1398, %v1871
      %1873 = vmatprep.mubr.bf16.mxu0 %v1350
      %1874 = vmatmul.mubr.bf16.gmra.mrb[0].mxu0 %v1349
      %v1875 = vpop.f32.mrb[0].mxu0
      %v1876 = vadd.f32 %v1394, %v1875
      %v1877 = vpop.f32.mrb[0].mxu0
      %v1878 = vadd.f32 %v1398, %v1877
      %v1879 = vpop.f32.mrb[0].mxu0
      %v1880 = vadd.f32 %v1394, %v1879
      %v1881 = vpop.f32.mrb[0].mxu0
      %v1882 = vadd.f32 %v1398, %v1881
      %1883 = vmatprep.mubr.bf16.mxu0 %v1352
      %1884 = vmatmul.mubr.bf16.gmra.mrb[0].mxu0 %v1351
      %v1885 = vpop.f32.mrb[0].mxu0
      %v1886 = vadd.f32 %v1394, %v1885
      %v1887 = vpop.f32.mrb[0].mxu0
      %v1888 = vadd.f32 %v1398, %v1887
      %v1889 = vpop.f32.mrb[0].mxu0
      %v1890 = vadd.f32 %v1394, %v1889
      %v1891 = vpop.f32.mrb[0].mxu0
      %v1892 = vadd.f32 %v1398, %v1891
      %1893 = vmatprep.mubr.bf16.mxu0 %v1354
      %1894 = vmatmul.mubr.bf16.gmra.mrb[0].mxu0 %v1353
      %v1895 = vpop.f32.mrb[0].mxu0
      %v1896 = vadd.f32 %v1394, %v1895
      %v1897 = vpop.f32.mrb[0].mxu0
      %v1898 = vadd.f32 %v1398, %v1897
      %v1899 = vpop.f32.mrb[0].mxu0
      %v1900 = vadd.f32 %v1394, %v1899
      %v1901 = vpop.f32.mrb[0].mxu0
      %v1902 = vadd.f32 %v1398, %v1901
      %1903 = vmatprep.mubr.bf16.mxu0 %v1356
      %1904 = vmatmul.mubr.bf16.gmra.mrb[0].mxu0 %v1355
      %v1905 = vpop.f32.mrb[0].mxu0
      %v1906 = vadd.f32 %v1394, %v1905
      %v1907 = vpop.f32.mrb[0].mxu0
      %v1908 = vadd.f32 %v1398, %v1907
      %v1909 = vpop.f32.mrb[0].mxu0
      %v1910 = vadd.f32 %v1394, %v1909
      %v1911 = vpop.f32.mrb[0].mxu0
      %v1912 = vadd.f32 %v1398, %v1911
      %1913 = vdwg.mxu0
      %v1914 = vmul.f32 %v1596, 0.01
      %v1915 = vmul.f32 %v1598, 0.01
      %v1916 = vmul.f32 %v1600, 0.01
      %v1917 = vmul.f32 %v1602, 0.01
      %v1918 = vmul.f32 %v1606, 0.01
      %v1919 = vmul.f32 %v1608, 0.01
      %v1920 = vmul.f32 %v1610, 0.01
      %v1921 = vmul.f32 %v1612, 0.01
      %v1922 = vmul.f32 %v1616, 0.01
      %v1923 = vmul.f32 %v1618, 0.01
      %v1924 = vmul.f32 %v1620, 0.01
      %v1925 = vmul.f32 %v1622, 0.01
      %v1926 = vmul.f32 %v1626, 0.01
      %v1927 = vmul.f32 %v1628, 0.01
      %v1928 = vmul.f32 %v1630, 0.01
      %v1929 = vmul.f32 %v1632, 0.01
      %v1930 = vmul.f32 %v1636, 0.01
      %v1931 = vmul.f32 %v1638, 0.01
      %v1932 = vmul.f32 %v1640, 0.01
      %v1933 = vmul.f32 %v1642, 0.01
      %v1934 = vmul.f32 %v1646, 0.01
      %v1935 = vmul.f32 %v1648, 0.01
      %v1936 = vmul.f32 %v1650, 0.01
      %v1937 = vmul.f32 %v1652, 0.01
      %v1938 = vmul.f32 %v1656, 0.01
      %v1939 = vmul.f32 %v1658, 0.01
      %v1940 = vmul.f32 %v1660, 0.01
      %v1941 = vmul.f32 %v1662, 0.01
      %v1942 = vmul.f32 %v1666, 0.01
      %v1943 = vmul.f32 %v1668, 0.01
      %v1944 = vmul.f32 %v1670, 0.01
      %v1945 = vmul.f32 %v1672, 0.01
      %v1946 = vmul.f32 %v1676, 0.01
      %v1947 = vmul.f32 %v1678, 0.01
      %v1948 = vmul.f32 %v1680, 0.01
      %v1949 = vmul.f32 %v1682, 0.01
      %v1950 = vmul.f32 %v1686, 0.01
      %v1951 = vmul.f32 %v1688, 0.01
      %v1952 = vmul.f32 %v1690, 0.01
      %v1953 = vmul.f32 %v1692, 0.01
      %v1954 = vmul.f32 %v1696, 0.01
      %v1955 = vmul.f32 %v1698, 0.01
      %v1956 = vmul.f32 %v1700, 0.01
      %v1957 = vmul.f32 %v1702, 0.01
      %v1958 = vmul.f32 %v1706, 0.01
      %v1959 = vmul.f32 %v1708, 0.01
      %v1960 = vmul.f32 %v1710, 0.01
      %v1961 = vmul.f32 %v1712, 0.01
      %v1962 = vmul.f32 %v1716, 0.01
      %v1963 = vmul.f32 %v1718, 0.01
      %v1964 = vmul.f32 %v1720, 0.01
      %v1965 = vmul.f32 %v1722, 0.01
      %v1966 = vmul.f32 %v1726, 0.01
      %v1967 = vmul.f32 %v1728, 0.01
      %v1968 = vmul.f32 %v1730, 0.01
      %v1969 = vmul.f32 %v1732, 0.01
      %v1970 = vmul.f32 %v1736, 0.01
      %v1971 = vmul.f32 %v1738, 0.01
      %v1972 = vmul.f32 %v1740, 0.01
      %v1973 = vmul.f32 %v1742, 0.01
      %v1974 = vmul.f32 %v1746, 0.01
      %v1975 = vmul.f32 %v1748, 0.01
      %v1976 = vmul.f32 %v1750, 0.01
      %v1977 = vmul.f32 %v1752, 0.01
      %v1978 = vmul.f32 %v1756, 0.01
      %v1979 = vmul.f32 %v1758, 0.01
      %v1980 = vmul.f32 %v1760, 0.01
      %v1981 = vmul.f32 %v1762, 0.01
      %v1982 = vmul.f32 %v1766, 0.01
      %v1983 = vmul.f32 %v1768, 0.01
      %v1984 = vmul.f32 %v1770, 0.01
      %v1985 = vmul.f32 %v1772, 0.01
      %v1986 = vmul.f32 %v1776, 0.01
      %v1987 = vmul.f32 %v1778, 0.01
      %v1988 = vmul.f32 %v1780, 0.01
      %v1989 = vmul.f32 %v1782, 0.01
      %v1990 = vmul.f32 %v1786, 0.01
      %v1991 = vmul.f32 %v1788, 0.01
      %v1992 = vmul.f32 %v1790, 0.01
      %v1993 = vmul.f32 %v1792, 0.01
      %v1994 = vmul.f32 %v1796, 0.01
      %v1995 = vmul.f32 %v1798, 0.01
      %v1996 = vmul.f32 %v1800, 0.01
      %v1997 = vmul.f32 %v1802, 0.01
      %v1998 = vmul.f32 %v1806, 0.01
      %v1999 = vmul.f32 %v1808, 0.01
      %v2000 = vmul.f32 %v1810, 0.01
      %v2001 = vmul.f32 %v1812, 0.01
      %v2002 = vmul.f32 %v1816, 0.01
      %v2003 = vmul.f32 %v1818, 0.01
      %v2004 = vmul.f32 %v1820, 0.01
      %v2005 = vmul.f32 %v1822, 0.01
      %v2006 = vmul.f32 %v1826, 0.01
      %v2007 = vmul.f32 %v1828, 0.01
      %v2008 = vmul.f32 %v1830, 0.01
      %v2009 = vmul.f32 %v1832, 0.01
      %v2010 = vmul.f32 %v1836, 0.01
      %v2011 = vmul.f32 %v1838, 0.01
      %v2012 = vmul.f32 %v1840, 0.01
      %v2013 = vmul.f32 %v1842, 0.01
      %v2014 = vmul.f32 %v1846, 0.01
      %v2015 = vmul.f32 %v1848, 0.01
      %v2016 = vmul.f32 %v1850, 0.01
      %v2017 = vmul.f32 %v1852, 0.01
      %v2018 = vmul.f32 %v1856, 0.01
      %v2019 = vmul.f32 %v1858, 0.01
      %v2020 = vmul.f32 %v1860, 0.01
      %v2021 = vmul.f32 %v1862, 0.01
      %v2022 = vmul.f32 %v1866, 0.01
      %v2023 = vmul.f32 %v1868, 0.01
      %v2024 = vmul.f32 %v1870, 0.01
      %v2025 = vmul.f32 %v1872, 0.01
      %v2026 = vmul.f32 %v1876, 0.01
      %v2027 = vmul.f32 %v1878, 0.01
      %v2028 = vmul.f32 %v1880, 0.01
      %v2029 = vmul.f32 %v1882, 0.01
      %v2030 = vmul.f32 %v1886, 0.01
      %v2031 = vmul.f32 %v1888, 0.01
      %v2032 = vmul.f32 %v1890, 0.01
      %v2033 = vmul.f32 %v1892, 0.01
      %v2034 = vmul.f32 %v1896, 0.01
      %v2035 = vmul.f32 %v1898, 0.01
      %v2036 = vmul.f32 %v1900, 0.01
      %v2037 = vmul.f32 %v1902, 0.01
      %v2038 = vmul.f32 %v1906, 0.01
      %v2039 = vmul.f32 %v1908, 0.01
      %v2040 = vmul.f32 %v1910, 0.01
      %v2041 = vmul.f32 %v1912, 0.01
      %v2042 = vmax.f32 %v1596, %v1914
      %v2043 = vmax.f32 %v1598, %v1915
      %v2044 = vmax.f32 %v1600, %v1916
      %v2045 = vmax.f32 %v1602, %v1917
      %v2046 = vmax.f32 %v1606, %v1918
      %v2047 = vmax.f32 %v1608, %v1919
      %v2048 = vmax.f32 %v1610, %v1920
      %v2049 = vmax.f32 %v1612, %v1921
      %v2050 = vmax.f32 %v1616, %v1922
      %v2051 = vmax.f32 %v1618, %v1923
      %v2052 = vmax.f32 %v1620, %v1924
      %v2053 = vmax.f32 %v1622, %v1925
      %v2054 = vmax.f32 %v1626, %v1926
      %v2055 = vmax.f32 %v1628, %v1927
      %v2056 = vmax.f32 %v1630, %v1928
      %v2057 = vmax.f32 %v1632, %v1929
      %v2058 = vmax.f32 %v1636, %v1930
      %v2059 = vmax.f32 %v1638, %v1931
      %v2060 = vmax.f32 %v1640, %v1932
      %v2061 = vmax.f32 %v1642, %v1933
      %v2062 = vmax.f32 %v1646, %v1934
      %v2063 = vmax.f32 %v1648, %v1935
      %v2064 = vmax.f32 %v1650, %v1936
      %v2065 = vmax.f32 %v1652, %v1937
      %v2066 = vmax.f32 %v1656, %v1938
      %v2067 = vmax.f32 %v1658, %v1939
      %v2068 = vmax.f32 %v1660, %v1940
      %v2069 = vmax.f32 %v1662, %v1941
      %v2070 = vmax.f32 %v1666, %v1942
      %v2071 = vmax.f32 %v1668, %v1943
      %v2072 = vmax.f32 %v1670, %v1944
      %v2073 = vmax.f32 %v1672, %v1945
      %v2074 = vmax.f32 %v1676, %v1946
      %v2075 = vmax.f32 %v1678, %v1947
      %v2076 = vmax.f32 %v1680, %v1948
      %v2077 = vmax.f32 %v1682, %v1949
      %v2078 = vmax.f32 %v1686, %v1950
      %v2079 = vmax.f32 %v1688, %v1951
      %v2080 = vmax.f32 %v1690, %v1952
      %v2081 = vmax.f32 %v1692, %v1953
      %v2082 = vmax.f32 %v1696, %v1954
      %v2083 = vmax.f32 %v1698, %v1955
      %v2084 = vmax.f32 %v1700, %v1956
      %v2085 = vmax.f32 %v1702, %v1957
      %v2086 = vmax.f32 %v1706, %v1958
      %v2087 = vmax.f32 %v1708, %v1959
      %v2088 = vmax.f32 %v1710, %v1960
      %v2089 = vmax.f32 %v1712, %v1961
      %v2090 = vmax.f32 %v1716, %v1962
      %v2091 = vmax.f32 %v1718, %v1963
      %v2092 = vmax.f32 %v1720, %v1964
      %v2093 = vmax.f32 %v1722, %v1965
      %v2094 = vmax.f32 %v1726, %v1966
      %v2095 = vmax.f32 %v1728, %v1967
      %v2096 = vmax.f32 %v1730, %v1968
      %v2097 = vmax.f32 %v1732, %v1969
      %v2098 = vmax.f32 %v1736, %v1970
      %v2099 = vmax.f32 %v1738, %v1971
      %v2100 = vmax.f32 %v1740, %v1972
      %v2101 = vmax.f32 %v1742, %v1973
      %v2102 = vmax.f32 %v1746, %v1974
      %v2103 = vmax.f32 %v1748, %v1975
      %v2104 = vmax.f32 %v1750, %v1976
      %v2105 = vmax.f32 %v1752, %v1977
      %v2106 = vmax.f32 %v1756, %v1978
      %v2107 = vmax.f32 %v1758, %v1979
      %v2108 = vmax.f32 %v1760, %v1980
      %v2109 = vmax.f32 %v1762, %v1981
      %v2110 = vmax.f32 %v1766, %v1982
      %v2111 = vmax.f32 %v1768, %v1983
      %v2112 = vmax.f32 %v1770, %v1984
      %v2113 = vmax.f32 %v1772, %v1985
      %v2114 = vmax.f32 %v1776, %v1986
      %v2115 = vmax.f32 %v1778, %v1987
      %v2116 = vmax.f32 %v1780, %v1988
      %v2117 = vmax.f32 %v1782, %v1989
      %v2118 = vmax.f32 %v1786, %v1990
      %v2119 = vmax.f32 %v1788, %v1991
      %v2120 = vmax.f32 %v1790, %v1992
      %v2121 = vmax.f32 %v1792, %v1993
      %v2122 = vmax.f32 %v1796, %v1994
      %v2123 = vmax.f32 %v1798, %v1995
      %v2124 = vmax.f32 %v1800, %v1996
      %v2125 = vmax.f32 %v1802, %v1997
      %v2126 = vmax.f32 %v1806, %v1998
      %v2127 = vmax.f32 %v1808, %v1999
      %v2128 = vmax.f32 %v1810, %v2000
      %v2129 = vmax.f32 %v1812, %v2001
      %v2130 = vmax.f32 %v1816, %v2002
      %v2131 = vmax.f32 %v1818, %v2003
      %v2132 = vmax.f32 %v1820, %v2004
      %v2133 = vmax.f32 %v1822, %v2005
      %v2134 = vmax.f32 %v1826, %v2006
      %v2135 = vmax.f32 %v1828, %v2007
      %v2136 = vmax.f32 %v1830, %v2008
      %v2137 = vmax.f32 %v1832, %v2009
      %v2138 = vmax.f32 %v1836, %v2010
      %v2139 = vmax.f32 %v1838, %v2011
      %v2140 = vmax.f32 %v1840, %v2012
      %v2141 = vmax.f32 %v1842, %v2013
      %v2142 = vmax.f32 %v1846, %v2014
      %v2143 = vmax.f32 %v1848, %v2015
      %v2144 = vmax.f32 %v1850, %v2016
      %v2145 = vmax.f32 %v1852, %v2017
      %v2146 = vmax.f32 %v1856, %v2018
      %v2147 = vmax.f32 %v1858, %v2019
      %v2148 = vmax.f32 %v1860, %v2020
      %v2149 = vmax.f32 %v1862, %v2021
      %v2150 = vmax.f32 %v1866, %v2022
      %v2151 = vmax.f32 %v1868, %v2023
      %v2152 = vmax.f32 %v1870, %v2024
      %v2153 = vmax.f32 %v1872, %v2025
      %v2154 = vmax.f32 %v1876, %v2026
      %v2155 = vmax.f32 %v1878, %v2027
      %v2156 = vmax.f32 %v1880, %v2028
      %v2157 = vmax.f32 %v1882, %v2029
      %v2158 = vmax.f32 %v1886, %v2030
      %v2159 = vmax.f32 %v1888, %v2031
      %v2160 = vmax.f32 %v1890, %v2032
      %v2161 = vmax.f32 %v1892, %v2033
      %v2162 = vmax.f32 %v1896, %v2034
      %v2163 = vmax.f32 %v1898, %v2035
      %v2164 = vmax.f32 %v1900, %v2036
      %v2165 = vmax.f32 %v1902, %v2037
      %v2166 = vmax.f32 %v1906, %v2038
      %v2167 = vmax.f32 %v1908, %v2039
      %v2168 = vmax.f32 %v1910, %v2040
      %v2169 = vmax.f32 %v1912, %v2041
      %v2170 = vpack.c.bf16 %v2044, %v2042
      %v2171 = vpack.c.bf16 %v2045, %v2043
      %v2172 = vpack.c.bf16 %v2048, %v2046
      %v2173 = vpack.c.bf16 %v2049, %v2047
      %v2174 = vpack.c.bf16 %v2052, %v2050
      %v2175 = vpack.c.bf16 %v2053, %v2051
      %v2176 = vpack.c.bf16 %v2056, %v2054
      %v2177 = vpack.c.bf16 %v2057, %v2055
      %v2178 = vpack.c.bf16 %v2060, %v2058
      %v2179 = vpack.c.bf16 %v2061, %v2059
      %v2180 = vpack.c.bf16 %v2064, %v2062
      %v2181 = vpack.c.bf16 %v2065, %v2063
      %v2182 = vpack.c.bf16 %v2068, %v2066
      %v2183 = vpack.c.bf16 %v2069, %v2067
      %v2184 = vpack.c.bf16 %v2072, %v2070
      %v2185 = vpack.c.bf16 %v2073, %v2071
      %v2186 = vpack.c.bf16 %v2076, %v2074
      %v2187 = vpack.c.bf16 %v2077, %v2075
      %v2188 = vpack.c.bf16 %v2080, %v2078
      %v2189 = vpack.c.bf16 %v2081, %v2079
      %v2190 = vpack.c.bf16 %v2084, %v2082
      %v2191 = vpack.c.bf16 %v2085, %v2083
      %v2192 = vpack.c.bf16 %v2088, %v2086
      %v2193 = vpack.c.bf16 %v2089, %v2087
      %v2194 = vpack.c.bf16 %v2092, %v2090
      %v2195 = vpack.c.bf16 %v2093, %v2091
      %v2196 = vpack.c.bf16 %v2096, %v2094
      %v2197 = vpack.c.bf16 %v2097, %v2095
      %v2198 = vpack.c.bf16 %v2100, %v2098
      %v2199 = vpack.c.bf16 %v2101, %v2099
      %v2200 = vpack.c.bf16 %v2104, %v2102
      %v2201 = vpack.c.bf16 %v2105, %v2103
      %v2202 = vpack.c.bf16 %v2108, %v2106
      %v2203 = vpack.c.bf16 %v2109, %v2107
      %v2204 = vpack.c.bf16 %v2112, %v2110
      %v2205 = vpack.c.bf16 %v2113, %v2111
      %v2206 = vpack.c.bf16 %v2116, %v2114
      %v2207 = vpack.c.bf16 %v2117, %v2115
      %v2208 = vpack.c.bf16 %v2120, %v2118
      %v2209 = vpack.c.bf16 %v2121, %v2119
      %v2210 = vpack.c.bf16 %v2124, %v2122
      %v2211 = vpack.c.bf16 %v2125, %v2123
      %v2212 = vpack.c.bf16 %v2128, %v2126
      %v2213 = vpack.c.bf16 %v2129, %v2127
      %v2214 = vpack.c.bf16 %v2132, %v2130
      %v2215 = vpack.c.bf16 %v2133, %v2131
      %v2216 = vpack.c.bf16 %v2136, %v2134
      %v2217 = vpack.c.bf16 %v2137, %v2135
      %v2218 = vpack.c.bf16 %v2140, %v2138
      %v2219 = vpack.c.bf16 %v2141, %v2139
      %v2220 = vpack.c.bf16 %v2144, %v2142
      %v2221 = vpack.c.bf16 %v2145, %v2143
      %v2222 = vpack.c.bf16 %v2148, %v2146
      %v2223 = vpack.c.bf16 %v2149, %v2147
      %v2224 = vpack.c.bf16 %v2152, %v2150
      %v2225 = vpack.c.bf16 %v2153, %v2151
      %v2226 = vpack.c.bf16 %v2156, %v2154
      %v2227 = vpack.c.bf16 %v2157, %v2155
      %v2228 = vpack.c.bf16 %v2160, %v2158
      %v2229 = vpack.c.bf16 %v2161, %v2159
      %v2230 = vpack.c.bf16 %v2164, %v2162
      %v2231 = vpack.c.bf16 %v2165, %v2163
      %v2232 = vpack.c.bf16 %v2168, %v2166
      %v2233 = vpack.c.bf16 %v2169, %v2167
      %v2234 = vld [vmem:[%s5] sm:$0xff]
      %v2235 = vld [vmem:[%s5 + $0x8] sm:$0xff]
      %v2236 = vld [vmem:[%s5 + $0x10] sm:$0xff]
      %v2237 = vld [vmem:[%s5 + $0x18] sm:$0xff]
      %v2238 = vld [vmem:[%s5 + $0x20] sm:$0xff]
      %v2239 = vld [vmem:[%s5 + $0x28] sm:$0xff]
      %v2240 = vld [vmem:[%s5 + $0x30] sm:$0xff]
      %v2241 = vld [vmem:[%s5 + $0x38] sm:$0xff]
      %v2242 = vld [vmem:[%s5 + $0x40] sm:$0xff]
      %v2243 = vld [vmem:[%s5 + $0x48] sm:$0xff]
      %v2244 = vld [vmem:[%s5 + $0x50] sm:$0xff]
      %v2245 = vld [vmem:[%s5 + $0x58] sm:$0xff]
      %v2246 = vld [vmem:[%s5 + $0x60] sm:$0xff]
      %v2247 = vld [vmem:[%s5 + $0x68] sm:$0xff]
      %v2248 = vld [vmem:[%s5 + $0x70] sm:$0xff]
      %v2249 = vld [vmem:[%s5 + $0x78] sm:$0xff]
      %v2250 = vld [vmem:[%s5 + $0x80] sm:$0xff]
      %v2251 = vld [vmem:[%s5 + $0x88] sm:$0xff]
      %v2252 = vld [vmem:[%s5 + $0x90] sm:$0xff]
      %v2253 = vld [vmem:[%s5 + $0x98] sm:$0xff]
      %v2254 = vld [vmem:[%s5 + $0xa0] sm:$0xff]
      %v2255 = vld [vmem:[%s5 + $0xa8] sm:$0xff]
      %v2256 = vld [vmem:[%s5 + $0xb0] sm:$0xff]
      %v2257 = vld [vmem:[%s5 + $0xb8] sm:$0xff]
      %v2258 = vld [vmem:[%s5 + $0xc0] sm:$0xff]
      %v2259 = vld [vmem:[%s5 + $0xc8] sm:$0xff]
      %v2260 = vld [vmem:[%s5 + $0xd0] sm:$0xff]
      %v2261 = vld [vmem:[%s5 + $0xd8] sm:$0xff]
      %v2262 = vld [vmem:[%s5 + $0xe0] sm:$0xff]
      %v2263 = vld [vmem:[%s5 + $0xe8] sm:$0xff]
      %v2264 = vld [vmem:[%s5 + $0xf0] sm:$0xff]
      %v2265 = vld [vmem:[%s5 + $0xf8] sm:$0xff]
      %v2266 = vld [vmem:[%s6] sm:$0x3]
      %v2268 = vlaneseq
      %v2269 = vshrl.u32 %v2268, 7
      %v2270 = vsub.s32 0, %v2269
      %v2271 = vrot.slane %v2266, %v2270
      %v2272 = vlaneseq
      %v2273 = vshrl.u32 %v2272, 7
      %v2274 = vsub.s32 1, %v2273
      %v2275 = vrot.slane %v2266, %v2274
      %v2310 = vunpack.c.l.b16 %v2234
      %v2311 = vunpack.c.h.b16 %v2234
      %v2312 = vunpack.c.l.b16 %v2235
      %v2313 = vunpack.c.h.b16 %v2235
      %v2314 = vunpack.c.l.b16 %v2236
      %v2315 = vunpack.c.h.b16 %v2236
      %v2316 = vunpack.c.l.b16 %v2237
      %v2317 = vunpack.c.h.b16 %v2237
      %v2318 = vunpack.c.l.b16 %v2238
      %v2319 = vunpack.c.h.b16 %v2238
      %v2320 = vunpack.c.l.b16 %v2239
      %v2321 = vunpack.c.h.b16 %v2239
      %v2322 = vunpack.c.l.b16 %v2240
      %v2323 = vunpack.c.h.b16 %v2240
      %v2324 = vunpack.c.l.b16 %v2241
      %v2325 = vunpack.c.h.b16 %v2241
      %v2326 = vunpack.c.l.b16 %v2242
      %v2327 = vunpack.c.h.b16 %v2242
      %v2328 = vunpack.c.l.b16 %v2243
      %v2329 = vunpack.c.h.b16 %v2243
      %v2330 = vunpack.c.l.b16 %v2244
      %v2331 = vunpack.c.h.b16 %v2244
      %v2332 = vunpack.c.l.b16 %v2245
      %v2333 = vunpack.c.h.b16 %v2245
      %v2334 = vunpack.c.l.b16 %v2246
      %v2335 = vunpack.c.h.b16 %v2246
      %v2336 = vunpack.c.l.b16 %v2247
      %v2337 = vunpack.c.h.b16 %v2247
      %v2338 = vunpack.c.l.b16 %v2248
      %v2339 = vunpack.c.h.b16 %v2248
      %v2340 = vunpack.c.l.b16 %v2249
      %v2341 = vunpack.c.h.b16 %v2249
      %v2342 = vunpack.c.l.b16 %v2250
      %v2343 = vunpack.c.h.b16 %v2250
      %v2344 = vunpack.c.l.b16 %v2251
      %v2345 = vunpack.c.h.b16 %v2251
      %v2346 = vunpack.c.l.b16 %v2252
      %v2347 = vunpack.c.h.b16 %v2252
      %v2348 = vunpack.c.l.b16 %v2253
      %v2349 = vunpack.c.h.b16 %v2253
      %v2350 = vunpack.c.l.b16 %v2254
      %v2351 = vunpack.c.h.b16 %v2254
      %v2352 = vunpack.c.l.b16 %v2255
      %v2353 = vunpack.c.h.b16 %v2255
      %v2354 = vunpack.c.l.b16 %v2256
      %v2355 = vunpack.c.h.b16 %v2256
      %v2356 = vunpack.c.l.b16 %v2257
      %v2357 = vunpack.c.h.b16 %v2257
      %v2358 = vunpack.c.l.b16 %v2258
      %v2359 = vunpack.c.h.b16 %v2258
      %v2360 = vunpack.c.l.b16 %v2259
      %v2361 = vunpack.c.h.b16 %v2259
      %v2362 = vunpack.c.l.b16 %v2260
      %v2363 = vunpack.c.h.b16 %v2260
      %v2364 = vunpack.c.l.b16 %v2261
      %v2365 = vunpack.c.h.b16 %v2261
      %v2366 = vunpack.c.l.b16 %v2262
      %v2367 = vunpack.c.h.b16 %v2262
      %v2368 = vunpack.c.l.b16 %v2263
      %v2369 = vunpack.c.h.b16 %v2263
      %v2370 = vunpack.c.l.b16 %v2264
      %v2371 = vunpack.c.h.b16 %v2264
      %v2372 = vunpack.c.l.b16 %v2265
      %v2373 = vunpack.c.h.b16 %v2265
      %v2374 = vpack.c.b16 %v2312, %v2310
      %v2375 = vpack.c.b16 %v2313, %v2311
      %v2376 = vpack.c.b16 %v2316, %v2314
      %v2377 = vpack.c.b16 %v2317, %v2315
      %v2378 = vpack.c.b16 %v2320, %v2318
      %v2379 = vpack.c.b16 %v2321, %v2319
      %v2380 = vpack.c.b16 %v2324, %v2322
      %v2381 = vpack.c.b16 %v2325, %v2323
      %v2382 = vpack.c.b16 %v2328, %v2326
      %v2383 = vpack.c.b16 %v2329, %v2327
      %v2384 = vpack.c.b16 %v2332, %v2330
      %v2385 = vpack.c.b16 %v2333, %v2331
      %v2386 = vpack.c.b16 %v2336, %v2334
      %v2387 = vpack.c.b16 %v2337, %v2335
      %v2388 = vpack.c.b16 %v2340, %v2338
      %v2389 = vpack.c.b16 %v2341, %v2339
      %v2390 = vpack.c.b16 %v2344, %v2342
      %v2391 = vpack.c.b16 %v2345, %v2343
      %v2392 = vpack.c.b16 %v2348, %v2346
      %v2393 = vpack.c.b16 %v2349, %v2347
      %v2394 = vpack.c.b16 %v2352, %v2350
      %v2395 = vpack.c.b16 %v2353, %v2351
      %v2396 = vpack.c.b16 %v2356, %v2354
      %v2397 = vpack.c.b16 %v2357, %v2355
      %v2398 = vpack.c.b16 %v2360, %v2358
      %v2399 = vpack.c.b16 %v2361, %v2359
      %v2400 = vpack.c.b16 %v2364, %v2362
      %v2401 = vpack.c.b16 %v2365, %v2363
      %v2402 = vpack.c.b16 %v2368, %v2366
      %v2403 = vpack.c.b16 %v2369, %v2367
      %v2404 = vpack.c.b16 %v2372, %v2370
      %v2405 = vpack.c.b16 %v2373, %v2371
      %2438 = vmatprep.subr.bf16.mxu0 %v2375
      %2439 = vmatpush1.bf16.msra.mxu0 %v2374
      %2440 = vmatprep.subr.bf16.mxu0 %v2377
      %2441 = vmatpush1.bf16.msra.mxu0 %v2376
      %2442 = vmatprep.subr.bf16.mxu0 %v2379
      %2443 = vmatpush1.bf16.msra.mxu0 %v2378
      %2444 = vmatprep.subr.bf16.mxu0 %v2381
      %2445 = vmatpush1.bf16.msra.mxu0 %v2380
      %2446 = vmatprep.subr.bf16.mxu0 %v2383
      %2447 = vmatpush1.bf16.msra.mxu0 %v2382
      %2448 = vmatprep.subr.bf16.mxu0 %v2385
      %2449 = vmatpush1.bf16.msra.mxu0 %v2384
      %2450 = vmatprep.subr.bf16.mxu0 %v2387
      %2451 = vmatpush1.bf16.msra.mxu0 %v2386
      %2452 = vmatprep.subr.bf16.mxu0 %v2389
      %2453 = vmatpush1.bf16.msra.mxu0 %v2388
      %2454 = vmatprep.subr.bf16.mxu0 %v2391
      %2455 = vmatpush1.bf16.msra.mxu0 %v2390
      %2456 = vmatprep.subr.bf16.mxu0 %v2393
      %2457 = vmatpush1.bf16.msra.mxu0 %v2392
      %2458 = vmatprep.subr.bf16.mxu0 %v2395
      %2459 = vmatpush1.bf16.msra.mxu0 %v2394
      %2460 = vmatprep.subr.bf16.mxu0 %v2397
      %2461 = vmatpush1.bf16.msra.mxu0 %v2396
      %2462 = vmatprep.subr.bf16.mxu0 %v2399
      %2463 = vmatpush1.bf16.msra.mxu0 %v2398
      %2464 = vmatprep.subr.bf16.mxu0 %v2401
      %2465 = vmatpush1.bf16.msra.mxu0 %v2400
      %2466 = vmatprep.subr.bf16.mxu0 %v2403
      %2467 = vmatpush1.bf16.msra.mxu0 %v2402
      %2468 = vmatprep.subr.bf16.mxu0 %v2405
      %2469 = vmatpush1.bf16.msra.mxu0 %v2404
      %2470 = vmatprep.mubr.bf16.mxu0 %v2171
      %2471 = vmatmul.mubr.bf16.gmra.mrb[0].mxu0 %v2170
      %v2472 = vpop.f32.mrb[0].mxu0
      %v2473 = vadd.f32 %v2271, %v2472
      %v2474 = vpop.f32.mrb[0].mxu0
      %v2475 = vadd.f32 %v2275, %v2474
      %v2476 = vpop.f32.mrb[0].mxu0
      %v2477 = vadd.f32 %v2271, %v2476
      %v2478 = vpop.f32.mrb[0].mxu0
      %v2479 = vadd.f32 %v2275, %v2478
      %2480 = vmatprep.mubr.bf16.mxu0 %v2173
      %2481 = vmatmul.mubr.bf16.gmra.mrb[0].mxu0 %v2172
      %v2482 = vpop.f32.mrb[0].mxu0
      %v2483 = vadd.f32 %v2271, %v2482
      %v2484 = vpop.f32.mrb[0].mxu0
      %v2485 = vadd.f32 %v2275, %v2484
      %v2486 = vpop.f32.mrb[0].mxu0
      %v2487 = vadd.f32 %v2271, %v2486
      %v2488 = vpop.f32.mrb[0].mxu0
      %v2489 = vadd.f32 %v2275, %v2488
      %2490 = vmatprep.mubr.bf16.mxu0 %v2175
      %2491 = vmatmul.mubr.bf16.gmra.mrb[0].mxu0 %v2174
      %v2492 = vpop.f32.mrb[0].mxu0
      %v2493 = vadd.f32 %v2271, %v2492
      %v2494 = vpop.f32.mrb[0].mxu0
      %v2495 = vadd.f32 %v2275, %v2494
      %v2496 = vpop.f32.mrb[0].mxu0
      %v2497 = vadd.f32 %v2271, %v2496
      %v2498 = vpop.f32.mrb[0].mxu0
      %v2499 = vadd.f32 %v2275, %v2498
      %2500 = vmatprep.mubr.bf16.mxu0 %v2177
      %2501 = vmatmul.mubr.bf16.gmra.mrb[0].mxu0 %v2176
      %v2502 = vpop.f32.mrb[0].mxu0
      %v2503 = vadd.f32 %v2271, %v2502
      %v2504 = vpop.f32.mrb[0].mxu0
      %v2505 = vadd.f32 %v2275, %v2504
      %v2506 = vpop.f32.mrb[0].mxu0
      %v2507 = vadd.f32 %v2271, %v2506
      %v2508 = vpop.f32.mrb[0].mxu0
      %v2509 = vadd.f32 %v2275, %v2508
      %2510 = vmatprep.mubr.bf16.mxu0 %v2179
      %2511 = vmatmul.mubr.bf16.gmra.mrb[0].mxu0 %v2178
      %v2512 = vpop.f32.mrb[0].mxu0
      %v2513 = vadd.f32 %v2271, %v2512
      %v2514 = vpop.f32.mrb[0].mxu0
      %v2515 = vadd.f32 %v2275, %v2514
      %v2516 = vpop.f32.mrb[0].mxu0
      %v2517 = vadd.f32 %v2271, %v2516
      %v2518 = vpop.f32.mrb[0].mxu0
      %v2519 = vadd.f32 %v2275, %v2518
      %2520 = vmatprep.mubr.bf16.mxu0 %v2181
      %2521 = vmatmul.mubr.bf16.gmra.mrb[0].mxu0 %v2180
      %v2522 = vpop.f32.mrb[0].mxu0
      %v2523 = vadd.f32 %v2271, %v2522
      %v2524 = vpop.f32.mrb[0].mxu0
      %v2525 = vadd.f32 %v2275, %v2524
      %v2526 = vpop.f32.mrb[0].mxu0
      %v2527 = vadd.f32 %v2271, %v2526
      %v2528 = vpop.f32.mrb[0].mxu0
      %v2529 = vadd.f32 %v2275, %v2528
      %2530 = vmatprep.mubr.bf16.mxu0 %v2183
      %2531 = vmatmul.mubr.bf16.gmra.mrb[0].mxu0 %v2182
      %v2532 = vpop.f32.mrb[0].mxu0
      %v2533 = vadd.f32 %v2271, %v2532
      %v2534 = vpop.f32.mrb[0].mxu0
      %v2535 = vadd.f32 %v2275, %v2534
      %v2536 = vpop.f32.mrb[0].mxu0
      %v2537 = vadd.f32 %v2271, %v2536
      %v2538 = vpop.f32.mrb[0].mxu0
      %v2539 = vadd.f32 %v2275, %v2538
      %2540 = vmatprep.mubr.bf16.mxu0 %v2185
      %2541 = vmatmul.mubr.bf16.gmra.mrb[0].mxu0 %v2184
      %v2542 = vpop.f32.mrb[0].mxu0
      %v2543 = vadd.f32 %v2271, %v2542
      %v2544 = vpop.f32.mrb[0].mxu0
      %v2545 = vadd.f32 %v2275, %v2544
      %v2546 = vpop.f32.mrb[0].mxu0
      %v2547 = vadd.f32 %v2271, %v2546
      %v2548 = vpop.f32.mrb[0].mxu0
      %v2549 = vadd.f32 %v2275, %v2548
      %2550 = vmatprep.mubr.bf16.mxu0 %v2187
      %2551 = vmatmul.mubr.bf16.gmra.mrb[0].mxu0 %v2186
      %v2552 = vpop.f32.mrb[0].mxu0
      %v2553 = vadd.f32 %v2271, %v2552
      %v2554 = vpop.f32.mrb[0].mxu0
      %v2555 = vadd.f32 %v2275, %v2554
      %v2556 = vpop.f32.mrb[0].mxu0
      %v2557 = vadd.f32 %v2271, %v2556
      %v2558 = vpop.f32.mrb[0].mxu0
      %v2559 = vadd.f32 %v2275, %v2558
      %2560 = vmatprep.mubr.bf16.mxu0 %v2189
      %2561 = vmatmul.mubr.bf16.gmra.mrb[0].mxu0 %v2188
      %v2562 = vpop.f32.mrb[0].mxu0
      %v2563 = vadd.f32 %v2271, %v2562
      %v2564 = vpop.f32.mrb[0].mxu0
      %v2565 = vadd.f32 %v2275, %v2564
      %v2566 = vpop.f32.mrb[0].mxu0
      %v2567 = vadd.f32 %v2271, %v2566
      %v2568 = vpop.f32.mrb[0].mxu0
      %v2569 = vadd.f32 %v2275, %v2568
      %2570 = vmatprep.mubr.bf16.mxu0 %v2191
      %2571 = vmatmul.mubr.bf16.gmra.mrb[0].mxu0 %v2190
      %v2572 = vpop.f32.mrb[0].mxu0
      %v2573 = vadd.f32 %v2271, %v2572
      %v2574 = vpop.f32.mrb[0].mxu0
      %v2575 = vadd.f32 %v2275, %v2574
      %v2576 = vpop.f32.mrb[0].mxu0
      %v2577 = vadd.f32 %v2271, %v2576
      %v2578 = vpop.f32.mrb[0].mxu0
      %v2579 = vadd.f32 %v2275, %v2578
      %2580 = vmatprep.mubr.bf16.mxu0 %v2193
      %2581 = vmatmul.mubr.bf16.gmra.mrb[0].mxu0 %v2192
      %v2582 = vpop.f32.mrb[0].mxu0
      %v2583 = vadd.f32 %v2271, %v2582
      %v2584 = vpop.f32.mrb[0].mxu0
      %v2585 = vadd.f32 %v2275, %v2584
      %v2586 = vpop.f32.mrb[0].mxu0
      %v2587 = vadd.f32 %v2271, %v2586
      %v2588 = vpop.f32.mrb[0].mxu0
      %v2589 = vadd.f32 %v2275, %v2588
      %2590 = vmatprep.mubr.bf16.mxu0 %v2195
      %2591 = vmatmul.mubr.bf16.gmra.mrb[0].mxu0 %v2194
      %v2592 = vpop.f32.mrb[0].mxu0
      %v2593 = vadd.f32 %v2271, %v2592
      %v2594 = vpop.f32.mrb[0].mxu0
      %v2595 = vadd.f32 %v2275, %v2594
      %v2596 = vpop.f32.mrb[0].mxu0
      %v2597 = vadd.f32 %v2271, %v2596
      %v2598 = vpop.f32.mrb[0].mxu0
      %v2599 = vadd.f32 %v2275, %v2598
      %2600 = vmatprep.mubr.bf16.mxu0 %v2197
      %2601 = vmatmul.mubr.bf16.gmra.mrb[0].mxu0 %v2196
      %v2602 = vpop.f32.mrb[0].mxu0
      %v2603 = vadd.f32 %v2271, %v2602
      %v2604 = vpop.f32.mrb[0].mxu0
      %v2605 = vadd.f32 %v2275, %v2604
      %v2606 = vpop.f32.mrb[0].mxu0
      %v2607 = vadd.f32 %v2271, %v2606
      %v2608 = vpop.f32.mrb[0].mxu0
      %v2609 = vadd.f32 %v2275, %v2608
      %2610 = vmatprep.mubr.bf16.mxu0 %v2199
      %2611 = vmatmul.mubr.bf16.gmra.mrb[0].mxu0 %v2198
      %v2612 = vpop.f32.mrb[0].mxu0
      %v2613 = vadd.f32 %v2271, %v2612
      %v2614 = vpop.f32.mrb[0].mxu0
      %v2615 = vadd.f32 %v2275, %v2614
      %v2616 = vpop.f32.mrb[0].mxu0
      %v2617 = vadd.f32 %v2271, %v2616
      %v2618 = vpop.f32.mrb[0].mxu0
      %v2619 = vadd.f32 %v2275, %v2618
      %2620 = vmatprep.mubr.bf16.mxu0 %v2201
      %2621 = vmatmul.mubr.bf16.gmra.mrb[0].mxu0 %v2200
      %v2622 = vpop.f32.mrb[0].mxu0
      %v2623 = vadd.f32 %v2271, %v2622
      %v2624 = vpop.f32.mrb[0].mxu0
      %v2625 = vadd.f32 %v2275, %v2624
      %v2626 = vpop.f32.mrb[0].mxu0
      %v2627 = vadd.f32 %v2271, %v2626
      %v2628 = vpop.f32.mrb[0].mxu0
      %v2629 = vadd.f32 %v2275, %v2628
      %2630 = vmatprep.mubr.bf16.mxu0 %v2203
      %2631 = vmatmul.mubr.bf16.gmra.mrb[0].mxu0 %v2202
      %v2632 = vpop.f32.mrb[0].mxu0
      %v2633 = vadd.f32 %v2271, %v2632
      %v2634 = vpop.f32.mrb[0].mxu0
      %v2635 = vadd.f32 %v2275, %v2634
      %v2636 = vpop.f32.mrb[0].mxu0
      %v2637 = vadd.f32 %v2271, %v2636
      %v2638 = vpop.f32.mrb[0].mxu0
      %v2639 = vadd.f32 %v2275, %v2638
      %2640 = vmatprep.mubr.bf16.mxu0 %v2205
      %2641 = vmatmul.mubr.bf16.gmra.mrb[0].mxu0 %v2204
      %v2642 = vpop.f32.mrb[0].mxu0
      %v2643 = vadd.f32 %v2271, %v2642
      %v2644 = vpop.f32.mrb[0].mxu0
      %v2645 = vadd.f32 %v2275, %v2644
      %v2646 = vpop.f32.mrb[0].mxu0
      %v2647 = vadd.f32 %v2271, %v2646
      %v2648 = vpop.f32.mrb[0].mxu0
      %v2649 = vadd.f32 %v2275, %v2648
      %2650 = vmatprep.mubr.bf16.mxu0 %v2207
      %2651 = vmatmul.mubr.bf16.gmra.mrb[0].mxu0 %v2206
      %v2652 = vpop.f32.mrb[0].mxu0
      %v2653 = vadd.f32 %v2271, %v2652
      %v2654 = vpop.f32.mrb[0].mxu0
      %v2655 = vadd.f32 %v2275, %v2654
      %v2656 = vpop.f32.mrb[0].mxu0
      %v2657 = vadd.f32 %v2271, %v2656
      %v2658 = vpop.f32.mrb[0].mxu0
      %v2659 = vadd.f32 %v2275, %v2658
      %2660 = vmatprep.mubr.bf16.mxu0 %v2209
      %2661 = vmatmul.mubr.bf16.gmra.mrb[0].mxu0 %v2208
      %v2662 = vpop.f32.mrb[0].mxu0
      %v2663 = vadd.f32 %v2271, %v2662
      %v2664 = vpop.f32.mrb[0].mxu0
      %v2665 = vadd.f32 %v2275, %v2664
      %v2666 = vpop.f32.mrb[0].mxu0
      %v2667 = vadd.f32 %v2271, %v2666
      %v2668 = vpop.f32.mrb[0].mxu0
      %v2669 = vadd.f32 %v2275, %v2668
      %2670 = vmatprep.mubr.bf16.mxu0 %v2211
      %2671 = vmatmul.mubr.bf16.gmra.mrb[0].mxu0 %v2210
      %v2672 = vpop.f32.mrb[0].mxu0
      %v2673 = vadd.f32 %v2271, %v2672
      %v2674 = vpop.f32.mrb[0].mxu0
      %v2675 = vadd.f32 %v2275, %v2674
      %v2676 = vpop.f32.mrb[0].mxu0
      %v2677 = vadd.f32 %v2271, %v2676
      %v2678 = vpop.f32.mrb[0].mxu0
      %v2679 = vadd.f32 %v2275, %v2678
      %2680 = vmatprep.mubr.bf16.mxu0 %v2213
      %2681 = vmatmul.mubr.bf16.gmra.mrb[0].mxu0 %v2212
      %v2682 = vpop.f32.mrb[0].mxu0
      %v2683 = vadd.f32 %v2271, %v2682
      %v2684 = vpop.f32.mrb[0].mxu0
      %v2685 = vadd.f32 %v2275, %v2684
      %v2686 = vpop.f32.mrb[0].mxu0
      %v2687 = vadd.f32 %v2271, %v2686
      %v2688 = vpop.f32.mrb[0].mxu0
      %v2689 = vadd.f32 %v2275, %v2688
      %2690 = vmatprep.mubr.bf16.mxu0 %v2215
      %2691 = vmatmul.mubr.bf16.gmra.mrb[0].mxu0 %v2214
      %v2692 = vpop.f32.mrb[0].mxu0
      %v2693 = vadd.f32 %v2271, %v2692
      %v2694 = vpop.f32.mrb[0].mxu0
      %v2695 = vadd.f32 %v2275, %v2694
      %v2696 = vpop.f32.mrb[0].mxu0
      %v2697 = vadd.f32 %v2271, %v2696
      %v2698 = vpop.f32.mrb[0].mxu0
      %v2699 = vadd.f32 %v2275, %v2698
      %2700 = vmatprep.mubr.bf16.mxu0 %v2217
      %2701 = vmatmul.mubr.bf16.gmra.mrb[0].mxu0 %v2216
      %v2702 = vpop.f32.mrb[0].mxu0
      %v2703 = vadd.f32 %v2271, %v2702
      %v2704 = vpop.f32.mrb[0].mxu0
      %v2705 = vadd.f32 %v2275, %v2704
      %v2706 = vpop.f32.mrb[0].mxu0
      %v2707 = vadd.f32 %v2271, %v2706
      %v2708 = vpop.f32.mrb[0].mxu0
      %v2709 = vadd.f32 %v2275, %v2708
      %2710 = vmatprep.mubr.bf16.mxu0 %v2219
      %2711 = vmatmul.mubr.bf16.gmra.mrb[0].mxu0 %v2218
      %v2712 = vpop.f32.mrb[0].mxu0
      %v2713 = vadd.f32 %v2271, %v2712
      %v2714 = vpop.f32.mrb[0].mxu0
      %v2715 = vadd.f32 %v2275, %v2714
      %v2716 = vpop.f32.mrb[0].mxu0
      %v2717 = vadd.f32 %v2271, %v2716
      %v2718 = vpop.f32.mrb[0].mxu0
      %v2719 = vadd.f32 %v2275, %v2718
      %2720 = vmatprep.mubr.bf16.mxu0 %v2221
      %2721 = vmatmul.mubr.bf16.gmra.mrb[0].mxu0 %v2220
      %v2722 = vpop.f32.mrb[0].mxu0
      %v2723 = vadd.f32 %v2271, %v2722
      %v2724 = vpop.f32.mrb[0].mxu0
      %v2725 = vadd.f32 %v2275, %v2724
      %v2726 = vpop.f32.mrb[0].mxu0
      %v2727 = vadd.f32 %v2271, %v2726
      %v2728 = vpop.f32.mrb[0].mxu0
      %v2729 = vadd.f32 %v2275, %v2728
      %2730 = vmatprep.mubr.bf16.mxu0 %v2223
      %2731 = vmatmul.mubr.bf16.gmra.mrb[0].mxu0 %v2222
      %v2732 = vpop.f32.mrb[0].mxu0
      %v2733 = vadd.f32 %v2271, %v2732
      %v2734 = vpop.f32.mrb[0].mxu0
      %v2735 = vadd.f32 %v2275, %v2734
      %v2736 = vpop.f32.mrb[0].mxu0
      %v2737 = vadd.f32 %v2271, %v2736
      %v2738 = vpop.f32.mrb[0].mxu0
      %v2739 = vadd.f32 %v2275, %v2738
      %2740 = vmatprep.mubr.bf16.mxu0 %v2225
      %2741 = vmatmul.mubr.bf16.gmra.mrb[0].mxu0 %v2224
      %v2742 = vpop.f32.mrb[0].mxu0
      %v2743 = vadd.f32 %v2271, %v2742
      %v2744 = vpop.f32.mrb[0].mxu0
      %v2745 = vadd.f32 %v2275, %v2744
      %v2746 = vpop.f32.mrb[0].mxu0
      %v2747 = vadd.f32 %v2271, %v2746
      %v2748 = vpop.f32.mrb[0].mxu0
      %v2749 = vadd.f32 %v2275, %v2748
      %2750 = vmatprep.mubr.bf16.mxu0 %v2227
      %2751 = vmatmul.mubr.bf16.gmra.mrb[0].mxu0 %v2226
      %v2752 = vpop.f32.mrb[0].mxu0
      %v2753 = vadd.f32 %v2271, %v2752
      %v2754 = vpop.f32.mrb[0].mxu0
      %v2755 = vadd.f32 %v2275, %v2754
      %v2756 = vpop.f32.mrb[0].mxu0
      %v2757 = vadd.f32 %v2271, %v2756
      %v2758 = vpop.f32.mrb[0].mxu0
      %v2759 = vadd.f32 %v2275, %v2758
      %2760 = vmatprep.mubr.bf16.mxu0 %v2229
      %2761 = vmatmul.mubr.bf16.gmra.mrb[0].mxu0 %v2228
      %v2762 = vpop.f32.mrb[0].mxu0
      %v2763 = vadd.f32 %v2271, %v2762
      %v2764 = vpop.f32.mrb[0].mxu0
      %v2765 = vadd.f32 %v2275, %v2764
      %v2766 = vpop.f32.mrb[0].mxu0
      %v2767 = vadd.f32 %v2271, %v2766
      %v2768 = vpop.f32.mrb[0].mxu0
      %v2769 = vadd.f32 %v2275, %v2768
      %2770 = vmatprep.mubr.bf16.mxu0 %v2231
      %2771 = vmatmul.mubr.bf16.gmra.mrb[0].mxu0 %v2230
      %v2772 = vpop.f32.mrb[0].mxu0
      %v2773 = vadd.f32 %v2271, %v2772
      %v2774 = vpop.f32.mrb[0].mxu0
      %v2775 = vadd.f32 %v2275, %v2774
      %v2776 = vpop.f32.mrb[0].mxu0
      %v2777 = vadd.f32 %v2271, %v2776
      %v2778 = vpop.f32.mrb[0].mxu0
      %v2779 = vadd.f32 %v2275, %v2778
      %2780 = vmatprep.mubr.bf16.mxu0 %v2233
      %2781 = vmatmul.mubr.bf16.gmra.mrb[0].mxu0 %v2232
      %v2782 = vpop.f32.mrb[0].mxu0
      %v2783 = vadd.f32 %v2271, %v2782
      %v2784 = vpop.f32.mrb[0].mxu0
      %v2785 = vadd.f32 %v2275, %v2784
      %v2786 = vpop.f32.mrb[0].mxu0
      %v2787 = vadd.f32 %v2271, %v2786
      %v2788 = vpop.f32.mrb[0].mxu0
      %v2789 = vadd.f32 %v2275, %v2788
      %2790 = vdwg.mxu0
      %v2791 = vmul.f32 %v2473, 0.01
      %v2792 = vmul.f32 %v2475, 0.01
      %v2793 = vmul.f32 %v2477, 0.01
      %v2794 = vmul.f32 %v2479, 0.01
      %v2795 = vmul.f32 %v2483, 0.01
      %v2796 = vmul.f32 %v2485, 0.01
      %v2797 = vmul.f32 %v2487, 0.01
      %v2798 = vmul.f32 %v2489, 0.01
      %v2799 = vmul.f32 %v2493, 0.01
      %v2800 = vmul.f32 %v2495, 0.01
      %v2801 = vmul.f32 %v2497, 0.01
      %v2802 = vmul.f32 %v2499, 0.01
      %v2803 = vmul.f32 %v2503, 0.01
      %v2804 = vmul.f32 %v2505, 0.01
      %v2805 = vmul.f32 %v2507, 0.01
      %v2806 = vmul.f32 %v2509, 0.01
      %v2807 = vmul.f32 %v2513, 0.01
      %v2808 = vmul.f32 %v2515, 0.01
      %v2809 = vmul.f32 %v2517, 0.01
      %v2810 = vmul.f32 %v2519, 0.01
      %v2811 = vmul.f32 %v2523, 0.01
      %v2812 = vmul.f32 %v2525, 0.01
      %v2813 = vmul.f32 %v2527, 0.01
      %v2814 = vmul.f32 %v2529, 0.01
      %v2815 = vmul.f32 %v2533, 0.01
      %v2816 = vmul.f32 %v2535, 0.01
      %v2817 = vmul.f32 %v2537, 0.01
      %v2818 = vmul.f32 %v2539, 0.01
      %v2819 = vmul.f32 %v2543, 0.01
      %v2820 = vmul.f32 %v2545, 0.01
      %v2821 = vmul.f32 %v2547, 0.01
      %v2822 = vmul.f32 %v2549, 0.01
      %v2823 = vmul.f32 %v2553, 0.01
      %v2824 = vmul.f32 %v2555, 0.01
      %v2825 = vmul.f32 %v2557, 0.01
      %v2826 = vmul.f32 %v2559, 0.01
      %v2827 = vmul.f32 %v2563, 0.01
      %v2828 = vmul.f32 %v2565, 0.01
      %v2829 = vmul.f32 %v2567, 0.01
      %v2830 = vmul.f32 %v2569, 0.01
      %v2831 = vmul.f32 %v2573, 0.01
      %v2832 = vmul.f32 %v2575, 0.01
      %v2833 = vmul.f32 %v2577, 0.01
      %v2834 = vmul.f32 %v2579, 0.01
      %v2835 = vmul.f32 %v2583, 0.01
      %v2836 = vmul.f32 %v2585, 0.01
      %v2837 = vmul.f32 %v2587, 0.01
      %v2838 = vmul.f32 %v2589, 0.01
      %v2839 = vmul.f32 %v2593, 0.01
      %v2840 = vmul.f32 %v2595, 0.01
      %v2841 = vmul.f32 %v2597, 0.01
      %v2842 = vmul.f32 %v2599, 0.01
      %v2843 = vmul.f32 %v2603, 0.01
      %v2844 = vmul.f32 %v2605, 0.01
      %v2845 = vmul.f32 %v2607, 0.01
      %v2846 = vmul.f32 %v2609, 0.01
      %v2847 = vmul.f32 %v2613, 0.01
      %v2848 = vmul.f32 %v2615, 0.01
      %v2849 = vmul.f32 %v2617, 0.01
      %v2850 = vmul.f32 %v2619, 0.01
      %v2851 = vmul.f32 %v2623, 0.01
      %v2852 = vmul.f32 %v2625, 0.01
      %v2853 = vmul.f32 %v2627, 0.01
      %v2854 = vmul.f32 %v2629, 0.01
      %v2855 = vmul.f32 %v2633, 0.01
      %v2856 = vmul.f32 %v2635, 0.01
      %v2857 = vmul.f32 %v2637, 0.01
      %v2858 = vmul.f32 %v2639, 0.01
      %v2859 = vmul.f32 %v2643, 0.01
      %v2860 = vmul.f32 %v2645, 0.01
      %v2861 = vmul.f32 %v2647, 0.01
      %v2862 = vmul.f32 %v2649, 0.01
      %v2863 = vmul.f32 %v2653, 0.01
      %v2864 = vmul.f32 %v2655, 0.01
      %v2865 = vmul.f32 %v2657, 0.01
      %v2866 = vmul.f32 %v2659, 0.01
      %v2867 = vmul.f32 %v2663, 0.01
      %v2868 = vmul.f32 %v2665, 0.01
      %v2869 = vmul.f32 %v2667, 0.01
      %v2870 = vmul.f32 %v2669, 0.01
      %v2871 = vmul.f32 %v2673, 0.01
      %v2872 = vmul.f32 %v2675, 0.01
      %v2873 = vmul.f32 %v2677, 0.01
      %v2874 = vmul.f32 %v2679, 0.01
      %v2875 = vmul.f32 %v2683, 0.01
      %v2876 = vmul.f32 %v2685, 0.01
      %v2877 = vmul.f32 %v2687, 0.01
      %v2878 = vmul.f32 %v2689, 0.01
      %v2879 = vmul.f32 %v2693, 0.01
      %v2880 = vmul.f32 %v2695, 0.01
      %v2881 = vmul.f32 %v2697, 0.01
      %v2882 = vmul.f32 %v2699, 0.01
      %v2883 = vmul.f32 %v2703, 0.01
      %v2884 = vmul.f32 %v2705, 0.01
      %v2885 = vmul.f32 %v2707, 0.01
      %v2886 = vmul.f32 %v2709, 0.01
      %v2887 = vmul.f32 %v2713, 0.01
      %v2888 = vmul.f32 %v2715, 0.01
      %v2889 = vmul.f32 %v2717, 0.01
      %v2890 = vmul.f32 %v2719, 0.01
      %v2891 = vmul.f32 %v2723, 0.01
      %v2892 = vmul.f32 %v2725, 0.01
      %v2893 = vmul.f32 %v2727, 0.01
      %v2894 = vmul.f32 %v2729, 0.01
      %v2895 = vmul.f32 %v2733, 0.01
      %v2896 = vmul.f32 %v2735, 0.01
      %v2897 = vmul.f32 %v2737, 0.01
      %v2898 = vmul.f32 %v2739, 0.01
      %v2899 = vmul.f32 %v2743, 0.01
      %v2900 = vmul.f32 %v2745, 0.01
      %v2901 = vmul.f32 %v2747, 0.01
      %v2902 = vmul.f32 %v2749, 0.01
      %v2903 = vmul.f32 %v2753, 0.01
      %v2904 = vmul.f32 %v2755, 0.01
      %v2905 = vmul.f32 %v2757, 0.01
      %v2906 = vmul.f32 %v2759, 0.01
      %v2907 = vmul.f32 %v2763, 0.01
      %v2908 = vmul.f32 %v2765, 0.01
      %v2909 = vmul.f32 %v2767, 0.01
      %v2910 = vmul.f32 %v2769, 0.01
      %v2911 = vmul.f32 %v2773, 0.01
      %v2912 = vmul.f32 %v2775, 0.01
      %v2913 = vmul.f32 %v2777, 0.01
      %v2914 = vmul.f32 %v2779, 0.01
      %v2915 = vmul.f32 %v2783, 0.01
      %v2916 = vmul.f32 %v2785, 0.01
      %v2917 = vmul.f32 %v2787, 0.01
      %v2918 = vmul.f32 %v2789, 0.01
      %v2919 = vmax.f32 %v2473, %v2791
      %v2920 = vmax.f32 %v2475, %v2792
      %v2921 = vmax.f32 %v2477, %v2793
      %v2922 = vmax.f32 %v2479, %v2794
      %v2923 = vmax.f32 %v2483, %v2795
      %v2924 = vmax.f32 %v2485, %v2796
      %v2925 = vmax.f32 %v2487, %v2797
      %v2926 = vmax.f32 %v2489, %v2798
      %v2927 = vmax.f32 %v2493, %v2799
      %v2928 = vmax.f32 %v2495, %v2800
      %v2929 = vmax.f32 %v2497, %v2801
      %v2930 = vmax.f32 %v2499, %v2802
      %v2931 = vmax.f32 %v2503, %v2803
      %v2932 = vmax.f32 %v2505, %v2804
      %v2933 = vmax.f32 %v2507, %v2805
      %v2934 = vmax.f32 %v2509, %v2806
      %v2935 = vmax.f32 %v2513, %v2807
      %v2936 = vmax.f32 %v2515, %v2808
      %v2937 = vmax.f32 %v2517, %v2809
      %v2938 = vmax.f32 %v2519, %v2810
      %v2939 = vmax.f32 %v2523, %v2811
      %v2940 = vmax.f32 %v2525, %v2812
      %v2941 = vmax.f32 %v2527, %v2813
      %v2942 = vmax.f32 %v2529, %v2814
      %v2943 = vmax.f32 %v2533, %v2815
      %v2944 = vmax.f32 %v2535, %v2816
      %v2945 = vmax.f32 %v2537, %v2817
      %v2946 = vmax.f32 %v2539, %v2818
      %v2947 = vmax.f32 %v2543, %v2819
      %v2948 = vmax.f32 %v2545, %v2820
      %v2949 = vmax.f32 %v2547, %v2821
      %v2950 = vmax.f32 %v2549, %v2822
      %v2951 = vmax.f32 %v2553, %v2823
      %v2952 = vmax.f32 %v2555, %v2824
      %v2953 = vmax.f32 %v2557, %v2825
      %v2954 = vmax.f32 %v2559, %v2826
      %v2955 = vmax.f32 %v2563, %v2827
      %v2956 = vmax.f32 %v2565, %v2828
      %v2957 = vmax.f32 %v2567, %v2829
      %v2958 = vmax.f32 %v2569, %v2830
      %v2959 = vmax.f32 %v2573, %v2831
      %v2960 = vmax.f32 %v2575, %v2832
      %v2961 = vmax.f32 %v2577, %v2833
      %v2962 = vmax.f32 %v2579, %v2834
      %v2963 = vmax.f32 %v2583, %v2835
      %v2964 = vmax.f32 %v2585, %v2836
      %v2965 = vmax.f32 %v2587, %v2837
      %v2966 = vmax.f32 %v2589, %v2838
      %v2967 = vmax.f32 %v2593, %v2839
      %v2968 = vmax.f32 %v2595, %v2840
      %v2969 = vmax.f32 %v2597, %v2841
      %v2970 = vmax.f32 %v2599, %v2842
      %v2971 = vmax.f32 %v2603, %v2843
      %v2972 = vmax.f32 %v2605, %v2844
      %v2973 = vmax.f32 %v2607, %v2845
      %v2974 = vmax.f32 %v2609, %v2846
      %v2975 = vmax.f32 %v2613, %v2847
      %v2976 = vmax.f32 %v2615, %v2848
      %v2977 = vmax.f32 %v2617, %v2849
      %v2978 = vmax.f32 %v2619, %v2850
      %v2979 = vmax.f32 %v2623, %v2851
      %v2980 = vmax.f32 %v2625, %v2852
      %v2981 = vmax.f32 %v2627, %v2853
      %v2982 = vmax.f32 %v2629, %v2854
      %v2983 = vmax.f32 %v2633, %v2855
      %v2984 = vmax.f32 %v2635, %v2856
      %v2985 = vmax.f32 %v2637, %v2857
      %v2986 = vmax.f32 %v2639, %v2858
      %v2987 = vmax.f32 %v2643, %v2859
      %v2988 = vmax.f32 %v2645, %v2860
      %v2989 = vmax.f32 %v2647, %v2861
      %v2990 = vmax.f32 %v2649, %v2862
      %v2991 = vmax.f32 %v2653, %v2863
      %v2992 = vmax.f32 %v2655, %v2864
      %v2993 = vmax.f32 %v2657, %v2865
      %v2994 = vmax.f32 %v2659, %v2866
      %v2995 = vmax.f32 %v2663, %v2867
      %v2996 = vmax.f32 %v2665, %v2868
      %v2997 = vmax.f32 %v2667, %v2869
      %v2998 = vmax.f32 %v2669, %v2870
      %v2999 = vmax.f32 %v2673, %v2871
      %v3000 = vmax.f32 %v2675, %v2872
      %v3001 = vmax.f32 %v2677, %v2873
      %v3002 = vmax.f32 %v2679, %v2874
      %v3003 = vmax.f32 %v2683, %v2875
      %v3004 = vmax.f32 %v2685, %v2876
      %v3005 = vmax.f32 %v2687, %v2877
      %v3006 = vmax.f32 %v2689, %v2878
      %v3007 = vmax.f32 %v2693, %v2879
      %v3008 = vmax.f32 %v2695, %v2880
      %v3009 = vmax.f32 %v2697, %v2881
      %v3010 = vmax.f32 %v2699, %v2882
      %v3011 = vmax.f32 %v2703, %v2883
      %v3012 = vmax.f32 %v2705, %v2884
      %v3013 = vmax.f32 %v2707, %v2885
      %v3014 = vmax.f32 %v2709, %v2886
      %v3015 = vmax.f32 %v2713, %v2887
      %v3016 = vmax.f32 %v2715, %v2888
      %v3017 = vmax.f32 %v2717, %v2889
      %v3018 = vmax.f32 %v2719, %v2890
      %v3019 = vmax.f32 %v2723, %v2891
      %v3020 = vmax.f32 %v2725, %v2892
      %v3021 = vmax.f32 %v2727, %v2893
      %v3022 = vmax.f32 %v2729, %v2894
      %v3023 = vmax.f32 %v2733, %v2895
      %v3024 = vmax.f32 %v2735, %v2896
      %v3025 = vmax.f32 %v2737, %v2897
      %v3026 = vmax.f32 %v2739, %v2898
      %v3027 = vmax.f32 %v2743, %v2899
      %v3028 = vmax.f32 %v2745, %v2900
      %v3029 = vmax.f32 %v2747, %v2901
      %v3030 = vmax.f32 %v2749, %v2902
      %v3031 = vmax.f32 %v2753, %v2903
      %v3032 = vmax.f32 %v2755, %v2904
      %v3033 = vmax.f32 %v2757, %v2905
      %v3034 = vmax.f32 %v2759, %v2906
      %v3035 = vmax.f32 %v2763, %v2907
      %v3036 = vmax.f32 %v2765, %v2908
      %v3037 = vmax.f32 %v2767, %v2909
      %v3038 = vmax.f32 %v2769, %v2910
      %v3039 = vmax.f32 %v2773, %v2911
      %v3040 = vmax.f32 %v2775, %v2912
      %v3041 = vmax.f32 %v2777, %v2913
      %v3042 = vmax.f32 %v2779, %v2914
      %v3043 = vmax.f32 %v2783, %v2915
      %v3044 = vmax.f32 %v2785, %v2916
      %v3045 = vmax.f32 %v2787, %v2917
      %v3046 = vmax.f32 %v2789, %v2918
      %v3047 = vpack.c.bf16 %v2921, %v2919
      %v3048 = vpack.c.bf16 %v2922, %v2920
      %v3049 = vpack.c.bf16 %v2925, %v2923
      %v3050 = vpack.c.bf16 %v2926, %v2924
      %v3051 = vpack.c.bf16 %v2929, %v2927
      %v3052 = vpack.c.bf16 %v2930, %v2928
      %v3053 = vpack.c.bf16 %v2933, %v2931
      %v3054 = vpack.c.bf16 %v2934, %v2932
      %v3055 = vpack.c.bf16 %v2937, %v2935
      %v3056 = vpack.c.bf16 %v2938, %v2936
      %v3057 = vpack.c.bf16 %v2941, %v2939
      %v3058 = vpack.c.bf16 %v2942, %v2940
      %v3059 = vpack.c.bf16 %v2945, %v2943
      %v3060 = vpack.c.bf16 %v2946, %v2944
      %v3061 = vpack.c.bf16 %v2949, %v2947
      %v3062 = vpack.c.bf16 %v2950, %v2948
      %v3063 = vpack.c.bf16 %v2953, %v2951
      %v3064 = vpack.c.bf16 %v2954, %v2952
      %v3065 = vpack.c.bf16 %v2957, %v2955
      %v3066 = vpack.c.bf16 %v2958, %v2956
      %v3067 = vpack.c.bf16 %v2961, %v2959
      %v3068 = vpack.c.bf16 %v2962, %v2960
      %v3069 = vpack.c.bf16 %v2965, %v2963
      %v3070 = vpack.c.bf16 %v2966, %v2964
      %v3071 = vpack.c.bf16 %v2969, %v2967
      %v3072 = vpack.c.bf16 %v2970, %v2968
      %v3073 = vpack.c.bf16 %v2973, %v2971
      %v3074 = vpack.c.bf16 %v2974, %v2972
      %v3075 = vpack.c.bf16 %v2977, %v2975
      %v3076 = vpack.c.bf16 %v2978, %v2976
      %v3077 = vpack.c.bf16 %v2981, %v2979
      %v3078 = vpack.c.bf16 %v2982, %v2980
      %v3079 = vpack.c.bf16 %v2985, %v2983
      %v3080 = vpack.c.bf16 %v2986, %v2984
      %v3081 = vpack.c.bf16 %v2989, %v2987
      %v3082 = vpack.c.bf16 %v2990, %v2988
      %v3083 = vpack.c.bf16 %v2993, %v2991
      %v3084 = vpack.c.bf16 %v2994, %v2992
      %v3085 = vpack.c.bf16 %v2997, %v2995
      %v3086 = vpack.c.bf16 %v2998, %v2996
      %v3087 = vpack.c.bf16 %v3001, %v2999
      %v3088 = vpack.c.bf16 %v3002, %v3000
      %v3089 = vpack.c.bf16 %v3005, %v3003
      %v3090 = vpack.c.bf16 %v3006, %v3004
      %v3091 = vpack.c.bf16 %v3009, %v3007
      %v3092 = vpack.c.bf16 %v3010, %v3008
      %v3093 = vpack.c.bf16 %v3013, %v3011
      %v3094 = vpack.c.bf16 %v3014, %v3012
      %v3095 = vpack.c.bf16 %v3017, %v3015
      %v3096 = vpack.c.bf16 %v3018, %v3016
      %v3097 = vpack.c.bf16 %v3021, %v3019
      %v3098 = vpack.c.bf16 %v3022, %v3020
      %v3099 = vpack.c.bf16 %v3025, %v3023
      %v3100 = vpack.c.bf16 %v3026, %v3024
      %v3101 = vpack.c.bf16 %v3029, %v3027
      %v3102 = vpack.c.bf16 %v3030, %v3028
      %v3103 = vpack.c.bf16 %v3033, %v3031
      %v3104 = vpack.c.bf16 %v3034, %v3032
      %v3105 = vpack.c.bf16 %v3037, %v3035
      %v3106 = vpack.c.bf16 %v3038, %v3036
      %v3107 = vpack.c.bf16 %v3041, %v3039
      %v3108 = vpack.c.bf16 %v3042, %v3040
      %v3109 = vpack.c.bf16 %v3045, %v3043
      %v3110 = vpack.c.bf16 %v3046, %v3044
      %v3111 = vld [vmem:[%s7] sm:$0xf]
      %v3112 = vld [vmem:[%s7 + $0x4] sm:$0xf]
      %v3113 = vld [vmem:[%s7 + $0x8] sm:$0xf]
      %v3114 = vld [vmem:[%s7 + $0xc] sm:$0xf]
      %v3115 = vld [vmem:[%s7 + $0x10] sm:$0xf]
      %v3116 = vld [vmem:[%s7 + $0x14] sm:$0xf]
      %v3117 = vld [vmem:[%s7 + $0x18] sm:$0xf]
      %v3118 = vld [vmem:[%s7 + $0x1c] sm:$0xf]
      %v3119 = vld [vmem:[%s7 + $0x20] sm:$0xf]
      %v3120 = vld [vmem:[%s7 + $0x24] sm:$0xf]
      %v3121 = vld [vmem:[%s7 + $0x28] sm:$0xf]
      %v3122 = vld [vmem:[%s7 + $0x2c] sm:$0xf]
      %v3123 = vld [vmem:[%s7 + $0x30] sm:$0xf]
      %v3124 = vld [vmem:[%s7 + $0x34] sm:$0xf]
      %v3125 = vld [vmem:[%s7 + $0x38] sm:$0xf]
      %v3126 = vld [vmem:[%s7 + $0x3c] sm:$0xf]
      %v3127 = vld [vmem:[%s7 + $0x40] sm:$0xf]
      %v3128 = vld [vmem:[%s7 + $0x44] sm:$0xf]
      %v3129 = vld [vmem:[%s7 + $0x48] sm:$0xf]
      %v3130 = vld [vmem:[%s7 + $0x4c] sm:$0xf]
      %v3131 = vld [vmem:[%s7 + $0x50] sm:$0xf]
      %v3132 = vld [vmem:[%s7 + $0x54] sm:$0xf]
      %v3133 = vld [vmem:[%s7 + $0x58] sm:$0xf]
      %v3134 = vld [vmem:[%s7 + $0x5c] sm:$0xf]
      %v3135 = vld [vmem:[%s7 + $0x60] sm:$0xf]
      %v3136 = vld [vmem:[%s7 + $0x64] sm:$0xf]
      %v3137 = vld [vmem:[%s7 + $0x68] sm:$0xf]
      %v3138 = vld [vmem:[%s7 + $0x6c] sm:$0xf]
      %v3139 = vld [vmem:[%s7 + $0x70] sm:$0xf]
      %v3140 = vld [vmem:[%s7 + $0x74] sm:$0xf]
      %v3141 = vld [vmem:[%s7 + $0x78] sm:$0xf]
      %v3142 = vld [vmem:[%s7 + $0x7c] sm:$0xf]
      %s3143 = sld [smem:[#allocation2]]
      %v3144 = vstv %s3143
      %v3177 = vunpack.c.l.b16 %v3111
      %v3178 = vunpack.c.l.b16 %v3112
      %v3179 = vunpack.c.l.b16 %v3113
      %v3180 = vunpack.c.l.b16 %v3114
      %v3181 = vunpack.c.l.b16 %v3115
      %v3182 = vunpack.c.l.b16 %v3116
      %v3183 = vunpack.c.l.b16 %v3117
      %v3184 = vunpack.c.l.b16 %v3118
      %v3185 = vunpack.c.l.b16 %v3119
      %v3186 = vunpack.c.l.b16 %v3120
      %v3187 = vunpack.c.l.b16 %v3121
      %v3188 = vunpack.c.l.b16 %v3122
      %v3189 = vunpack.c.l.b16 %v3123
      %v3190 = vunpack.c.l.b16 %v3124
      %v3191 = vunpack.c.l.b16 %v3125
      %v3192 = vunpack.c.l.b16 %v3126
      %v3193 = vunpack.c.l.b16 %v3127
      %v3194 = vunpack.c.l.b16 %v3128
      %v3195 = vunpack.c.l.b16 %v3129
      %v3196 = vunpack.c.l.b16 %v3130
      %v3197 = vunpack.c.l.b16 %v3131
      %v3198 = vunpack.c.l.b16 %v3132
      %v3199 = vunpack.c.l.b16 %v3133
      %v3200 = vunpack.c.l.b16 %v3134
      %v3201 = vunpack.c.l.b16 %v3135
      %v3202 = vunpack.c.l.b16 %v3136
      %v3203 = vunpack.c.l.b16 %v3137
      %v3204 = vunpack.c.l.b16 %v3138
      %v3205 = vunpack.c.l.b16 %v3139
      %v3206 = vunpack.c.l.b16 %v3140
      %v3207 = vunpack.c.l.b16 %v3141
      %v3208 = vunpack.c.l.b16 %v3142
      %v3209 = vpack.c.b16 %v3178, %v3177
      %v3210 = vpack.c.b16 %v3180, %v3179
      %v3211 = vpack.c.b16 %v3182, %v3181
      %v3212 = vpack.c.b16 %v3184, %v3183
      %v3213 = vpack.c.b16 %v3186, %v3185
      %v3214 = vpack.c.b16 %v3188, %v3187
      %v3215 = vpack.c.b16 %v3190, %v3189
      %v3216 = vpack.c.b16 %v3192, %v3191
      %v3217 = vpack.c.b16 %v3194, %v3193
      %v3218 = vpack.c.b16 %v3196, %v3195
      %v3219 = vpack.c.b16 %v3198, %v3197
      %v3220 = vpack.c.b16 %v3200, %v3199
      %v3221 = vpack.c.b16 %v3202, %v3201
      %v3222 = vpack.c.b16 %v3204, %v3203
      %v3223 = vpack.c.b16 %v3206, %v3205
      %v3224 = vpack.c.b16 %v3208, %v3207
      %3241 = vmatprep.subr.bf16.mxu0 0
      %3242 = vmatpush1.bf16.msra.mxu0 %v3209
      %3243 = vmatprep.subr.bf16.mxu0 0
      %3244 = vmatpush1.bf16.msra.mxu0 %v3210
      %3245 = vmatprep.subr.bf16.mxu0 0
      %3246 = vmatpush1.bf16.msra.mxu0 %v3211
      %3247 = vmatprep.subr.bf16.mxu0 0
      %3248 = vmatpush1.bf16.msra.mxu0 %v3212
      %3249 = vmatprep.subr.bf16.mxu0 0
      %3250 = vmatpush1.bf16.msra.mxu0 %v3213
      %3251 = vmatprep.subr.bf16.mxu0 0
      %3252 = vmatpush1.bf16.msra.mxu0 %v3214
      %3253 = vmatprep.subr.bf16.mxu0 0
      %3254 = vmatpush1.bf16.msra.mxu0 %v3215
      %3255 = vmatprep.subr.bf16.mxu0 0
      %3256 = vmatpush1.bf16.msra.mxu0 %v3216
      %3257 = vmatprep.subr.bf16.mxu0 0
      %3258 = vmatpush1.bf16.msra.mxu0 %v3217
      %3259 = vmatprep.subr.bf16.mxu0 0
      %3260 = vmatpush1.bf16.msra.mxu0 %v3218
      %3261 = vmatprep.subr.bf16.mxu0 0
      %3262 = vmatpush1.bf16.msra.mxu0 %v3219
      %3263 = vmatprep.subr.bf16.mxu0 0
      %3264 = vmatpush1.bf16.msra.mxu0 %v3220
      %3265 = vmatprep.subr.bf16.mxu0 0
      %3266 = vmatpush1.bf16.msra.mxu0 %v3221
      %3267 = vmatprep.subr.bf16.mxu0 0
      %3268 = vmatpush1.bf16.msra.mxu0 %v3222
      %3269 = vmatprep.subr.bf16.mxu0 0
      %3270 = vmatpush1.bf16.msra.mxu0 %v3223
      %3271 = vmatprep.subr.bf16.mxu0 0
      %3272 = vmatpush1.bf16.msra.mxu0 %v3224
      %3273 = vmatprep.mubr.bf16.mxu0 %v3048
      %3274 = vmatmul.mubr.bf16.gmra.mrb[0].mxu0 %v3047
      %v3275 = vpop.f32.mrb[0].mxu0
      %v3276 = vadd.f32 %v3144, %v3275
      %v3277 = vpop.f32.mrb[0].mxu0
      %v3278 = vpop.f32.mrb[0].mxu0
      %v3279 = vadd.f32 %v3144, %v3278
      %v3280 = vpop.f32.mrb[0].mxu0
      %3281 = vmatprep.mubr.bf16.mxu0 %v3050
      %3282 = vmatmul.mubr.bf16.gmra.mrb[0].mxu0 %v3049
      %v3283 = vpop.f32.mrb[0].mxu0
      %v3284 = vadd.f32 %v3144, %v3283
      %v3285 = vpop.f32.mrb[0].mxu0
      %v3286 = vpop.f32.mrb[0].mxu0
      %v3287 = vadd.f32 %v3144, %v3286
      %v3288 = vpop.f32.mrb[0].mxu0
      %3289 = vmatprep.mubr.bf16.mxu0 %v3052
      %3290 = vmatmul.mubr.bf16.gmra.mrb[0].mxu0 %v3051
      %v3291 = vpop.f32.mrb[0].mxu0
      %v3292 = vadd.f32 %v3144, %v3291
      %v3293 = vpop.f32.mrb[0].mxu0
      %v3294 = vpop.f32.mrb[0].mxu0
      %v3295 = vadd.f32 %v3144, %v3294
      %v3296 = vpop.f32.mrb[0].mxu0
      %3297 = vmatprep.mubr.bf16.mxu0 %v3054
      %3298 = vmatmul.mubr.bf16.gmra.mrb[0].mxu0 %v3053
      %v3299 = vpop.f32.mrb[0].mxu0
      %v3300 = vadd.f32 %v3144, %v3299
      %v3301 = vpop.f32.mrb[0].mxu0
      %v3302 = vpop.f32.mrb[0].mxu0
      %v3303 = vadd.f32 %v3144, %v3302
      %v3304 = vpop.f32.mrb[0].mxu0
      %3305 = vmatprep.mubr.bf16.mxu0 %v3056
      %3306 = vmatmul.mubr.bf16.gmra.mrb[0].mxu0 %v3055
      %v3307 = vpop.f32.mrb[0].mxu0
      %v3308 = vadd.f32 %v3144, %v3307
      %v3309 = vpop.f32.mrb[0].mxu0
      %v3310 = vpop.f32.mrb[0].mxu0
      %v3311 = vadd.f32 %v3144, %v3310
      %v3312 = vpop.f32.mrb[0].mxu0
      %3313 = vmatprep.mubr.bf16.mxu0 %v3058
      %3314 = vmatmul.mubr.bf16.gmra.mrb[0].mxu0 %v3057
      %v3315 = vpop.f32.mrb[0].mxu0
      %v3316 = vadd.f32 %v3144, %v3315
      %v3317 = vpop.f32.mrb[0].mxu0
      %v3318 = vpop.f32.mrb[0].mxu0
      %v3319 = vadd.f32 %v3144, %v3318
      %v3320 = vpop.f32.mrb[0].mxu0
      %3321 = vmatprep.mubr.bf16.mxu0 %v3060
      %3322 = vmatmul.mubr.bf16.gmra.mrb[0].mxu0 %v3059
      %v3323 = vpop.f32.mrb[0].mxu0
      %v3324 = vadd.f32 %v3144, %v3323
      %v3325 = vpop.f32.mrb[0].mxu0
      %v3326 = vpop.f32.mrb[0].mxu0
      %v3327 = vadd.f32 %v3144, %v3326
      %v3328 = vpop.f32.mrb[0].mxu0
      %3329 = vmatprep.mubr.bf16.mxu0 %v3062
      %3330 = vmatmul.mubr.bf16.gmra.mrb[0].mxu0 %v3061
      %v3331 = vpop.f32.mrb[0].mxu0
      %v3332 = vadd.f32 %v3144, %v3331
      %v3333 = vpop.f32.mrb[0].mxu0
      %v3334 = vpop.f32.mrb[0].mxu0
      %v3335 = vadd.f32 %v3144, %v3334
      %v3336 = vpop.f32.mrb[0].mxu0
      %3337 = vmatprep.mubr.bf16.mxu0 %v3064
      %3338 = vmatmul.mubr.bf16.gmra.mrb[0].mxu0 %v3063
      %v3339 = vpop.f32.mrb[0].mxu0
      %v3340 = vadd.f32 %v3144, %v3339
      %v3341 = vpop.f32.mrb[0].mxu0
      %v3342 = vpop.f32.mrb[0].mxu0
      %v3343 = vadd.f32 %v3144, %v3342
      %v3344 = vpop.f32.mrb[0].mxu0
      %3345 = vmatprep.mubr.bf16.mxu0 %v3066
      %3346 = vmatmul.mubr.bf16.gmra.mrb[0].mxu0 %v3065
      %v3347 = vpop.f32.mrb[0].mxu0
      %v3348 = vadd.f32 %v3144, %v3347
      %v3349 = vpop.f32.mrb[0].mxu0
      %v3350 = vpop.f32.mrb[0].mxu0
      %v3351 = vadd.f32 %v3144, %v3350
      %v3352 = vpop.f32.mrb[0].mxu0
      %3353 = vmatprep.mubr.bf16.mxu0 %v3068
      %3354 = vmatmul.mubr.bf16.gmra.mrb[0].mxu0 %v3067
      %v3355 = vpop.f32.mrb[0].mxu0
      %v3356 = vadd.f32 %v3144, %v3355
      %v3357 = vpop.f32.mrb[0].mxu0
      %v3358 = vpop.f32.mrb[0].mxu0
      %v3359 = vadd.f32 %v3144, %v3358
      %v3360 = vpop.f32.mrb[0].mxu0
      %3361 = vmatprep.mubr.bf16.mxu0 %v3070
      %3362 = vmatmul.mubr.bf16.gmra.mrb[0].mxu0 %v3069
      %v3363 = vpop.f32.mrb[0].mxu0
      %v3364 = vadd.f32 %v3144, %v3363
      %v3365 = vpop.f32.mrb[0].mxu0
      %v3366 = vpop.f32.mrb[0].mxu0
      %v3367 = vadd.f32 %v3144, %v3366
      %v3368 = vpop.f32.mrb[0].mxu0
      %3369 = vmatprep.mubr.bf16.mxu0 %v3072
      %3370 = vmatmul.mubr.bf16.gmra.mrb[0].mxu0 %v3071
      %v3371 = vpop.f32.mrb[0].mxu0
      %v3372 = vadd.f32 %v3144, %v3371
      %v3373 = vpop.f32.mrb[0].mxu0
      %v3374 = vpop.f32.mrb[0].mxu0
      %v3375 = vadd.f32 %v3144, %v3374
      %v3376 = vpop.f32.mrb[0].mxu0
      %3377 = vmatprep.mubr.bf16.mxu0 %v3074
      %3378 = vmatmul.mubr.bf16.gmra.mrb[0].mxu0 %v3073
      %v3379 = vpop.f32.mrb[0].mxu0
      %v3380 = vadd.f32 %v3144, %v3379
      %v3381 = vpop.f32.mrb[0].mxu0
      %v3382 = vpop.f32.mrb[0].mxu0
      %v3383 = vadd.f32 %v3144, %v3382
      %v3384 = vpop.f32.mrb[0].mxu0
      %3385 = vmatprep.mubr.bf16.mxu0 %v3076
      %3386 = vmatmul.mubr.bf16.gmra.mrb[0].mxu0 %v3075
      %v3387 = vpop.f32.mrb[0].mxu0
      %v3388 = vadd.f32 %v3144, %v3387
      %v3389 = vpop.f32.mrb[0].mxu0
      %v3390 = vpop.f32.mrb[0].mxu0
      %v3391 = vadd.f32 %v3144, %v3390
      %v3392 = vpop.f32.mrb[0].mxu0
      %3393 = vmatprep.mubr.bf16.mxu0 %v3078
      %3394 = vmatmul.mubr.bf16.gmra.mrb[0].mxu0 %v3077
      %v3395 = vpop.f32.mrb[0].mxu0
      %v3396 = vadd.f32 %v3144, %v3395
      %v3397 = vpop.f32.mrb[0].mxu0
      %v3398 = vpop.f32.mrb[0].mxu0
      %v3399 = vadd.f32 %v3144, %v3398
      %v3400 = vpop.f32.mrb[0].mxu0
      %3401 = vmatprep.mubr.bf16.mxu0 %v3080
      %3402 = vmatmul.mubr.bf16.gmra.mrb[0].mxu0 %v3079
      %v3403 = vpop.f32.mrb[0].mxu0
      %v3404 = vadd.f32 %v3144, %v3403
      %v3405 = vpop.f32.mrb[0].mxu0
      %v3406 = vpop.f32.mrb[0].mxu0
      %v3407 = vadd.f32 %v3144, %v3406
      %v3408 = vpop.f32.mrb[0].mxu0
      %3409 = vmatprep.mubr.bf16.mxu0 %v3082
      %3410 = vmatmul.mubr.bf16.gmra.mrb[0].mxu0 %v3081
      %v3411 = vpop.f32.mrb[0].mxu0
      %v3412 = vadd.f32 %v3144, %v3411
      %v3413 = vpop.f32.mrb[0].mxu0
      %v3414 = vpop.f32.mrb[0].mxu0
      %v3415 = vadd.f32 %v3144, %v3414
      %v3416 = vpop.f32.mrb[0].mxu0
      %3417 = vmatprep.mubr.bf16.mxu0 %v3084
      %3418 = vmatmul.mubr.bf16.gmra.mrb[0].mxu0 %v3083
      %v3419 = vpop.f32.mrb[0].mxu0
      %v3420 = vadd.f32 %v3144, %v3419
      %v3421 = vpop.f32.mrb[0].mxu0
      %v3422 = vpop.f32.mrb[0].mxu0
      %v3423 = vadd.f32 %v3144, %v3422
      %v3424 = vpop.f32.mrb[0].mxu0
      %3425 = vmatprep.mubr.bf16.mxu0 %v3086
      %3426 = vmatmul.mubr.bf16.gmra.mrb[0].mxu0 %v3085
      %v3427 = vpop.f32.mrb[0].mxu0
      %v3428 = vadd.f32 %v3144, %v3427
      %v3429 = vpop.f32.mrb[0].mxu0
      %v3430 = vpop.f32.mrb[0].mxu0
      %v3431 = vadd.f32 %v3144, %v3430
      %v3432 = vpop.f32.mrb[0].mxu0
      %3433 = vmatprep.mubr.bf16.mxu0 %v3088
      %3434 = vmatmul.mubr.bf16.gmra.mrb[0].mxu0 %v3087
      %v3435 = vpop.f32.mrb[0].mxu0
      %v3436 = vadd.f32 %v3144, %v3435
      %v3437 = vpop.f32.mrb[0].mxu0
      %v3438 = vpop.f32.mrb[0].mxu0
      %v3439 = vadd.f32 %v3144, %v3438
      %v3440 = vpop.f32.mrb[0].mxu0
      %3441 = vmatprep.mubr.bf16.mxu0 %v3090
      %3442 = vmatmul.mubr.bf16.gmra.mrb[0].mxu0 %v3089
      %v3443 = vpop.f32.mrb[0].mxu0
      %v3444 = vadd.f32 %v3144, %v3443
      %v3445 = vpop.f32.mrb[0].mxu0
      %v3446 = vpop.f32.mrb[0].mxu0
      %v3447 = vadd.f32 %v3144, %v3446
      %v3448 = vpop.f32.mrb[0].mxu0
      %3449 = vmatprep.mubr.bf16.mxu0 %v3092
      %3450 = vmatmul.mubr.bf16.gmra.mrb[0].mxu0 %v3091
      %v3451 = vpop.f32.mrb[0].mxu0
      %v3452 = vadd.f32 %v3144, %v3451
      %v3453 = vpop.f32.mrb[0].mxu0
      %v3454 = vpop.f32.mrb[0].mxu0
      %v3455 = vadd.f32 %v3144, %v3454
      %v3456 = vpop.f32.mrb[0].mxu0
      %3457 = vmatprep.mubr.bf16.mxu0 %v3094
      %3458 = vmatmul.mubr.bf16.gmra.mrb[0].mxu0 %v3093
      %v3459 = vpop.f32.mrb[0].mxu0
      %v3460 = vadd.f32 %v3144, %v3459
      %v3461 = vpop.f32.mrb[0].mxu0
      %v3462 = vpop.f32.mrb[0].mxu0
      %v3463 = vadd.f32 %v3144, %v3462
      %v3464 = vpop.f32.mrb[0].mxu0
      %3465 = vmatprep.mubr.bf16.mxu0 %v3096
      %3466 = vmatmul.mubr.bf16.gmra.mrb[0].mxu0 %v3095
      %v3467 = vpop.f32.mrb[0].mxu0
      %v3468 = vadd.f32 %v3144, %v3467
      %v3469 = vpop.f32.mrb[0].mxu0
      %v3470 = vpop.f32.mrb[0].mxu0
      %v3471 = vadd.f32 %v3144, %v3470
      %v3472 = vpop.f32.mrb[0].mxu0
      %3473 = vmatprep.mubr.bf16.mxu0 %v3098
      %3474 = vmatmul.mubr.bf16.gmra.mrb[0].mxu0 %v3097
      %v3475 = vpop.f32.mrb[0].mxu0
      %v3476 = vadd.f32 %v3144, %v3475
      %v3477 = vpop.f32.mrb[0].mxu0
      %v3478 = vpop.f32.mrb[0].mxu0
      %v3479 = vadd.f32 %v3144, %v3478
      %v3480 = vpop.f32.mrb[0].mxu0
      %3481 = vmatprep.mubr.bf16.mxu0 %v3100
      %3482 = vmatmul.mubr.bf16.gmra.mrb[0].mxu0 %v3099
      %v3483 = vpop.f32.mrb[0].mxu0
      %v3484 = vadd.f32 %v3144, %v3483
      %v3485 = vpop.f32.mrb[0].mxu0
      %v3486 = vpop.f32.mrb[0].mxu0
      %v3487 = vadd.f32 %v3144, %v3486
      %v3488 = vpop.f32.mrb[0].mxu0
      %3489 = vmatprep.mubr.bf16.mxu0 %v3102
      %3490 = vmatmul.mubr.bf16.gmra.mrb[0].mxu0 %v3101
      %v3491 = vpop.f32.mrb[0].mxu0
      %v3492 = vadd.f32 %v3144, %v3491
      %v3493 = vpop.f32.mrb[0].mxu0
      %v3494 = vpop.f32.mrb[0].mxu0
      %v3495 = vadd.f32 %v3144, %v3494
      %v3496 = vpop.f32.mrb[0].mxu0
      %3497 = vmatprep.mubr.bf16.mxu0 %v3104
      %3498 = vmatmul.mubr.bf16.gmra.mrb[0].mxu0 %v3103
      %v3499 = vpop.f32.mrb[0].mxu0
      %v3500 = vadd.f32 %v3144, %v3499
      %v3501 = vpop.f32.mrb[0].mxu0
      %v3502 = vpop.f32.mrb[0].mxu0
      %v3503 = vadd.f32 %v3144, %v3502
      %v3504 = vpop.f32.mrb[0].mxu0
      %3505 = vmatprep.mubr.bf16.mxu0 %v3106
      %3506 = vmatmul.mubr.bf16.gmra.mrb[0].mxu0 %v3105
      %v3507 = vpop.f32.mrb[0].mxu0
      %v3508 = vadd.f32 %v3144, %v3507
      %v3509 = vpop.f32.mrb[0].mxu0
      %v3510 = vpop.f32.mrb[0].mxu0
      %v3511 = vadd.f32 %v3144, %v3510
      %v3512 = vpop.f32.mrb[0].mxu0
      %3513 = vmatprep.mubr.bf16.mxu0 %v3108
      %3514 = vmatmul.mubr.bf16.gmra.mrb[0].mxu0 %v3107
      %v3515 = vpop.f32.mrb[0].mxu0
      %v3516 = vadd.f32 %v3144, %v3515
      %v3517 = vpop.f32.mrb[0].mxu0
      %v3518 = vpop.f32.mrb[0].mxu0
      %v3519 = vadd.f32 %v3144, %v3518
      %v3520 = vpop.f32.mrb[0].mxu0
      %3521 = vmatprep.mubr.bf16.mxu0 %v3110
      %3522 = vmatmul.mubr.bf16.gmra.mrb[0].mxu0 %v3109
      %v3523 = vpop.f32.mrb[0].mxu0
      %v3524 = vadd.f32 %v3144, %v3523
      %v3525 = vpop.f32.mrb[0].mxu0
      %v3526 = vpop.f32.mrb[0].mxu0
      %v3527 = vadd.f32 %v3144, %v3526
      %v3528 = vpop.f32.mrb[0].mxu0
      %3529 = vdwg.mxu0
      %v3530 = vxor.u32 %v3276, 2147483648
      %v3531 = vxor.u32 %v3279, 2147483648
      %v3532 = vxor.u32 %v3284, 2147483648
      %v3533 = vxor.u32 %v3287, 2147483648
      %v3534 = vxor.u32 %v3292, 2147483648
      %v3535 = vxor.u32 %v3295, 2147483648
      %v3536 = vxor.u32 %v3300, 2147483648
      %v3537 = vxor.u32 %v3303, 2147483648
      %v3538 = vxor.u32 %v3308, 2147483648
      %v3539 = vxor.u32 %v3311, 2147483648
      %v3540 = vxor.u32 %v3316, 2147483648
      %v3541 = vxor.u32 %v3319, 2147483648
      %v3542 = vxor.u32 %v3324, 2147483648
      %v3543 = vxor.u32 %v3327, 2147483648
      %v3544 = vxor.u32 %v3332, 2147483648
      %v3545 = vxor.u32 %v3335, 2147483648
      %v3546 = vxor.u32 %v3340, 2147483648
      %v3547 = vxor.u32 %v3343, 2147483648
      %v3548 = vxor.u32 %v3348, 2147483648
      %v3549 = vxor.u32 %v3351, 2147483648
      %v3550 = vxor.u32 %v3356, 2147483648
      %v3551 = vxor.u32 %v3359, 2147483648
      %v3552 = vxor.u32 %v3364, 2147483648
      %v3553 = vxor.u32 %v3367, 2147483648
      %v3554 = vxor.u32 %v3372, 2147483648
      %v3555 = vxor.u32 %v3375, 2147483648
      %v3556 = vxor.u32 %v3380, 2147483648
      %v3557 = vxor.u32 %v3383, 2147483648
      %v3558 = vxor.u32 %v3388, 2147483648
      %v3559 = vxor.u32 %v3391, 2147483648
      %v3560 = vxor.u32 %v3396, 2147483648
      %v3561 = vxor.u32 %v3399, 2147483648
      %v3562 = vxor.u32 %v3404, 2147483648
      %v3563 = vxor.u32 %v3407, 2147483648
      %v3564 = vxor.u32 %v3412, 2147483648
      %v3565 = vxor.u32 %v3415, 2147483648
      %v3566 = vxor.u32 %v3420, 2147483648
      %v3567 = vxor.u32 %v3423, 2147483648
      %v3568 = vxor.u32 %v3428, 2147483648
      %v3569 = vxor.u32 %v3431, 2147483648
      %v3570 = vxor.u32 %v3436, 2147483648
      %v3571 = vxor.u32 %v3439, 2147483648
      %v3572 = vxor.u32 %v3444, 2147483648
      %v3573 = vxor.u32 %v3447, 2147483648
      %v3574 = vxor.u32 %v3452, 2147483648
      %v3575 = vxor.u32 %v3455, 2147483648
      %v3576 = vxor.u32 %v3460, 2147483648
      %v3577 = vxor.u32 %v3463, 2147483648
      %v3578 = vxor.u32 %v3468, 2147483648
      %v3579 = vxor.u32 %v3471, 2147483648
      %v3580 = vxor.u32 %v3476, 2147483648
      %v3581 = vxor.u32 %v3479, 2147483648
      %v3582 = vxor.u32 %v3484, 2147483648
      %v3583 = vxor.u32 %v3487, 2147483648
      %v3584 = vxor.u32 %v3492, 2147483648
      %v3585 = vxor.u32 %v3495, 2147483648
      %v3586 = vxor.u32 %v3500, 2147483648
      %v3587 = vxor.u32 %v3503, 2147483648
      %v3588 = vxor.u32 %v3508, 2147483648
      %v3589 = vxor.u32 %v3511, 2147483648
      %v3590 = vxor.u32 %v3516, 2147483648
      %v3591 = vxor.u32 %v3519, 2147483648
      %v3592 = vxor.u32 %v3524, 2147483648
      %v3593 = vxor.u32 %v3527, 2147483648
      %v3594 = vmul.f32 %v3530, 1.442695
      %v3595 = vpow.pop %v3594
      %v3596 = vmul.f32 %v3531, 1.442695
      %v3597 = vpow.pop %v3596
      %v3598 = vmul.f32 %v3532, 1.442695
      %v3599 = vpow.pop %v3598
      %v3600 = vmul.f32 %v3533, 1.442695
      %v3601 = vpow.pop %v3600
      %v3602 = vmul.f32 %v3534, 1.442695
      %v3603 = vpow.pop %v3602
      %v3604 = vmul.f32 %v3535, 1.442695
      %v3605 = vpow.pop %v3604
      %v3606 = vmul.f32 %v3536, 1.442695
      %v3607 = vpow.pop %v3606
      %v3608 = vmul.f32 %v3537, 1.442695
      %v3609 = vpow.pop %v3608
      %v3610 = vmul.f32 %v3538, 1.442695
      %v3611 = vpow.pop %v3610
      %v3612 = vmul.f32 %v3539, 1.442695
      %v3613 = vpow.pop %v3612
      %v3614 = vmul.f32 %v3540, 1.442695
      %v3615 = vpow.pop %v3614
      %v3616 = vmul.f32 %v3541, 1.442695
      %v3617 = vpow.pop %v3616
      %v3618 = vmul.f32 %v3542, 1.442695
      %v3619 = vpow.pop %v3618
      %v3620 = vmul.f32 %v3543, 1.442695
      %v3621 = vpow.pop %v3620
      %v3622 = vmul.f32 %v3544, 1.442695
      %v3623 = vpow.pop %v3622
      %v3624 = vmul.f32 %v3545, 1.442695
      %v3625 = vpow.pop %v3624
      %v3626 = vmul.f32 %v3546, 1.442695
      %v3627 = vpow.pop %v3626
      %v3628 = vmul.f32 %v3547, 1.442695
      %v3629 = vpow.pop %v3628
      %v3630 = vmul.f32 %v3548, 1.442695
      %v3631 = vpow.pop %v3630
      %v3632 = vmul.f32 %v3549, 1.442695
      %v3633 = vpow.pop %v3632
      %v3634 = vmul.f32 %v3550, 1.442695
      %v3635 = vpow.pop %v3634
      %v3636 = vmul.f32 %v3551, 1.442695
      %v3637 = vpow.pop %v3636
      %v3638 = vmul.f32 %v3552, 1.442695
      %v3639 = vpow.pop %v3638
      %v3640 = vmul.f32 %v3553, 1.442695
      %v3641 = vpow.pop %v3640
      %v3642 = vmul.f32 %v3554, 1.442695
      %v3643 = vpow.pop %v3642
      %v3644 = vmul.f32 %v3555, 1.442695
      %v3645 = vpow.pop %v3644
      %v3646 = vmul.f32 %v3556, 1.442695
      %v3647 = vpow.pop %v3646
      %v3648 = vmul.f32 %v3557, 1.442695
      %v3649 = vpow.pop %v3648
      %v3650 = vmul.f32 %v3558, 1.442695
      %v3651 = vpow.pop %v3650
      %v3652 = vmul.f32 %v3559, 1.442695
      %v3653 = vpow.pop %v3652
      %v3654 = vmul.f32 %v3560, 1.442695
      %v3655 = vpow.pop %v3654
      %v3656 = vmul.f32 %v3561, 1.442695
      %v3657 = vpow.pop %v3656
      %v3658 = vmul.f32 %v3562, 1.442695
      %v3659 = vpow.pop %v3658
      %v3660 = vmul.f32 %v3563, 1.442695
      %v3661 = vpow.pop %v3660
      %v3662 = vmul.f32 %v3564, 1.442695
      %v3663 = vpow.pop %v3662
      %v3664 = vmul.f32 %v3565, 1.442695
      %v3665 = vpow.pop %v3664
      %v3666 = vmul.f32 %v3566, 1.442695
      %v3667 = vpow.pop %v3666
      %v3668 = vmul.f32 %v3567, 1.442695
      %v3669 = vpow.pop %v3668
      %v3670 = vmul.f32 %v3568, 1.442695
      %v3671 = vpow.pop %v3670
      %v3672 = vmul.f32 %v3569, 1.442695
      %v3673 = vpow.pop %v3672
      %v3674 = vmul.f32 %v3570, 1.442695
      %v3675 = vpow.pop %v3674
      %v3676 = vmul.f32 %v3571, 1.442695
      %v3677 = vpow.pop %v3676
      %v3678 = vmul.f32 %v3572, 1.442695
      %v3679 = vpow.pop %v3678
      %v3680 = vmul.f32 %v3573, 1.442695
      %v3681 = vpow.pop %v3680
      %v3682 = vmul.f32 %v3574, 1.442695
      %v3683 = vpow.pop %v3682
      %v3684 = vmul.f32 %v3575, 1.442695
      %v3685 = vpow.pop %v3684
      %v3686 = vmul.f32 %v3576, 1.442695
      %v3687 = vpow.pop %v3686
      %v3688 = vmul.f32 %v3577, 1.442695
      %v3689 = vpow.pop %v3688
      %v3690 = vmul.f32 %v3578, 1.442695
      %v3691 = vpow.pop %v3690
      %v3692 = vmul.f32 %v3579, 1.442695
      %v3693 = vpow.pop %v3692
      %v3694 = vmul.f32 %v3580, 1.442695
      %v3695 = vpow.pop %v3694
      %v3696 = vmul.f32 %v3581, 1.442695
      %v3697 = vpow.pop %v3696
      %v3698 = vmul.f32 %v3582, 1.442695
      %v3699 = vpow.pop %v3698
      %v3700 = vmul.f32 %v3583, 1.442695
      %v3701 = vpow.pop %v3700
      %v3702 = vmul.f32 %v3584, 1.442695
      %v3703 = vpow.pop %v3702
      %v3704 = vmul.f32 %v3585, 1.442695
      %v3705 = vpow.pop %v3704
      %v3706 = vmul.f32 %v3586, 1.442695
      %v3707 = vpow.pop %v3706
      %v3708 = vmul.f32 %v3587, 1.442695
      %v3709 = vpow.pop %v3708
      %v3710 = vmul.f32 %v3588, 1.442695
      %v3711 = vpow.pop %v3710
      %v3712 = vmul.f32 %v3589, 1.442695
      %v3713 = vpow.pop %v3712
      %v3714 = vmul.f32 %v3590, 1.442695
      %v3715 = vpow.pop %v3714
      %v3716 = vmul.f32 %v3591, 1.442695
      %v3717 = vpow.pop %v3716
      %v3718 = vmul.f32 %v3592, 1.442695
      %v3719 = vpow.pop %v3718
      %v3720 = vmul.f32 %v3593, 1.442695
      %v3721 = vpow.pop %v3720
      %v3722 = vadd.f32 %v3595, 1.0
      %v3723 = vadd.f32 %v3597, 1.0
      %v3724 = vadd.f32 %v3599, 1.0
      %v3725 = vadd.f32 %v3601, 1.0
      %v3726 = vadd.f32 %v3603, 1.0
      %v3727 = vadd.f32 %v3605, 1.0
      %v3728 = vadd.f32 %v3607, 1.0
      %v3729 = vadd.f32 %v3609, 1.0
      %v3730 = vadd.f32 %v3611, 1.0
      %v3731 = vadd.f32 %v3613, 1.0
      %v3732 = vadd.f32 %v3615, 1.0
      %v3733 = vadd.f32 %v3617, 1.0
      %v3734 = vadd.f32 %v3619, 1.0
      %v3735 = vadd.f32 %v3621, 1.0
      %v3736 = vadd.f32 %v3623, 1.0
      %v3737 = vadd.f32 %v3625, 1.0
      %v3738 = vadd.f32 %v3627, 1.0
      %v3739 = vadd.f32 %v3629, 1.0
      %v3740 = vadd.f32 %v3631, 1.0
      %v3741 = vadd.f32 %v3633, 1.0
      %v3742 = vadd.f32 %v3635, 1.0
      %v3743 = vadd.f32 %v3637, 1.0
      %v3744 = vadd.f32 %v3639, 1.0
      %v3745 = vadd.f32 %v3641, 1.0
      %v3746 = vadd.f32 %v3643, 1.0
      %v3747 = vadd.f32 %v3645, 1.0
      %v3748 = vadd.f32 %v3647, 1.0
      %v3749 = vadd.f32 %v3649, 1.0
      %v3750 = vadd.f32 %v3651, 1.0
      %v3751 = vadd.f32 %v3653, 1.0
      %v3752 = vadd.f32 %v3655, 1.0
      %v3753 = vadd.f32 %v3657, 1.0
      %v3754 = vadd.f32 %v3659, 1.0
      %v3755 = vadd.f32 %v3661, 1.0
      %v3756 = vadd.f32 %v3663, 1.0
      %v3757 = vadd.f32 %v3665, 1.0
      %v3758 = vadd.f32 %v3667, 1.0
      %v3759 = vadd.f32 %v3669, 1.0
      %v3760 = vadd.f32 %v3671, 1.0
      %v3761 = vadd.f32 %v3673, 1.0
      %v3762 = vadd.f32 %v3675, 1.0
      %v3763 = vadd.f32 %v3677, 1.0
      %v3764 = vadd.f32 %v3679, 1.0
      %v3765 = vadd.f32 %v3681, 1.0
      %v3766 = vadd.f32 %v3683, 1.0
      %v3767 = vadd.f32 %v3685, 1.0
      %v3768 = vadd.f32 %v3687, 1.0
      %v3769 = vadd.f32 %v3689, 1.0
      %v3770 = vadd.f32 %v3691, 1.0
      %v3771 = vadd.f32 %v3693, 1.0
      %v3772 = vadd.f32 %v3695, 1.0
      %v3773 = vadd.f32 %v3697, 1.0
      %v3774 = vadd.f32 %v3699, 1.0
      %v3775 = vadd.f32 %v3701, 1.0
      %v3776 = vadd.f32 %v3703, 1.0
      %v3777 = vadd.f32 %v3705, 1.0
      %v3778 = vadd.f32 %v3707, 1.0
      %v3779 = vadd.f32 %v3709, 1.0
      %v3780 = vadd.f32 %v3711, 1.0
      %v3781 = vadd.f32 %v3713, 1.0
      %v3782 = vadd.f32 %v3715, 1.0
      %v3783 = vadd.f32 %v3717, 1.0
      %v3784 = vadd.f32 %v3719, 1.0
      %v3785 = vadd.f32 %v3721, 1.0
      %v3786 = vrcp.pop %v3722
      %v3787 = vmul.f32 1.0, %v3786
      %v3788 = vrcp.pop %v3723
      %v3789 = vmul.f32 1.0, %v3788
      %v3790 = vrcp.pop %v3724
      %v3791 = vmul.f32 1.0, %v3790
      %v3792 = vrcp.pop %v3725
      %v3793 = vmul.f32 1.0, %v3792
      %v3794 = vrcp.pop %v3726
      %v3795 = vmul.f32 1.0, %v3794
      %v3796 = vrcp.pop %v3727
      %v3797 = vmul.f32 1.0, %v3796
      %v3798 = vrcp.pop %v3728
      %v3799 = vmul.f32 1.0, %v3798
      %v3800 = vrcp.pop %v3729
      %v3801 = vmul.f32 1.0, %v3800
      %v3802 = vrcp.pop %v3730
      %v3803 = vmul.f32 1.0, %v3802
      %v3804 = vrcp.pop %v3731
      %v3805 = vmul.f32 1.0, %v3804
      %v3806 = vrcp.pop %v3732
      %v3807 = vmul.f32 1.0, %v3806
      %v3808 = vrcp.pop %v3733
      %v3809 = vmul.f32 1.0, %v3808
      %v3810 = vrcp.pop %v3734
      %v3811 = vmul.f32 1.0, %v3810
      %v3812 = vrcp.pop %v3735
      %v3813 = vmul.f32 1.0, %v3812
      %v3814 = vrcp.pop %v3736
      %v3815 = vmul.f32 1.0, %v3814
      %v3816 = vrcp.pop %v3737
      %v3817 = vmul.f32 1.0, %v3816
      %v3818 = vrcp.pop %v3738
      %v3819 = vmul.f32 1.0, %v3818
      %v3820 = vrcp.pop %v3739
      %v3821 = vmul.f32 1.0, %v3820
      %v3822 = vrcp.pop %v3740
      %v3823 = vmul.f32 1.0, %v3822
      %v3824 = vrcp.pop %v3741
      %v3825 = vmul.f32 1.0, %v3824
      %v3826 = vrcp.pop %v3742
      %v3827 = vmul.f32 1.0, %v3826
      %v3828 = vrcp.pop %v3743
      %v3829 = vmul.f32 1.0, %v3828
      %v3830 = vrcp.pop %v3744
      %v3831 = vmul.f32 1.0, %v3830
      %v3832 = vrcp.pop %v3745
      %v3833 = vmul.f32 1.0, %v3832
      %v3834 = vrcp.pop %v3746
      %v3835 = vmul.f32 1.0, %v3834
      %v3836 = vrcp.pop %v3747
      %v3837 = vmul.f32 1.0, %v3836
      %v3838 = vrcp.pop %v3748
      %v3839 = vmul.f32 1.0, %v3838
      %v3840 = vrcp.pop %v3749
      %v3841 = vmul.f32 1.0, %v3840
      %v3842 = vrcp.pop %v3750
      %v3843 = vmul.f32 1.0, %v3842
      %v3844 = vrcp.pop %v3751
      %v3845 = vmul.f32 1.0, %v3844
      %v3846 = vrcp.pop %v3752
      %v3847 = vmul.f32 1.0, %v3846
      %v3848 = vrcp.pop %v3753
      %v3849 = vmul.f32 1.0, %v3848
      %v3850 = vrcp.pop %v3754
      %v3851 = vmul.f32 1.0, %v3850
      %v3852 = vrcp.pop %v3755
      %v3853 = vmul.f32 1.0, %v3852
      %v3854 = vrcp.pop %v3756
      %v3855 = vmul.f32 1.0, %v3854
      %v3856 = vrcp.pop %v3757
      %v3857 = vmul.f32 1.0, %v3856
      %v3858 = vrcp.pop %v3758
      %v3859 = vmul.f32 1.0, %v3858
      %v3860 = vrcp.pop %v3759
      %v3861 = vmul.f32 1.0, %v3860
      %v3862 = vrcp.pop %v3760
      %v3863 = vmul.f32 1.0, %v3862
      %v3864 = vrcp.pop %v3761
      %v3865 = vmul.f32 1.0, %v3864
      %v3866 = vrcp.pop %v3762
      %v3867 = vmul.f32 1.0, %v3866
      %v3868 = vrcp.pop %v3763
      %v3869 = vmul.f32 1.0, %v3868
      %v3870 = vrcp.pop %v3764
      %v3871 = vmul.f32 1.0, %v3870
      %v3872 = vrcp.pop %v3765
      %v3873 = vmul.f32 1.0, %v3872
      %v3874 = vrcp.pop %v3766
      %v3875 = vmul.f32 1.0, %v3874
      %v3876 = vrcp.pop %v3767
      %v3877 = vmul.f32 1.0, %v3876
      %v3878 = vrcp.pop %v3768
      %v3879 = vmul.f32 1.0, %v3878
      %v3880 = vrcp.pop %v3769
      %v3881 = vmul.f32 1.0, %v3880
      %v3882 = vrcp.pop %v3770
      %v3883 = vmul.f32 1.0, %v3882
      %v3884 = vrcp.pop %v3771
      %v3885 = vmul.f32 1.0, %v3884
      %v3886 = vrcp.pop %v3772
      %v3887 = vmul.f32 1.0, %v3886
      %v3888 = vrcp.pop %v3773
      %v3889 = vmul.f32 1.0, %v3888
      %v3890 = vrcp.pop %v3774
      %v3891 = vmul.f32 1.0, %v3890
      %v3892 = vrcp.pop %v3775
      %v3893 = vmul.f32 1.0, %v3892
      %v3894 = vrcp.pop %v3776
      %v3895 = vmul.f32 1.0, %v3894
      %v3896 = vrcp.pop %v3777
      %v3897 = vmul.f32 1.0, %v3896
      %v3898 = vrcp.pop %v3778
      %v3899 = vmul.f32 1.0, %v3898
      %v3900 = vrcp.pop %v3779
      %v3901 = vmul.f32 1.0, %v3900
      %v3902 = vrcp.pop %v3780
      %v3903 = vmul.f32 1.0, %v3902
      %v3904 = vrcp.pop %v3781
      %v3905 = vmul.f32 1.0, %v3904
      %v3906 = vrcp.pop %v3782
      %v3907 = vmul.f32 1.0, %v3906
      %v3908 = vrcp.pop %v3783
      %v3909 = vmul.f32 1.0, %v3908
      %v3910 = vrcp.pop %v3784
      %v3911 = vmul.f32 1.0, %v3910
      %v3912 = vrcp.pop %v3785
      %v3913 = vmul.f32 1.0, %v3912
      %vm3914 = vcmask 7168
      %3915 = vst.msk [vmem:[%s335] sm:$0xff] %vm3914, %v3787
      %3916 = vst.msk [vmem:[%s335 + $0x8] sm:$0xff] %vm3914, %v3789
      %3917 = vst.msk [vmem:[%s335 + $0x10] sm:$0xff] %vm3914, %v3791
      %3918 = vst.msk [vmem:[%s335 + $0x18] sm:$0xff] %vm3914, %v3793
      %3919 = vst.msk [vmem:[%s335 + $0x20] sm:$0xff] %vm3914, %v3795
      %3920 = vst.msk [vmem:[%s335 + $0x28] sm:$0xff] %vm3914, %v3797
      %3921 = vst.msk [vmem:[%s335 + $0x30] sm:$0xff] %vm3914, %v3799
      %3922 = vst.msk [vmem:[%s335 + $0x38] sm:$0xff] %vm3914, %v3801
      %3923 = vst.msk [vmem:[%s335 + $0x40] sm:$0xff] %vm3914, %v3803
      %3924 = vst.msk [vmem:[%s335 + $0x48] sm:$0xff] %vm3914, %v3805
      %3925 = vst.msk [vmem:[%s335 + $0x50] sm:$0xff] %vm3914, %v3807
      %3926 = vst.msk [vmem:[%s335 + $0x58] sm:$0xff] %vm3914, %v3809
      %3927 = vst.msk [vmem:[%s335 + $0x60] sm:$0xff] %vm3914, %v3811
      %3928 = vst.msk [vmem:[%s335 + $0x68] sm:$0xff] %vm3914, %v3813
      %3929 = vst.msk [vmem:[%s335 + $0x70] sm:$0xff] %vm3914, %v3815
      %3930 = vst.msk [vmem:[%s335 + $0x78] sm:$0xff] %vm3914, %v3817
      %3931 = vst.msk [vmem:[%s335 + $0x80] sm:$0xff] %vm3914, %v3819
      %3932 = vst.msk [vmem:[%s335 + $0x88] sm:$0xff] %vm3914, %v3821
      %3933 = vst.msk [vmem:[%s335 + $0x90] sm:$0xff] %vm3914, %v3823
      %3934 = vst.msk [vmem:[%s335 + $0x98] sm:$0xff] %vm3914, %v3825
      %3935 = vst.msk [vmem:[%s335 + $0xa0] sm:$0xff] %vm3914, %v3827
      %3936 = vst.msk [vmem:[%s335 + $0xa8] sm:$0xff] %vm3914, %v3829
      %3937 = vst.msk [vmem:[%s335 + $0xb0] sm:$0xff] %vm3914, %v3831
      %3938 = vst.msk [vmem:[%s335 + $0xb8] sm:$0xff] %vm3914, %v3833
      %3939 = vst.msk [vmem:[%s335 + $0xc0] sm:$0xff] %vm3914, %v3835
      %3940 = vst.msk [vmem:[%s335 + $0xc8] sm:$0xff] %vm3914, %v3837
      %3941 = vst.msk [vmem:[%s335 + $0xd0] sm:$0xff] %vm3914, %v3839
      %3942 = vst.msk [vmem:[%s335 + $0xd8] sm:$0xff] %vm3914, %v3841
      %3943 = vst.msk [vmem:[%s335 + $0xe0] sm:$0xff] %vm3914, %v3843
      %3944 = vst.msk [vmem:[%s335 + $0xe8] sm:$0xff] %vm3914, %v3845
      %3945 = vst.msk [vmem:[%s335 + $0xf0] sm:$0xff] %vm3914, %v3847
      %3946 = vst.msk [vmem:[%s335 + $0xf8] sm:$0xff] %vm3914, %v3849
      %3947 = vst.msk [vmem:[%s335 + $0x100] sm:$0xff] %vm3914, %v3851
      %3948 = vst.msk [vmem:[%s335 + $0x108] sm:$0xff] %vm3914, %v3853
      %3949 = vst.msk [vmem:[%s335 + $0x110] sm:$0xff] %vm3914, %v3855
      %3950 = vst.msk [vmem:[%s335 + $0x118] sm:$0xff] %vm3914, %v3857
      %3951 = vst.msk [vmem:[%s335 + $0x120] sm:$0xff] %vm3914, %v3859
      %3952 = vst.msk [vmem:[%s335 + $0x128] sm:$0xff] %vm3914, %v3861
      %3953 = vst.msk [vmem:[%s335 + $0x130] sm:$0xff] %vm3914, %v3863
      %3954 = vst.msk [vmem:[%s335 + $0x138] sm:$0xff] %vm3914, %v3865
      %3955 = vst.msk [vmem:[%s335 + $0x140] sm:$0xff] %vm3914, %v3867
      %3956 = vst.msk [vmem:[%s335 + $0x148] sm:$0xff] %vm3914, %v3869
      %3957 = vst.msk [vmem:[%s335 + $0x150] sm:$0xff] %vm3914, %v3871
      %3958 = vst.msk [vmem:[%s335 + $0x158] sm:$0xff] %vm3914, %v3873
      %3959 = vst.msk [vmem:[%s335 + $0x160] sm:$0xff] %vm3914, %v3875
      %3960 = vst.msk [vmem:[%s335 + $0x168] sm:$0xff] %vm3914, %v3877
      %3961 = vst.msk [vmem:[%s335 + $0x170] sm:$0xff] %vm3914, %v3879
      %3962 = vst.msk [vmem:[%s335 + $0x178] sm:$0xff] %vm3914, %v3881
      %3963 = vst.msk [vmem:[%s335 + $0x180] sm:$0xff] %vm3914, %v3883
      %3964 = vst.msk [vmem:[%s335 + $0x188] sm:$0xff] %vm3914, %v3885
      %3965 = vst.msk [vmem:[%s335 + $0x190] sm:$0xff] %vm3914, %v3887
      %3966 = vst.msk [vmem:[%s335 + $0x198] sm:$0xff] %vm3914, %v3889
      %3967 = vst.msk [vmem:[%s335 + $0x1a0] sm:$0xff] %vm3914, %v3891
      %3968 = vst.msk [vmem:[%s335 + $0x1a8] sm:$0xff] %vm3914, %v3893
      %3969 = vst.msk [vmem:[%s335 + $0x1b0] sm:$0xff] %vm3914, %v3895
      %3970 = vst.msk [vmem:[%s335 + $0x1b8] sm:$0xff] %vm3914, %v3897
      %3971 = vst.msk [vmem:[%s335 + $0x1c0] sm:$0xff] %vm3914, %v3899
      %3972 = vst.msk [vmem:[%s335 + $0x1c8] sm:$0xff] %vm3914, %v3901
      %3973 = vst.msk [vmem:[%s335 + $0x1d0] sm:$0xff] %vm3914, %v3903
      %3974 = vst.msk [vmem:[%s335 + $0x1d8] sm:$0xff] %vm3914, %v3905
      %3975 = vst.msk [vmem:[%s335 + $0x1e0] sm:$0xff] %vm3914, %v3907
      %3976 = vst.msk [vmem:[%s335 + $0x1e8] sm:$0xff] %vm3914, %v3909
      %3977 = vst.msk [vmem:[%s335 + $0x1f0] sm:$0xff] %vm3914, %v3911
      %3978 = vst.msk [vmem:[%s335 + $0x1f8] sm:$0xff] %vm3914, %v3913
      %s3979 = smul.u32 64, %s21
      %p3980 = scmp.lt.s32.totalorder %s3979, 127
      %s3981 = scalar_select %p3980, %s3979, 127
      %s3982 = smul.addr %s3981, 8
      %s3983 = scalar_lea.vmem %s9, %s3982
      // Predicated region
      $region57: #{_lambda_.1} parent=55 // pred_check
        %p3984 = pneg %p233
      $region58: #{_lambda_.1} parent=55 // pred_check_branch
        %3986 = sbr.rel (%p3984) target = $region60
      $region59: #{_lambda_.1} parent=55 // pred_region
        %s3987 = smul.u32 64, %s21
      $region60: #{_lambda_.1} parent=55 // pred_fallthru
        _
    $region56: #{_lambda_.1} parent=5 // pred_fallthru
      _
    %p3988 = scmp.le.s32.totalorder 2, %s16
    // Predicated region
    $region61: #{_lambda_.1} parent=5 // pred_check
      %p3989 = pneg %p3988
    $region62: #{_lambda_.1} parent=5 // pred_check_branch
      %3991 = sbr.rel (%p3989) target = $region64
    $region63: #{_lambda_.1} parent=5 // pred_region
      %s3992 = ssub.s32 %s16, 2
      // Predicated region
      $region65: #{_lambda_.1} parent=63 // pred_check
        %p3993 = pneg %p239
      $region66: #{_lambda_.1} parent=63 // pred_check_branch
        %3995 = sbr.rel (%p3993) target = $region68
      $region67: #{_lambda_.1} parent=63 // pred_region
        %s3996 = smul.u32 64, %s22
        %p3997 = scmp.lt.s32.totalorder %s3996, 127
        %s3998 = scalar_select %p3997, %s3996, 127
        %s3999 = smul.addr %s3998, 8
        %s4000 = scalar_lea.vmem %s9, %s3999
      $region68: #{_lambda_.1} parent=63 // pred_fallthru
        _
    $region64: #{_lambda_.1} parent=5 // pred_fallthru
      _
  $region6: #{_lambda_.1} parent=0 // loop_footer
    %s20 = sadd.s32 1, %s16
  $region7: #{_lambda_.1} parent=0 // loop_footer_branch
    %15 = sbr.rel target = $region3
  $region8: #{_lambda_.1} parent=0 // loop_exit
    _

</llo_original>
